<compile_context>
chip_gen: v6e
topology: v6e:2x2x1
jax: 0.10.0
libtpu: 0.0.40
codegen_flags: <defaults>
</compile_context>

<pallas_src>
import functools
import math

import jax
import jax.numpy as jnp
import numpy as np
from jax import lax
from jax.experimental import pallas as pl
from jax.experimental.pallas import tpu as pltpu


def _sigmoid(x):
    # EUP-friendly sigmoid: one tanh instead of exp + divide (mathematically exact).
    return 0.5 * (jnp.tanh(0.5 * x) + 1.0)


def _hint(i, m):
    """Attach a multiple-of hint for traced indices; pass static ints through."""
    return i if isinstance(i, int) else pl.multiple_of(i, m)


def gru_kernel(x_ref,                    # (T*BT, Dp)  bf16, time-major within the batch tile
               wi1_ref, wh1_ref,         # (Dp, 3Hp), (Hp, 3Hp)  bf16
               b1_ref, bh1n_ref,         # (1, 3Hp) f32 = bi1 + [bh1_r, bh1_z, 0]; (1, Hp) f32 = bh1_n
               wi2_ref, wh2_ref,         # (Hp, 3Hp), (Hp, 3Hp)  bf16
               b2_ref, bh2n_ref,         # (1, 3Hp) f32;  (1, Hp) f32
               wfc_ref, bfc_ref,         # (Hp, Cp) bf16; (1, Cp) f32
               out_ref,                  # (BT, Cp) f32
               g1_s,                     # scratch (n_slots*chunk_t*BT, 3Hp) f32
               *, chunk_t, unroll):
    BT = out_ref.shape[0]
    TB = x_ref.shape[0]
    T = TB // BT
    Hp = wh1_ref.shape[0]
    CR = chunk_t * BT                     # scratch rows per time chunk
    n_chunks = T // chunk_t
    n_slots = g1_s.shape[0] // CR         # 1 or 2 chunk buffers

    # Loop-invariant (1, N) bias rows; broadcast happens lazily inside the adds
    # so we do not pin (BT, 3Hp)-sized values in vregs across the recurrence.
    b1 = b1_ref[...]
    bh1n = bh1n_ref[...]
    b2 = b2_ref[...]
    bh2n = bh2n_ref[...]

    def precompute(cc, slot):
        # Fused layer-0 input projection (r|z|n packed on the lane axis) for
        # timesteps [cc*chunk_t, (cc+1)*chunk_t). Recurrent r/z biases are
        # already folded into b1 on the host side.
        xs = x_ref[pl.ds(_hint(cc * CR, CR), CR), :]                 # (CR, Dp) bf16
        g1_s[pl.ds(_hint(slot * CR, CR), CR), :] = (
            jnp.dot(xs, wi1_ref[...], preferred_element_type=jnp.float32) + b1)

    def cell(gi, hh, h, bhn):
        # gi already holds x·W_i + b_i (+ folded recurrent r/z biases); all f32.
        r = _sigmoid(gi[:, :Hp] + hh[:, :Hp])
        z = _sigmoid(gi[:, Hp:2 * Hp] + hh[:, Hp:2 * Hp])
        n = jnp.tanh(gi[:, 2 * Hp:] + r * (hh[:, 2 * Hp:] + bhn))
        return (1.0 - z) * n + z * h

    precompute(0, 0)

    def chunk_body(cc, carry):
        slot = cc % n_slots
        # Issue the NEXT chunk's input projection into the other buffer before
        # walking the current chunk's serial recurrence (chunked precompute:
        # bounds scratch to 2 chunks and lets the MXU work hide behind the
        # latency-bound chain).
        @pl.when(cc + 1 < n_chunks)
        def _():
            precompute(cc + 1, (slot + 1) % n_slots)

        def step(tt, c2):
            h1, h2 = c2                                               # (BT, Hp) f32
            row = _hint(slot * CR + tt * BT, BT)
            gi1 = g1_s[pl.ds(row, BT), :]                             # (BT, 3Hp)
            hh1 = jnp.dot(h1.astype(jnp.bfloat16), wh1_ref[...],
                          preferred_element_type=jnp.float32)
            h1n = cell(gi1, hh1, h1, bh1n)
            # Wavefront layer fusion: layer-1 step t consumes layer-0 output at t.
            # (dropout between layers is training-only -> no-op here)
            gi2 = jnp.dot(h1n.astype(jnp.bfloat16), wi2_ref[...],
                          preferred_element_type=jnp.float32) + b2
            hh2 = jnp.dot(h2.astype(jnp.bfloat16), wh2_ref[...],
                          preferred_element_type=jnp.float32)
            h2n = cell(gi2, hh2, h2, bh2n)
            return (h1n, h2n)

        # Partial unroll: scheduler visibility without instruction-memory blowup.
        return lax.fori_loop(0, chunk_t, step, carry,
                             unroll=min(unroll, chunk_t))

    # Padded hidden columns stay exactly 0 only because h starts at 0 and the
    # padded weight/bias columns are 0 (there r=z=0.5, n=0) -- do not change h0.
    h0 = jnp.zeros((BT, Hp), jnp.float32)
    _, h2_last = lax.fori_loop(0, n_chunks, chunk_body, (h0, h0))

    # fc head on the last timestep of the top layer.
    out_ref[...] = (jnp.dot(h2_last.astype(jnp.bfloat16), wfc_ref[...],
                            preferred_element_type=jnp.float32) + bfc_ref[...])


def _round_up(n, m):
    return ((n + m - 1) // m) * m


def _choose_b_tile(B, max_tile):
    """Batch tile: as large as possible (fills MXU rows), but prefer >=2 grid
    tiles when the batch allows so both v7x TensorCores get work."""
    Bp = _round_up(B, 8)
    if Bp > max_tile:
        return max_tile
    if Bp >= 32:                       # big enough to split into two >=16-row tiles
        return _round_up((Bp + 1) // 2, 8)
    return Bp


def _choose_chunk_t(T, target):
    """Largest divisor of T that is <= target (keeps T % chunk_t == 0)."""
    c = max(1, min(target, T))
    while T % c:
        c -= 1
    return c


def gru_model_forward(x, params, *, max_b_tile=128, b_tile=None,
                      chunk_t=16, unroll=4):
    """x: (B, T, D) float32 -> logits (B, C). Mirrors GRUModel.forward (inference)."""
    B, T, D = x.shape
    Dp = params["wi1"].shape[0]
    Hp = params["wh1"].shape[0]
    Cp = params["wfc"].shape[1]
    C = params["num_classes"]

    bt = _round_up(b_tile if b_tile is not None else _choose_b_tile(B, max_b_tile), 8)
    n_btiles = -(-B // bt)
    Bp = n_btiles * bt

    ct = _choose_chunk_t(T, chunk_t)
    n_chunks = T // ct
    n_slots = min(2, n_chunks)

    # Host-side prep in bf16 (halves pad/transpose traffic). Layout per batch
    # tile is time-major: row = tile*T*bt + t*bt + row_in_tile.
    xk = jnp.zeros((Bp, T, Dp), jnp.bfloat16).at[:B, :, :D].set(x.astype(jnp.bfloat16))
    xk = (xk.reshape(n_btiles, bt, T, Dp)
            .transpose(0, 2, 1, 3)
            .reshape(n_btiles * T * bt, Dp))

    weights = (params["wi1"], params["wh1"], params["b1"], params["bh1n"],
               params["wi2"], params["wh2"], params["b2"], params["bh2n"],
               params["wfc"], params["bfc"])

    in_specs = [pl.BlockSpec((T * bt, Dp), lambda b: (b, 0))] + [
        pl.BlockSpec(w.shape, lambda b: (0, 0)) for w in weights]

    # Explicit VMEM budget: double-buffered x block + weights (x2, pipelined) +
    # chunked gate scratch + double-buffered out block, with 25% slack.
    w_bytes = sum(int(w.size) * w.dtype.itemsize for w in weights)
    need = (2 * T * bt * Dp * 2            # x block, bf16, double-buffered
            + 2 * w_bytes                  # weights/biases, double-buffered
            + n_slots * ct * bt * 3 * Hp * 4   # g1 scratch (f32, chunked)
            + 2 * bt * Cp * 4)             # out block, f32, double-buffered
    vmem_limit = int(min(64 << 20, max(16 << 20, need * 5 // 4 + (2 << 20))))

    kernel = functools.partial(gru_kernel, chunk_t=ct, unroll=unroll)

    out = pl.pallas_call(
        kernel,
        out_shape=jax.ShapeDtypeStruct((Bp, Cp), jnp.float32),
        grid=(n_btiles,),
        in_specs=in_specs,
        out_specs=pl.BlockSpec((bt, Cp), lambda b: (b, 0)),
        scratch_shapes=[pltpu.VMEM((n_slots * ct * bt, 3 * Hp), jnp.float32)],
        compiler_params=pltpu.CompilerParams(
            # Batch tiles are independent -> megacore-parallel on v7x.
            dimension_semantics=("parallel",),
            vmem_limit_bytes=vmem_limit,
        ),
    )(xk, *weights)

    return out[:B, :C]


def init_params(key, D, H, C):
    """PyTorch-style uniform(-1/sqrt(H), 1/sqrt(H)) init, packed/padded for the kernel."""
    rup = lambda n, m: ((n + m - 1) // m) * m
    Dp, Hp, Cp = rup(D, 128), rup(H, 128), rup(C, 128)

    bound = 1.0 / math.sqrt(H)
    ks = jax.random.split(key, 10)
    u = lambda k_, shp: jax.random.uniform(k_, shp, jnp.float32, -bound, bound)

    # PyTorch nn.GRU parameter layout (gate order r, z, n along dim 0).
    w_ih_l0, w_hh_l0 = u(ks[0], (3 * H, D)), u(ks[1], (3 * H, H))
    b_ih_l0, b_hh_l0 = u(ks[2], (3 * H,)), u(ks[3], (3 * H,))
    w_ih_l1, w_hh_l1 = u(ks[4], (3 * H, H)), u(ks[5], (3 * H, H))
    b_ih_l1, b_hh_l1 = u(ks[6], (3 * H,)), u(ks[7], (3 * H,))
    w_fc, b_fc = u(ks[8], (C, H)), u(ks[9], (C,))

    def pack_layer(w_ih, w_hh, b_ih, b_hh, in_dim, in_pad):
        wi = jnp.zeros((in_pad, 3 * Hp), jnp.float32)
        wh = jnp.zeros((Hp, 3 * Hp), jnp.float32)
        bi_f = jnp.zeros((1, 3 * Hp), jnp.float32)
        bh_f = jnp.zeros((1, 3 * Hp), jnp.float32)
        for g in range(3):
            wi = wi.at[:in_dim, g * Hp:g * Hp + H].set(w_ih[g * H:(g + 1) * H, :].T)
            wh = wh.at[:H, g * Hp:g * Hp + H].set(w_hh[g * H:(g + 1) * H, :].T)
            bi_f = bi_f.at[0, g * Hp:g * Hp + H].set(b_ih[g * H:(g + 1) * H])
            bh_f = bh_f.at[0, g * Hp:g * Hp + H].set(b_hh[g * H:(g + 1) * H])
        # Kernel biases: fold recurrent r/z biases into the precomputed input term;
        # bh_n stays separate (it is scaled by r inside the cell).
        b_pre = bi_f.at[0, :2 * Hp].add(bh_f[0, :2 * Hp])
        bhn = bh_f[:, 2 * Hp:]
        return (wi.astype(jnp.bfloat16), wh.astype(jnp.bfloat16),
                b_pre, bhn, bi_f, bh_f)

    wi1, wh1, b1, bh1n, bi1_f, bh1_f = pack_layer(w_ih_l0, w_hh_l0, b_ih_l0, b_hh_l0, D, Dp)
    wi2, wh2, b2, bh2n, bi2_f, bh2_f = pack_layer(w_ih_l1, w_hh_l1, b_ih_l1, b_hh_l1, H, Hp)

    wfc = jnp.zeros((Hp, Cp), jnp.float32).at[:H, :C].set(w_fc.T).astype(jnp.bfloat16)
    bfc = jnp.zeros((1, Cp), jnp.float32).at[0, :C].set(b_fc)

    return {
        # kernel params
        "wi1": wi1, "wh1": wh1, "b1": b1, "bh1n": bh1n,
        "wi2": wi2, "wh2": wh2, "b2": b2, "bh2n": bh2n,
        "wfc": wfc, "bfc": bfc,
        # reference-only (un-folded) biases
        "bi1_full": bi1_f, "bh1_full": bh1_f,
        "bi2_full": bi2_f, "bh2_full": bh2_f,
        "num_classes": C,
    }


def gru_model_ref(x, params):
    """Pure-JAX reference of the torch.nn.GRU equations (gate order r,z,n) + fc head."""
    B, T, D = x.shape
    Dp = params["wi1"].shape[0]
    Hp = params["wh1"].shape[0]
    C = params["num_classes"]
    xp = jnp.zeros((B, T, Dp), jnp.float32).at[:, :, :D].set(x)

    def cell(h, x_t, wi, wh, bi_full, bh_full):
        gi = jnp.dot(x_t.astype(jnp.bfloat16), wi,
                     preferred_element_type=jnp.float32) + bi_full
        gh = jnp.dot(h.astype(jnp.bfloat16), wh,
                     preferred_element_type=jnp.float32) + bh_full
        r = jax.nn.sigmoid(gi[:, :Hp] + gh[:, :Hp])
        z = jax.nn.sigmoid(gi[:, Hp:2 * Hp] + gh[:, Hp:2 * Hp])
        n = jnp.tanh(gi[:, 2 * Hp:] + r * gh[:, 2 * Hp:])
        return (1.0 - z) * n + z * h

    h1 = jnp.zeros((B, Hp), jnp.float32)
    h2 = jnp.zeros((B, Hp), jnp.float32)
    for t in range(T):
        h1 = cell(h1, xp[:, t, :], params["wi1"], params["wh1"],
                  params["bi1_full"], params["bh1_full"])
        h2 = cell(h2, h1, params["wi2"], params["wh2"],
                  params["bi2_full"], params["bh2_full"])

    out = jnp.dot(h2.astype(jnp.bfloat16), params["wfc"],
                  preferred_element_type=jnp.float32) + params["bfc"]
    return out[:, :C]


if __name__ == "__main__":
    # Small-shape stand-ins for (input_size=64, hidden=256, classes=40).
    # B=40 -> 2 batch tiles (exercises the parallel grid axis); chunk_t=4 with
    # T=8 -> 2 time chunks (exercises the double-buffered chunked precompute).
    B, T, D, H, C = 40, 8, 16, 32, 10

    key = jax.random.PRNGKey(0)
    kx, kp = jax.random.split(key)
    x = jax.random.normal(kx, (B, T, D), jnp.float32)
    params = init_params(kp, D, H, C)

    out = jax.block_until_ready(gru_model_forward(x, params, chunk_t=4))
    ref = jax.block_until_ready(gru_model_ref(x, params))

    assert out.shape == (B, C), out.shape
    np.testing.assert_allclose(np.asarray(out), np.asarray(ref), rtol=5e-3, atol=5e-3)
    print("KERNEL_OK")
</pallas_src>

<mosaic_0001>
module attributes {stable_mosaic.version = 11 : i64} {
  func.func @gru_kernel(%arg0: i32, %arg1: memref<192x128xbf16, #tpu.memory_space<vmem>>, %arg2: memref<128x384xbf16, #tpu.memory_space<vmem>>, %arg3: memref<128x384xbf16, #tpu.memory_space<vmem>>, %arg4: memref<1x384xf32, #tpu.memory_space<vmem>>, %arg5: memref<1x128xf32, #tpu.memory_space<vmem>>, %arg6: memref<128x384xbf16, #tpu.memory_space<vmem>>, %arg7: memref<128x384xbf16, #tpu.memory_space<vmem>>, %arg8: memref<1x384xf32, #tpu.memory_space<vmem>>, %arg9: memref<1x128xf32, #tpu.memory_space<vmem>>, %arg10: memref<128x128xbf16, #tpu.memory_space<vmem>>, %arg11: memref<1x128xf32, #tpu.memory_space<vmem>>, %arg12: memref<24x128xf32, #tpu.memory_space<vmem>>, %arg13: memref<192x384xf32, #tpu.memory_space<vmem>>) attributes {dimension_semantics = [#tpu.dimension_semantics<parallel>], iteration_bounds = array<i64: 2>, scalar_prefetch = 0 : i64, scratch_operands = 1 : i64, tpu.core_type = #tpu.core_type<tc>, window_params = [{transform_indices = @transform_0, window_bounds = array<i64: 192, 128>}, {pipeline_mode = #tpu.pipeline_mode<synchronous>, transform_indices = @transform_1, window_bounds = array<i64: 128, 384>}, {pipeline_mode = #tpu.pipeline_mode<synchronous>, transform_indices = @transform_2, window_bounds = array<i64: 128, 384>}, {pipeline_mode = #tpu.pipeline_mode<synchronous>, transform_indices = @transform_3, window_bounds = array<i64: 1, 384>}, {pipeline_mode = #tpu.pipeline_mode<synchronous>, transform_indices = @transform_4, window_bounds = array<i64: 1, 128>}, {pipeline_mode = #tpu.pipeline_mode<synchronous>, transform_indices = @transform_5, window_bounds = array<i64: 128, 384>}, {pipeline_mode = #tpu.pipeline_mode<synchronous>, transform_indices = @transform_6, window_bounds = array<i64: 128, 384>}, {pipeline_mode = #tpu.pipeline_mode<synchronous>, transform_indices = @transform_7, window_bounds = array<i64: 1, 384>}, {pipeline_mode = #tpu.pipeline_mode<synchronous>, transform_indices = @transform_8, window_bounds = array<i64: 1, 128>}, {pipeline_mode = #tpu.pipeline_mode<synchronous>, transform_indices = @transform_9, window_bounds = array<i64: 128, 128>}, {pipeline_mode = #tpu.pipeline_mode<synchronous>, transform_indices = @transform_10, window_bounds = array<i64: 1, 128>}, {transform_indices = @transform_11, window_bounds = array<i64: 24, 128>}]} {
    %c0 = arith.constant 0 : index
    %c0_0 = arith.constant 0 : index
    %0 = vector.load %arg4[%c0, %c0_0] : memref<1x384xf32, #tpu.memory_space<vmem>>, vector<1x384xf32>
    %c0_1 = arith.constant 0 : index
    %c0_2 = arith.constant 0 : index
    %1 = vector.load %arg5[%c0_1, %c0_2] : memref<1x128xf32, #tpu.memory_space<vmem>>, vector<1x128xf32>
    %c0_3 = arith.constant 0 : index
    %c0_4 = arith.constant 0 : index
    %2 = vector.load %arg8[%c0_3, %c0_4] : memref<1x384xf32, #tpu.memory_space<vmem>>, vector<1x384xf32>
    %c0_5 = arith.constant 0 : index
    %c0_6 = arith.constant 0 : index
    %3 = vector.load %arg9[%c0_5, %c0_6] : memref<1x128xf32, #tpu.memory_space<vmem>>, vector<1x128xf32>
    %c0_7 = arith.constant 0 : index
    %c0_8 = arith.constant 0 : index
    %4 = vector.load %arg1[%c0_7, %c0_8] : memref<192x128xbf16, #tpu.memory_space<vmem>>, vector<96x128xbf16>
    %c0_9 = arith.constant 0 : index
    %c0_10 = arith.constant 0 : index
    %5 = vector.load %arg2[%c0_9, %c0_10] : memref<128x384xbf16, #tpu.memory_space<vmem>>, vector<128x384xbf16>
    %cst = arith.constant dense<0.000000e+00> : vector<96x384xf32>
    %6 = tpu.matmul %4, %5, %cst {dimension_numbers = #tpu.dot_dimension_numbers<[1], [0], [0], [1], [0, 0, 1, 1], [], []>} : vector<96x128xbf16>, vector<128x384xbf16>, vector<96x384xf32> -> vector<96x384xf32>
    %7 = vector.broadcast %0 : vector<1x384xf32> to vector<96x384xf32>
    %8 = arith.addf %6, %7 : vector<96x384xf32>
    %c0_11 = arith.constant 0 : index
    %c0_12 = arith.constant 0 : index
    %9 = vector.load %arg13[%c0_11, %c0_12] : memref<192x384xf32, #tpu.memory_space<vmem>>, vector<96x384xf32>
    tpu.vector_store %arg13[%c0_11, %c0_12], %8 {strides = array<i32>} : memref<192x384xf32, #tpu.memory_space<vmem>>, vector<96x384xf32>,
    %cst_13 = arith.constant 0.000000e+00 : f32
    %10 = vector.broadcast %cst_13 : f32 to vector<24x128xf32>
    %c0_i32 = arith.constant 0 : i32
    %c2_i32 = arith.constant 2 : i32
    %11 = arith.addi %c0_i32, %c2_i32 : i32
    %c1_i32 = arith.constant 1 : i32
    %12:2 = scf.for %arg14 = %c0_i32 to %11 step %c1_i32 iter_args(%arg15 = %10, %arg16 = %10) -> (vector<24x128xf32>, vector<24x128xf32>)  : i32 {
      %c2_i32_22 = arith.constant 2 : i32
      %c0_i32_23 = arith.constant 0 : i32
      %20 = arith.cmpi eq, %c2_i32_22, %c0_i32_23 : i32
      %c1_i32_24 = arith.constant 1 : i32
      %21 = arith.select %20, %c1_i32_24, %c2_i32_22 : i32
      %22 = arith.remsi %arg14, %21 : i32
      %c0_i32_25 = arith.constant 0 : i32
      %23 = arith.cmpi ne, %22, %c0_i32_25 : i32
      %c0_i32_26 = arith.constant 0 : i32
      %24 = arith.cmpi slt, %22, %c0_i32_26 : i32
      %c0_i32_27 = arith.constant 0 : i32
      %25 = arith.cmpi slt, %21, %c0_i32_27 : i32
      %26 = arith.xori %24, %25 : i1
      %27 = arith.andi %26, %23 : i1
      %28 = arith.addi %22, %21 : i32
      %29 = arith.select %27, %28, %22 : i32
      %c1_i32_28 = arith.constant 1 : i32
      %30 = arith.addi %arg14, %c1_i32_28 : i32
      %c2_i32_29 = arith.constant 2 : i32
      %31 = arith.cmpi slt, %30, %c2_i32_29 : i32
      %32 = arith.extui %31 : i1 to i32
      %c0_i32_30 = arith.constant 0 : i32
      %33 = arith.cmpi ne, %32, %c0_i32_30 : i32
      scf.if %33 {
        %c1_i32_136 = arith.constant 1 : i32
        %358 = arith.addi %arg14, %c1_i32_136 : i32
        %c1_i32_137 = arith.constant 1 : i32
        %359 = arith.addi %29, %c1_i32_137 : i32
        %c2_i32_138 = arith.constant 2 : i32
        %c0_i32_139 = arith.constant 0 : i32
        %360 = arith.cmpi eq, %c2_i32_138, %c0_i32_139 : i32
        %c1_i32_140 = arith.constant 1 : i32
        %361 = arith.select %360, %c1_i32_140, %c2_i32_138 : i32
        %362 = arith.remsi %359, %361 : i32
        %c0_i32_141 = arith.constant 0 : i32
        %363 = arith.cmpi ne, %362, %c0_i32_141 : i32
        %c0_i32_142 = arith.constant 0 : i32
        %364 = arith.cmpi slt, %362, %c0_i32_142 : i32
        %c0_i32_143 = arith.constant 0 : i32
        %365 = arith.cmpi slt, %361, %c0_i32_143 : i32
        %366 = arith.xori %364, %365 : i1
        %367 = arith.andi %366, %363 : i1
        %368 = arith.addi %362, %361 : i32
        %369 = arith.select %367, %368, %362 : i32
        %c96_i32_144 = arith.constant 96 : i32
        %370 = arith.muli %358, %c96_i32_144 : i32
        %371 = tpu.assume_multiple %370, 96 : i32
        %372 = arith.index_cast %371 : i32 to index
        %c0_145 = arith.constant 0 : index
        %373 = vector.load %arg1[%372, %c0_145] : memref<192x128xbf16, #tpu.memory_space<vmem>>, vector<96x128xbf16>
        %c0_146 = arith.constant 0 : index
        %c0_147 = arith.constant 0 : index
        %374 = vector.load %arg2[%c0_146, %c0_147] : memref<128x384xbf16, #tpu.memory_space<vmem>>, vector<128x384xbf16>
        %cst_148 = arith.constant dense<0.000000e+00> : vector<96x384xf32>
        %375 = tpu.matmul %373, %374, %cst_148 {dimension_numbers = #tpu.dot_dimension_numbers<[1], [0], [0], [1], [0, 0, 1, 1], [], []>} : vector<96x128xbf16>, vector<128x384xbf16>, vector<96x384xf32> -> vector<96x384xf32>
        %376 = vector.broadcast %0 : vector<1x384xf32> to vector<96x384xf32>
        %377 = arith.addf %375, %376 : vector<96x384xf32>
        %c96_i32_149 = arith.constant 96 : i32
        %378 = arith.muli %369, %c96_i32_149 : i32
        %379 = tpu.assume_multiple %378, 96 : i32
        %380 = arith.index_cast %379 : i32 to index
        %c0_150 = arith.constant 0 : index
        %381 = vector.load %arg13[%380, %c0_150] : memref<192x384xf32, #tpu.memory_space<vmem>>, vector<96x384xf32>
        tpu.vector_store %arg13[%380, %c0_150], %377 {strides = array<i32>} : memref<192x384xf32, #tpu.memory_space<vmem>>, vector<96x384xf32>,
      } else {
      }
      %c0_i32_31 = arith.constant 0 : i32
      %c96_i32 = arith.constant 96 : i32
      %34 = arith.muli %29, %c96_i32 : i32
      %c24_i32 = arith.constant 24 : i32
      %35 = arith.muli %c0_i32_31, %c24_i32 : i32
      %36 = arith.addi %34, %35 : i32
      %37 = tpu.assume_multiple %36, 24 : i32
      %38 = arith.index_cast %37 : i32 to index
      %c0_32 = arith.constant 0 : index
      %39 = vector.load %arg13[%38, %c0_32] : memref<192x384xf32, #tpu.memory_space<vmem>>, vector<24x384xf32>
      %40 = arith.truncf %arg15 : vector<24x128xf32> to vector<24x128xbf16>
      %c0_33 = arith.constant 0 : index
      %c0_34 = arith.constant 0 : index
      %41 = vector.load %arg3[%c0_33, %c0_34] : memref<128x384xbf16, #tpu.memory_space<vmem>>, vector<128x384xbf16>
      %cst_35 = arith.constant dense<0.000000e+00> : vector<24x384xf32>
      %42 = tpu.matmul %40, %41, %cst_35 {dimension_numbers = #tpu.dot_dimension_numbers<[1], [0], [0], [1], [0, 0, 1, 1], [], []>} : vector<24x128xbf16>, vector<128x384xbf16>, vector<24x384xf32> -> vector<24x384xf32>
      %43 = vector.extract_strided_slice %39 {offsets = [0, 0], sizes = [24, 128], strides = [1, 1]} : vector<24x384xf32> to vector<24x128xf32>
      %44 = vector.extract_strided_slice %42 {offsets = [0, 0], sizes = [24, 128], strides = [1, 1]} : vector<24x384xf32> to vector<24x128xf32>
      %45 = arith.addf %43, %44 : vector<24x128xf32>
      %cst_36 = arith.constant 5.000000e-01 : f32
      %46 = vector.broadcast %cst_36 : f32 to vector<24x128xf32>
      %47 = arith.mulf %46, %45 : vector<24x128xf32>
      %48 = math.tanh %47 : vector<24x128xf32>
      %cst_37 = arith.constant 1.000000e+00 : f32
      %49 = vector.broadcast %cst_37 : f32 to vector<24x128xf32>
      %50 = arith.addf %48, %49 : vector<24x128xf32>
      %cst_38 = arith.constant 5.000000e-01 : f32
      %51 = vector.broadcast %cst_38 : f32 to vector<24x128xf32>
      %52 = arith.mulf %51, %50 : vector<24x128xf32>
      %53 = vector.extract_strided_slice %39 {offsets = [0, 128], sizes = [24, 128], strides = [1, 1]} : vector<24x384xf32> to vector<24x128xf32>
      %54 = vector.extract_strided_slice %42 {offsets = [0, 128], sizes = [24, 128], strides = [1, 1]} : vector<24x384xf32> to vector<24x128xf32>
      %55 = arith.addf %53, %54 : vector<24x128xf32>
      %cst_39 = arith.constant 5.000000e-01 : f32
      %56 = vector.broadcast %cst_39 : f32 to vector<24x128xf32>
      %57 = arith.mulf %56, %55 : vector<24x128xf32>
      %58 = math.tanh %57 : vector<24x128xf32>
      %cst_40 = arith.constant 1.000000e+00 : f32
      %59 = vector.broadcast %cst_40 : f32 to vector<24x128xf32>
      %60 = arith.addf %58, %59 : vector<24x128xf32>
      %cst_41 = arith.constant 5.000000e-01 : f32
      %61 = vector.broadcast %cst_41 : f32 to vector<24x128xf32>
      %62 = arith.mulf %61, %60 : vector<24x128xf32>
      %63 = vector.extract_strided_slice %39 {offsets = [0, 256], sizes = [24, 128], strides = [1, 1]} : vector<24x384xf32> to vector<24x128xf32>
      %64 = vector.extract_strided_slice %42 {offsets = [0, 256], sizes = [24, 128], strides = [1, 1]} : vector<24x384xf32> to vector<24x128xf32>
      %65 = vector.broadcast %1 : vector<1x128xf32> to vector<24x128xf32>
      %66 = arith.addf %64, %65 : vector<24x128xf32>
      %67 = arith.mulf %52, %66 : vector<24x128xf32>
      %68 = arith.addf %63, %67 : vector<24x128xf32>
      %69 = math.tanh %68 : vector<24x128xf32>
      %cst_42 = arith.constant 1.000000e+00 : f32
      %70 = vector.broadcast %cst_42 : f32 to vector<24x128xf32>
      %71 = arith.subf %70, %62 : vector<24x128xf32>
      %72 = arith.mulf %71, %69 : vector<24x128xf32>
      %73 = arith.mulf %62, %arg15 : vector<24x128xf32>
      %74 = arith.addf %72, %73 : vector<24x128xf32>
      %75 = arith.truncf %74 : vector<24x128xf32> to vector<24x128xbf16>
      %c0_43 = arith.constant 0 : index
      %c0_44 = arith.constant 0 : index
      %76 = vector.load %arg6[%c0_43, %c0_44] : memref<128x384xbf16, #tpu.memory_space<vmem>>, vector<128x384xbf16>
      %cst_45 = arith.constant dense<0.000000e+00> : vector<24x384xf32>
      %77 = tpu.matmul %75, %76, %cst_45 {dimension_numbers = #tpu.dot_dimension_numbers<[1], [0], [0], [1], [0, 0, 1, 1], [], []>} : vector<24x128xbf16>, vector<128x384xbf16>, vector<24x384xf32> -> vector<24x384xf32>
      %78 = vector.broadcast %2 : vector<1x384xf32> to vector<24x384xf32>
      %79 = arith.addf %77, %78 : vector<24x384xf32>
      %80 = arith.truncf %arg16 : vector<24x128xf32> to vector<24x128xbf16>
      %c0_46 = arith.constant 0 : index
      %c0_47 = arith.constant 0 : index
      %81 = vector.load %arg7[%c0_46, %c0_47] : memref<128x384xbf16, #tpu.memory_space<vmem>>, vector<128x384xbf16>
      %cst_48 = arith.constant dense<0.000000e+00> : vector<24x384xf32>
      %82 = tpu.matmul %80, %81, %cst_48 {dimension_numbers = #tpu.dot_dimension_numbers<[1], [0], [0], [1], [0, 0, 1, 1], [], []>} : vector<24x128xbf16>, vector<128x384xbf16>, vector<24x384xf32> -> vector<24x384xf32>
      %83 = vector.extract_strided_slice %79 {offsets = [0, 0], sizes = [24, 128], strides = [1, 1]} : vector<24x384xf32> to vector<24x128xf32>
      %84 = vector.extract_strided_slice %82 {offsets = [0, 0], sizes = [24, 128], strides = [1, 1]} : vector<24x384xf32> to vector<24x128xf32>
      %85 = arith.addf %83, %84 : vector<24x128xf32>
      %cst_49 = arith.constant 5.000000e-01 : f32
      %86 = vector.broadcast %cst_49 : f32 to vector<24x128xf32>
      %87 = arith.mulf %86, %85 : vector<24x128xf32>
      %88 = math.tanh %87 : vector<24x128xf32>
      %cst_50 = arith.constant 1.000000e+00 : f32
      %89 = vector.broadcast %cst_50 : f32 to vector<24x128xf32>
      %90 = arith.addf %88, %89 : vector<24x128xf32>
      %cst_51 = arith.constant 5.000000e-01 : f32
      %91 = vector.broadcast %cst_51 : f32 to vector<24x128xf32>
      %92 = arith.mulf %91, %90 : vector<24x128xf32>
      %93 = vector.extract_strided_slice %79 {offsets = [0, 128], sizes = [24, 128], strides = [1, 1]} : vector<24x384xf32> to vector<24x128xf32>
      %94 = vector.extract_strided_slice %82 {offsets = [0, 128], sizes = [24, 128], strides = [1, 1]} : vector<24x384xf32> to vector<24x128xf32>
      %95 = arith.addf %93, %94 : vector<24x128xf32>
      %cst_52 = arith.constant 5.000000e-01 : f32
      %96 = vector.broadcast %cst_52 : f32 to vector<24x128xf32>
      %97 = arith.mulf %96, %95 : vector<24x128xf32>
      %98 = math.tanh %97 : vector<24x128xf32>
      %cst_53 = arith.constant 1.000000e+00 : f32
      %99 = vector.broadcast %cst_53 : f32 to vector<24x128xf32>
      %100 = arith.addf %98, %99 : vector<24x128xf32>
      %cst_54 = arith.constant 5.000000e-01 : f32
      %101 = vector.broadcast %cst_54 : f32 to vector<24x128xf32>
      %102 = arith.mulf %101, %100 : vector<24x128xf32>
      %103 = vector.extract_strided_slice %79 {offsets = [0, 256], sizes = [24, 128], strides = [1, 1]} : vector<24x384xf32> to vector<24x128xf32>
      %104 = vector.extract_strided_slice %82 {offsets = [0, 256], sizes = [24, 128], strides = [1, 1]} : vector<24x384xf32> to vector<24x128xf32>
      %105 = vector.broadcast %3 : vector<1x128xf32> to vector<24x128xf32>
      %106 = arith.addf %104, %105 : vector<24x128xf32>
      %107 = arith.mulf %92, %106 : vector<24x128xf32>
      %108 = arith.addf %103, %107 : vector<24x128xf32>
      %109 = math.tanh %108 : vector<24x128xf32>
      %cst_55 = arith.constant 1.000000e+00 : f32
      %110 = vector.broadcast %cst_55 : f32 to vector<24x128xf32>
      %111 = arith.subf %110, %102 : vector<24x128xf32>
      %112 = arith.mulf %111, %109 : vector<24x128xf32>
      %113 = arith.mulf %102, %arg16 : vector<24x128xf32>
      %114 = arith.addf %112, %113 : vector<24x128xf32>
      %c1_i32_56 = arith.constant 1 : i32
      %c96_i32_57 = arith.constant 96 : i32
      %115 = arith.muli %29, %c96_i32_57 : i32
      %c24_i32_58 = arith.constant 24 : i32
      %116 = arith.muli %c1_i32_56, %c24_i32_58 : i32
      %117 = arith.addi %115, %116 : i32
      %118 = tpu.assume_multiple %117, 24 : i32
      %119 = arith.index_cast %118 : i32 to index
      %c0_59 = arith.constant 0 : index
      %120 = vector.load %arg13[%119, %c0_59] : memref<192x384xf32, #tpu.memory_space<vmem>>, vector<24x384xf32>
      %121 = arith.truncf %74 : vector<24x128xf32> to vector<24x128xbf16>
      %c0_60 = arith.constant 0 : index
      %c0_61 = arith.constant 0 : index
      %122 = vector.load %arg3[%c0_60, %c0_61] : memref<128x384xbf16, #tpu.memory_space<vmem>>, vector<128x384xbf16>
      %cst_62 = arith.constant dense<0.000000e+00> : vector<24x384xf32>
      %123 = tpu.matmul %121, %122, %cst_62 {dimension_numbers = #tpu.dot_dimension_numbers<[1], [0], [0], [1], [0, 0, 1, 1], [], []>} : vector<24x128xbf16>, vector<128x384xbf16>, vector<24x384xf32> -> vector<24x384xf32>
      %124 = vector.extract_strided_slice %120 {offsets = [0, 0], sizes = [24, 128], strides = [1, 1]} : vector<24x384xf32> to vector<24x128xf32>
      %125 = vector.extract_strided_slice %123 {offsets = [0, 0], sizes = [24, 128], strides = [1, 1]} : vector<24x384xf32> to vector<24x128xf32>
      %126 = arith.addf %124, %125 : vector<24x128xf32>
      %cst_63 = arith.constant 5.000000e-01 : f32
      %127 = vector.broadcast %cst_63 : f32 to vector<24x128xf32>
      %128 = arith.mulf %127, %126 : vector<24x128xf32>
      %129 = math.tanh %128 : vector<24x128xf32>
      %cst_64 = arith.constant 1.000000e+00 : f32
      %130 = vector.broadcast %cst_64 : f32 to vector<24x128xf32>
      %131 = arith.addf %129, %130 : vector<24x128xf32>
      %cst_65 = arith.constant 5.000000e-01 : f32
      %132 = vector.broadcast %cst_65 : f32 to vector<24x128xf32>
      %133 = arith.mulf %132, %131 : vector<24x128xf32>
      %134 = vector.extract_strided_slice %120 {offsets = [0, 128], sizes = [24, 128], strides = [1, 1]} : vector<24x384xf32> to vector<24x128xf32>
      %135 = vector.extract_strided_slice %123 {offsets = [0, 128], sizes = [24, 128], strides = [1, 1]} : vector<24x384xf32> to vector<24x128xf32>
      %136 = arith.addf %134, %135 : vector<24x128xf32>
      %cst_66 = arith.constant 5.000000e-01 : f32
      %137 = vector.broadcast %cst_66 : f32 to vector<24x128xf32>
      %138 = arith.mulf %137, %136 : vector<24x128xf32>
      %139 = math.tanh %138 : vector<24x128xf32>
      %cst_67 = arith.constant 1.000000e+00 : f32
      %140 = vector.broadcast %cst_67 : f32 to vector<24x128xf32>
      %141 = arith.addf %139, %140 : vector<24x128xf32>
      %cst_68 = arith.constant 5.000000e-01 : f32
      %142 = vector.broadcast %cst_68 : f32 to vector<24x128xf32>
      %143 = arith.mulf %142, %141 : vector<24x128xf32>
      %144 = vector.extract_strided_slice %120 {offsets = [0, 256], sizes = [24, 128], strides = [1, 1]} : vector<24x384xf32> to vector<24x128xf32>
      %145 = vector.extract_strided_slice %123 {offsets = [0, 256], sizes = [24, 128], strides = [1, 1]} : vector<24x384xf32> to vector<24x128xf32>
      %146 = vector.broadcast %1 : vector<1x128xf32> to vector<24x128xf32>
      %147 = arith.addf %145, %146 : vector<24x128xf32>
      %148 = arith.mulf %133, %147 : vector<24x128xf32>
      %149 = arith.addf %144, %148 : vector<24x128xf32>
      %150 = math.tanh %149 : vector<24x128xf32>
      %cst_69 = arith.constant 1.000000e+00 : f32
      %151 = vector.broadcast %cst_69 : f32 to vector<24x128xf32>
      %152 = arith.subf %151, %143 : vector<24x128xf32>
      %153 = arith.mulf %152, %150 : vector<24x128xf32>
      %154 = arith.mulf %143, %74 : vector<24x128xf32>
      %155 = arith.addf %153, %154 : vector<24x128xf32>
      %156 = arith.truncf %155 : vector<24x128xf32> to vector<24x128xbf16>
      %c0_70 = arith.constant 0 : index
      %c0_71 = arith.constant 0 : index
      %157 = vector.load %arg6[%c0_70, %c0_71] : memref<128x384xbf16, #tpu.memory_space<vmem>>, vector<128x384xbf16>
      %cst_72 = arith.constant dense<0.000000e+00> : vector<24x384xf32>
      %158 = tpu.matmul %156, %157, %cst_72 {dimension_numbers = #tpu.dot_dimension_numbers<[1], [0], [0], [1], [0, 0, 1, 1], [], []>} : vector<24x128xbf16>, vector<128x384xbf16>, vector<24x384xf32> -> vector<24x384xf32>
      %159 = vector.broadcast %2 : vector<1x384xf32> to vector<24x384xf32>
      %160 = arith.addf %158, %159 : vector<24x384xf32>
      %161 = arith.truncf %114 : vector<24x128xf32> to vector<24x128xbf16>
      %c0_73 = arith.constant 0 : index
      %c0_74 = arith.constant 0 : index
      %162 = vector.load %arg7[%c0_73, %c0_74] : memref<128x384xbf16, #tpu.memory_space<vmem>>, vector<128x384xbf16>
      %cst_75 = arith.constant dense<0.000000e+00> : vector<24x384xf32>
      %163 = tpu.matmul %161, %162, %cst_75 {dimension_numbers = #tpu.dot_dimension_numbers<[1], [0], [0], [1], [0, 0, 1, 1], [], []>} : vector<24x128xbf16>, vector<128x384xbf16>, vector<24x384xf32> -> vector<24x384xf32>
      %164 = vector.extract_strided_slice %160 {offsets = [0, 0], sizes = [24, 128], strides = [1, 1]} : vector<24x384xf32> to vector<24x128xf32>
      %165 = vector.extract_strided_slice %163 {offsets = [0, 0], sizes = [24, 128], strides = [1, 1]} : vector<24x384xf32> to vector<24x128xf32>
      %166 = arith.addf %164, %165 : vector<24x128xf32>
      %cst_76 = arith.constant 5.000000e-01 : f32
      %167 = vector.broadcast %cst_76 : f32 to vector<24x128xf32>
      %168 = arith.mulf %167, %166 : vector<24x128xf32>
      %169 = math.tanh %168 : vector<24x128xf32>
      %cst_77 = arith.constant 1.000000e+00 : f32
      %170 = vector.broadcast %cst_77 : f32 to vector<24x128xf32>
      %171 = arith.addf %169, %170 : vector<24x128xf32>
      %cst_78 = arith.constant 5.000000e-01 : f32
      %172 = vector.broadcast %cst_78 : f32 to vector<24x128xf32>
      %173 = arith.mulf %172, %171 : vector<24x128xf32>
      %174 = vector.extract_strided_slice %160 {offsets = [0, 128], sizes = [24, 128], strides = [1, 1]} : vector<24x384xf32> to vector<24x128xf32>
      %175 = vector.extract_strided_slice %163 {offsets = [0, 128], sizes = [24, 128], strides = [1, 1]} : vector<24x384xf32> to vector<24x128xf32>
      %176 = arith.addf %174, %175 : vector<24x128xf32>
      %cst_79 = arith.constant 5.000000e-01 : f32
      %177 = vector.broadcast %cst_79 : f32 to vector<24x128xf32>
      %178 = arith.mulf %177, %176 : vector<24x128xf32>
      %179 = math.tanh %178 : vector<24x128xf32>
      %cst_80 = arith.constant 1.000000e+00 : f32
      %180 = vector.broadcast %cst_80 : f32 to vector<24x128xf32>
      %181 = arith.addf %179, %180 : vector<24x128xf32>
      %cst_81 = arith.constant 5.000000e-01 : f32
      %182 = vector.broadcast %cst_81 : f32 to vector<24x128xf32>
      %183 = arith.mulf %182, %181 : vector<24x128xf32>
      %184 = vector.extract_strided_slice %160 {offsets = [0, 256], sizes = [24, 128], strides = [1, 1]} : vector<24x384xf32> to vector<24x128xf32>
      %185 = vector.extract_strided_slice %163 {offsets = [0, 256], sizes = [24, 128], strides = [1, 1]} : vector<24x384xf32> to vector<24x128xf32>
      %186 = vector.broadcast %3 : vector<1x128xf32> to vector<24x128xf32>
      %187 = arith.addf %185, %186 : vector<24x128xf32>
      %188 = arith.mulf %173, %187 : vector<24x128xf32>
      %189 = arith.addf %184, %188 : vector<24x128xf32>
      %190 = math.tanh %189 : vector<24x128xf32>
      %cst_82 = arith.constant 1.000000e+00 : f32
      %191 = vector.broadcast %cst_82 : f32 to vector<24x128xf32>
      %192 = arith.subf %191, %183 : vector<24x128xf32>
      %193 = arith.mulf %192, %190 : vector<24x128xf32>
      %194 = arith.mulf %183, %114 : vector<24x128xf32>
      %195 = arith.addf %193, %194 : vector<24x128xf32>
      %c2_i32_83 = arith.constant 2 : i32
      %c96_i32_84 = arith.constant 96 : i32
      %196 = arith.muli %29, %c96_i32_84 : i32
      %c24_i32_85 = arith.constant 24 : i32
      %197 = arith.muli %c2_i32_83, %c24_i32_85 : i32
      %198 = arith.addi %196, %197 : i32
      %199 = tpu.assume_multiple %198, 24 : i32
      %200 = arith.index_cast %199 : i32 to index
      %c0_86 = arith.constant 0 : index
      %201 = vector.load %arg13[%200, %c0_86] : memref<192x384xf32, #tpu.memory_space<vmem>>, vector<24x384xf32>
      %202 = arith.truncf %155 : vector<24x128xf32> to vector<24x128xbf16>
      %c0_87 = arith.constant 0 : index
      %c0_88 = arith.constant 0 : index
      %203 = vector.load %arg3[%c0_87, %c0_88] : memref<128x384xbf16, #tpu.memory_space<vmem>>, vector<128x384xbf16>
      %cst_89 = arith.constant dense<0.000000e+00> : vector<24x384xf32>
      %204 = tpu.matmul %202, %203, %cst_89 {dimension_numbers = #tpu.dot_dimension_numbers<[1], [0], [0], [1], [0, 0, 1, 1], [], []>} : vector<24x128xbf16>, vector<128x384xbf16>, vector<24x384xf32> -> vector<24x384xf32>
      %205 = vector.extract_strided_slice %201 {offsets = [0, 0], sizes = [24, 128], strides = [1, 1]} : vector<24x384xf32> to vector<24x128xf32>
      %206 = vector.extract_strided_slice %204 {offsets = [0, 0], sizes = [24, 128], strides = [1, 1]} : vector<24x384xf32> to vector<24x128xf32>
      %207 = arith.addf %205, %206 : vector<24x128xf32>
      %cst_90 = arith.constant 5.000000e-01 : f32
      %208 = vector.broadcast %cst_90 : f32 to vector<24x128xf32>
      %209 = arith.mulf %208, %207 : vector<24x128xf32>
      %210 = math.tanh %209 : vector<24x128xf32>
      %cst_91 = arith.constant 1.000000e+00 : f32
      %211 = vector.broadcast %cst_91 : f32 to vector<24x128xf32>
      %212 = arith.addf %210, %211 : vector<24x128xf32>
      %cst_92 = arith.constant 5.000000e-01 : f32
      %213 = vector.broadcast %cst_92 : f32 to vector<24x128xf32>
      %214 = arith.mulf %213, %212 : vector<24x128xf32>
      %215 = vector.extract_strided_slice %201 {offsets = [0, 128], sizes = [24, 128], strides = [1, 1]} : vector<24x384xf32> to vector<24x128xf32>
      %216 = vector.extract_strided_slice %204 {offsets = [0, 128], sizes = [24, 128], strides = [1, 1]} : vector<24x384xf32> to vector<24x128xf32>
      %217 = arith.addf %215, %216 : vector<24x128xf32>
      %cst_93 = arith.constant 5.000000e-01 : f32
      %218 = vector.broadcast %cst_93 : f32 to vector<24x128xf32>
      %219 = arith.mulf %218, %217 : vector<24x128xf32>
      %220 = math.tanh %219 : vector<24x128xf32>
      %cst_94 = arith.constant 1.000000e+00 : f32
      %221 = vector.broadcast %cst_94 : f32 to vector<24x128xf32>
      %222 = arith.addf %220, %221 : vector<24x128xf32>
      %cst_95 = arith.constant 5.000000e-01 : f32
      %223 = vector.broadcast %cst_95 : f32 to vector<24x128xf32>
      %224 = arith.mulf %223, %222 : vector<24x128xf32>
      %225 = vector.extract_strided_slice %201 {offsets = [0, 256], sizes = [24, 128], strides = [1, 1]} : vector<24x384xf32> to vector<24x128xf32>
      %226 = vector.extract_strided_slice %204 {offsets = [0, 256], sizes = [24, 128], strides = [1, 1]} : vector<24x384xf32> to vector<24x128xf32>
      %227 = vector.broadcast %1 : vector<1x128xf32> to vector<24x128xf32>
      %228 = arith.addf %226, %227 : vector<24x128xf32>
      %229 = arith.mulf %214, %228 : vector<24x128xf32>
      %230 = arith.addf %225, %229 : vector<24x128xf32>
      %231 = math.tanh %230 : vector<24x128xf32>
      %cst_96 = arith.constant 1.000000e+00 : f32
      %232 = vector.broadcast %cst_96 : f32 to vector<24x128xf32>
      %233 = arith.subf %232, %224 : vector<24x128xf32>
      %234 = arith.mulf %233, %231 : vector<24x128xf32>
      %235 = arith.mulf %224, %155 : vector<24x128xf32>
      %236 = arith.addf %234, %235 : vector<24x128xf32>
      %237 = arith.truncf %236 : vector<24x128xf32> to vector<24x128xbf16>
      %c0_97 = arith.constant 0 : index
      %c0_98 = arith.constant 0 : index
      %238 = vector.load %arg6[%c0_97, %c0_98] : memref<128x384xbf16, #tpu.memory_space<vmem>>, vector<128x384xbf16>
      %cst_99 = arith.constant dense<0.000000e+00> : vector<24x384xf32>
      %239 = tpu.matmul %237, %238, %cst_99 {dimension_numbers = #tpu.dot_dimension_numbers<[1], [0], [0], [1], [0, 0, 1, 1], [], []>} : vector<24x128xbf16>, vector<128x384xbf16>, vector<24x384xf32> -> vector<24x384xf32>
      %240 = vector.broadcast %2 : vector<1x384xf32> to vector<24x384xf32>
      %241 = arith.addf %239, %240 : vector<24x384xf32>
      %242 = arith.truncf %195 : vector<24x128xf32> to vector<24x128xbf16>
      %c0_100 = arith.constant 0 : index
      %c0_101 = arith.constant 0 : index
      %243 = vector.load %arg7[%c0_100, %c0_101] : memref<128x384xbf16, #tpu.memory_space<vmem>>, vector<128x384xbf16>
      %cst_102 = arith.constant dense<0.000000e+00> : vector<24x384xf32>
      %244 = tpu.matmul %242, %243, %cst_102 {dimension_numbers = #tpu.dot_dimension_numbers<[1], [0], [0], [1], [0, 0, 1, 1], [], []>} : vector<24x128xbf16>, vector<128x384xbf16>, vector<24x384xf32> -> vector<24x384xf32>
      %245 = vector.extract_strided_slice %241 {offsets = [0, 0], sizes = [24, 128], strides = [1, 1]} : vector<24x384xf32> to vector<24x128xf32>
      %246 = vector.extract_strided_slice %244 {offsets = [0, 0], sizes = [24, 128], strides = [1, 1]} : vector<24x384xf32> to vector<24x128xf32>
      %247 = arith.addf %245, %246 : vector<24x128xf32>
      %cst_103 = arith.constant 5.000000e-01 : f32
      %248 = vector.broadcast %cst_103 : f32 to vector<24x128xf32>
      %249 = arith.mulf %248, %247 : vector<24x128xf32>
      %250 = math.tanh %249 : vector<24x128xf32>
      %cst_104 = arith.constant 1.000000e+00 : f32
      %251 = vector.broadcast %cst_104 : f32 to vector<24x128xf32>
      %252 = arith.addf %250, %251 : vector<24x128xf32>
      %cst_105 = arith.constant 5.000000e-01 : f32
      %253 = vector.broadcast %cst_105 : f32 to vector<24x128xf32>
      %254 = arith.mulf %253, %252 : vector<24x128xf32>
      %255 = vector.extract_strided_slice %241 {offsets = [0, 128], sizes = [24, 128], strides = [1, 1]} : vector<24x384xf32> to vector<24x128xf32>
      %256 = vector.extract_strided_slice %244 {offsets = [0, 128], sizes = [24, 128], strides = [1, 1]} : vector<24x384xf32> to vector<24x128xf32>
      %257 = arith.addf %255, %256 : vector<24x128xf32>
      %cst_106 = arith.constant 5.000000e-01 : f32
      %258 = vector.broadcast %cst_106 : f32 to vector<24x128xf32>
      %259 = arith.mulf %258, %257 : vector<24x128xf32>
      %260 = math.tanh %259 : vector<24x128xf32>
      %cst_107 = arith.constant 1.000000e+00 : f32
      %261 = vector.broadcast %cst_107 : f32 to vector<24x128xf32>
      %262 = arith.addf %260, %261 : vector<24x128xf32>
      %cst_108 = arith.constant 5.000000e-01 : f32
      %263 = vector.broadcast %cst_108 : f32 to vector<24x128xf32>
      %264 = arith.mulf %263, %262 : vector<24x128xf32>
      %265 = vector.extract_strided_slice %241 {offsets = [0, 256], sizes = [24, 128], strides = [1, 1]} : vector<24x384xf32> to vector<24x128xf32>
      %266 = vector.extract_strided_slice %244 {offsets = [0, 256], sizes = [24, 128], strides = [1, 1]} : vector<24x384xf32> to vector<24x128xf32>
      %267 = vector.broadcast %3 : vector<1x128xf32> to vector<24x128xf32>
      %268 = arith.addf %266, %267 : vector<24x128xf32>
      %269 = arith.mulf %254, %268 : vector<24x128xf32>
      %270 = arith.addf %265, %269 : vector<24x128xf32>
      %271 = math.tanh %270 : vector<24x128xf32>
      %cst_109 = arith.constant 1.000000e+00 : f32
      %272 = vector.broadcast %cst_109 : f32 to vector<24x128xf32>
      %273 = arith.subf %272, %264 : vector<24x128xf32>
      %274 = arith.mulf %273, %271 : vector<24x128xf32>
      %275 = arith.mulf %264, %195 : vector<24x128xf32>
      %276 = arith.addf %274, %275 : vector<24x128xf32>
      %c3_i32 = arith.constant 3 : i32
      %c96_i32_110 = arith.constant 96 : i32
      %277 = arith.muli %29, %c96_i32_110 : i32
      %c24_i32_111 = arith.constant 24 : i32
      %278 = arith.muli %c3_i32, %c24_i32_111 : i32
      %279 = arith.addi %277, %278 : i32
      %280 = tpu.assume_multiple %279, 24 : i32
      %281 = arith.index_cast %280 : i32 to index
      %c0_112 = arith.constant 0 : index
      %282 = vector.load %arg13[%281, %c0_112] : memref<192x384xf32, #tpu.memory_space<vmem>>, vector<24x384xf32>
      %283 = arith.truncf %236 : vector<24x128xf32> to vector<24x128xbf16>
      %c0_113 = arith.constant 0 : index
      %c0_114 = arith.constant 0 : index
      %284 = vector.load %arg3[%c0_113, %c0_114] : memref<128x384xbf16, #tpu.memory_space<vmem>>, vector<128x384xbf16>
      %cst_115 = arith.constant dense<0.000000e+00> : vector<24x384xf32>
      %285 = tpu.matmul %283, %284, %cst_115 {dimension_numbers = #tpu.dot_dimension_numbers<[1], [0], [0], [1], [0, 0, 1, 1], [], []>} : vector<24x128xbf16>, vector<128x384xbf16>, vector<24x384xf32> -> vector<24x384xf32>
      %286 = vector.extract_strided_slice %282 {offsets = [0, 0], sizes = [24, 128], strides = [1, 1]} : vector<24x384xf32> to vector<24x128xf32>
      %287 = vector.extract_strided_slice %285 {offsets = [0, 0], sizes = [24, 128], strides = [1, 1]} : vector<24x384xf32> to vector<24x128xf32>
      %288 = arith.addf %286, %287 : vector<24x128xf32>
      %cst_116 = arith.constant 5.000000e-01 : f32
      %289 = vector.broadcast %cst_116 : f32 to vector<24x128xf32>
      %290 = arith.mulf %289, %288 : vector<24x128xf32>
      %291 = math.tanh %290 : vector<24x128xf32>
      %cst_117 = arith.constant 1.000000e+00 : f32
      %292 = vector.broadcast %cst_117 : f32 to vector<24x128xf32>
      %293 = arith.addf %291, %292 : vector<24x128xf32>
      %cst_118 = arith.constant 5.000000e-01 : f32
      %294 = vector.broadcast %cst_118 : f32 to vector<24x128xf32>
      %295 = arith.mulf %294, %293 : vector<24x128xf32>
      %296 = vector.extract_strided_slice %282 {offsets = [0, 128], sizes = [24, 128], strides = [1, 1]} : vector<24x384xf32> to vector<24x128xf32>
      %297 = vector.extract_strided_slice %285 {offsets = [0, 128], sizes = [24, 128], strides = [1, 1]} : vector<24x384xf32> to vector<24x128xf32>
      %298 = arith.addf %296, %297 : vector<24x128xf32>
      %cst_119 = arith.constant 5.000000e-01 : f32
      %299 = vector.broadcast %cst_119 : f32 to vector<24x128xf32>
      %300 = arith.mulf %299, %298 : vector<24x128xf32>
      %301 = math.tanh %300 : vector<24x128xf32>
      %cst_120 = arith.constant 1.000000e+00 : f32
      %302 = vector.broadcast %cst_120 : f32 to vector<24x128xf32>
      %303 = arith.addf %301, %302 : vector<24x128xf32>
      %cst_121 = arith.constant 5.000000e-01 : f32
      %304 = vector.broadcast %cst_121 : f32 to vector<24x128xf32>
      %305 = arith.mulf %304, %303 : vector<24x128xf32>
      %306 = vector.extract_strided_slice %282 {offsets = [0, 256], sizes = [24, 128], strides = [1, 1]} : vector<24x384xf32> to vector<24x128xf32>
      %307 = vector.extract_strided_slice %285 {offsets = [0, 256], sizes = [24, 128], strides = [1, 1]} : vector<24x384xf32> to vector<24x128xf32>
      %308 = vector.broadcast %1 : vector<1x128xf32> to vector<24x128xf32>
      %309 = arith.addf %307, %308 : vector<24x128xf32>
      %310 = arith.mulf %295, %309 : vector<24x128xf32>
      %311 = arith.addf %306, %310 : vector<24x128xf32>
      %312 = math.tanh %311 : vector<24x128xf32>
      %cst_122 = arith.constant 1.000000e+00 : f32
      %313 = vector.broadcast %cst_122 : f32 to vector<24x128xf32>
      %314 = arith.subf %313, %305 : vector<24x128xf32>
      %315 = arith.mulf %314, %312 : vector<24x128xf32>
      %316 = arith.mulf %305, %236 : vector<24x128xf32>
      %317 = arith.addf %315, %316 : vector<24x128xf32>
      %318 = arith.truncf %317 : vector<24x128xf32> to vector<24x128xbf16>
      %c0_123 = arith.constant 0 : index
      %c0_124 = arith.constant 0 : index
      %319 = vector.load %arg6[%c0_123, %c0_124] : memref<128x384xbf16, #tpu.memory_space<vmem>>, vector<128x384xbf16>
      %cst_125 = arith.constant dense<0.000000e+00> : vector<24x384xf32>
      %320 = tpu.matmul %318, %319, %cst_125 {dimension_numbers = #tpu.dot_dimension_numbers<[1], [0], [0], [1], [0, 0, 1, 1], [], []>} : vector<24x128xbf16>, vector<128x384xbf16>, vector<24x384xf32> -> vector<24x384xf32>
      %321 = vector.broadcast %2 : vector<1x384xf32> to vector<24x384xf32>
      %322 = arith.addf %320, %321 : vector<24x384xf32>
      %323 = arith.truncf %276 : vector<24x128xf32> to vector<24x128xbf16>
      %c0_126 = arith.constant 0 : index
      %c0_127 = arith.constant 0 : index
      %324 = vector.load %arg7[%c0_126, %c0_127] : memref<128x384xbf16, #tpu.memory_space<vmem>>, vector<128x384xbf16>
      %cst_128 = arith.constant dense<0.000000e+00> : vector<24x384xf32>
      %325 = tpu.matmul %323, %324, %cst_128 {dimension_numbers = #tpu.dot_dimension_numbers<[1], [0], [0], [1], [0, 0, 1, 1], [], []>} : vector<24x128xbf16>, vector<128x384xbf16>, vector<24x384xf32> -> vector<24x384xf32>
      %326 = vector.extract_strided_slice %322 {offsets = [0, 0], sizes = [24, 128], strides = [1, 1]} : vector<24x384xf32> to vector<24x128xf32>
      %327 = vector.extract_strided_slice %325 {offsets = [0, 0], sizes = [24, 128], strides = [1, 1]} : vector<24x384xf32> to vector<24x128xf32>
      %328 = arith.addf %326, %327 : vector<24x128xf32>
      %cst_129 = arith.constant 5.000000e-01 : f32
      %329 = vector.broadcast %cst_129 : f32 to vector<24x128xf32>
      %330 = arith.mulf %329, %328 : vector<24x128xf32>
      %331 = math.tanh %330 : vector<24x128xf32>
      %cst_130 = arith.constant 1.000000e+00 : f32
      %332 = vector.broadcast %cst_130 : f32 to vector<24x128xf32>
      %333 = arith.addf %331, %332 : vector<24x128xf32>
      %cst_131 = arith.constant 5.000000e-01 : f32
      %334 = vector.broadcast %cst_131 : f32 to vector<24x128xf32>
      %335 = arith.mulf %334, %333 : vector<24x128xf32>
      %336 = vector.extract_strided_slice %322 {offsets = [0, 128], sizes = [24, 128], strides = [1, 1]} : vector<24x384xf32> to vector<24x128xf32>
      %337 = vector.extract_strided_slice %325 {offsets = [0, 128], sizes = [24, 128], strides = [1, 1]} : vector<24x384xf32> to vector<24x128xf32>
      %338 = arith.addf %336, %337 : vector<24x128xf32>
      %cst_132 = arith.constant 5.000000e-01 : f32
      %339 = vector.broadcast %cst_132 : f32 to vector<24x128xf32>
      %340 = arith.mulf %339, %338 : vector<24x128xf32>
      %341 = math.tanh %340 : vector<24x128xf32>
      %cst_133 = arith.constant 1.000000e+00 : f32
      %342 = vector.broadcast %cst_133 : f32 to vector<24x128xf32>
      %343 = arith.addf %341, %342 : vector<24x128xf32>
      %cst_134 = arith.constant 5.000000e-01 : f32
      %344 = vector.broadcast %cst_134 : f32 to vector<24x128xf32>
      %345 = arith.mulf %344, %343 : vector<24x128xf32>
      %346 = vector.extract_strided_slice %322 {offsets = [0, 256], sizes = [24, 128], strides = [1, 1]} : vector<24x384xf32> to vector<24x128xf32>
      %347 = vector.extract_strided_slice %325 {offsets = [0, 256], sizes = [24, 128], strides = [1, 1]} : vector<24x384xf32> to vector<24x128xf32>
      %348 = vector.broadcast %3 : vector<1x128xf32> to vector<24x128xf32>
      %349 = arith.addf %347, %348 : vector<24x128xf32>
      %350 = arith.mulf %335, %349 : vector<24x128xf32>
      %351 = arith.addf %346, %350 : vector<24x128xf32>
      %352 = math.tanh %351 : vector<24x128xf32>
      %cst_135 = arith.constant 1.000000e+00 : f32
      %353 = vector.broadcast %cst_135 : f32 to vector<24x128xf32>
      %354 = arith.subf %353, %345 : vector<24x128xf32>
      %355 = arith.mulf %354, %352 : vector<24x128xf32>
      %356 = arith.mulf %345, %276 : vector<24x128xf32>
      %357 = arith.addf %355, %356 : vector<24x128xf32>
      %c4_i32 = arith.constant 4 : i32
      scf.yield %317, %357 : vector<24x128xf32>, vector<24x128xf32>
    }
    %c2_i32_14 = arith.constant 2 : i32
    %13 = arith.truncf %12#1 : vector<24x128xf32> to vector<24x128xbf16>
    %c0_15 = arith.constant 0 : index
    %c0_16 = arith.constant 0 : index
    %14 = vector.load %arg10[%c0_15, %c0_16] : memref<128x128xbf16, #tpu.memory_space<vmem>>, vector<128x128xbf16>
    %cst_17 = arith.constant dense<0.000000e+00> : vector<24x128xf32>
    %15 = tpu.matmul %13, %14, %cst_17 {dimension_numbers = #tpu.dot_dimension_numbers<[1], [0], [0], [1], [0, 0, 1, 1], [], []>} : vector<24x128xbf16>, vector<128x128xbf16>, vector<24x128xf32> -> vector<24x128xf32>
    %c0_18 = arith.constant 0 : index
    %c0_19 = arith.constant 0 : index
    %16 = vector.load %arg11[%c0_18, %c0_19] : memref<1x128xf32, #tpu.memory_space<vmem>>, vector<1x128xf32>
    %17 = vector.broadcast %16 : vector<1x128xf32> to vector<24x128xf32>
    %18 = arith.addf %15, %17 : vector<24x128xf32>
    %c0_20 = arith.constant 0 : index
    %c0_21 = arith.constant 0 : index
    %19 = vector.load %arg12[%c0_20, %c0_21] : memref<24x128xf32, #tpu.memory_space<vmem>>, vector<24x128xf32>
    tpu.vector_store %arg12[%c0_20, %c0_21], %18 {strides = array<i32>} : memref<24x128xf32, #tpu.memory_space<vmem>>, vector<24x128xf32>,
    return
  }
  func.func @transform_0(%arg0: i32) -> (i32, i32) {
    %c0_i32 = arith.constant 0 : i32
    %c0_i32_0 = arith.constant 0 : i32
    return %arg0, %c0_i32 : i32, i32
  }
  func.func @transform_1(%arg0: i32) -> (i32, i32) {
    %c0_i32 = arith.constant 0 : i32
    %c0_i32_0 = arith.constant 0 : i32
    %c0_i32_1 = arith.constant 0 : i32
    return %c0_i32, %c0_i32_0 : i32, i32
  }
  func.func @transform_2(%arg0: i32) -> (i32, i32) {
    %c0_i32 = arith.constant 0 : i32
    %c0_i32_0 = arith.constant 0 : i32
    %c0_i32_1 = arith.constant 0 : i32
    return %c0_i32, %c0_i32_0 : i32, i32
  }
  func.func @transform_3(%arg0: i32) -> (i32, i32) {
    %c0_i32 = arith.constant 0 : i32
    %c0_i32_0 = arith.constant 0 : i32
    %c0_i32_1 = arith.constant 0 : i32
    return %c0_i32, %c0_i32_0 : i32, i32
  }
  func.func @transform_4(%arg0: i32) -> (i32, i32) {
    %c0_i32 = arith.constant 0 : i32
    %c0_i32_0 = arith.constant 0 : i32
    %c0_i32_1 = arith.constant 0 : i32
    return %c0_i32, %c0_i32_0 : i32, i32
  }
  func.func @transform_5(%arg0: i32) -> (i32, i32) {
    %c0_i32 = arith.constant 0 : i32
    %c0_i32_0 = arith.constant 0 : i32
    %c0_i32_1 = arith.constant 0 : i32
    return %c0_i32, %c0_i32_0 : i32, i32
  }
  func.func @transform_6(%arg0: i32) -> (i32, i32) {
    %c0_i32 = arith.constant 0 : i32
    %c0_i32_0 = arith.constant 0 : i32
    %c0_i32_1 = arith.constant 0 : i32
    return %c0_i32, %c0_i32_0 : i32, i32
  }
  func.func @transform_7(%arg0: i32) -> (i32, i32) {
    %c0_i32 = arith.constant 0 : i32
    %c0_i32_0 = arith.constant 0 : i32
    %c0_i32_1 = arith.constant 0 : i32
    return %c0_i32, %c0_i32_0 : i32, i32
  }
  func.func @transform_8(%arg0: i32) -> (i32, i32) {
    %c0_i32 = arith.constant 0 : i32
    %c0_i32_0 = arith.constant 0 : i32
    %c0_i32_1 = arith.constant 0 : i32
    return %c0_i32, %c0_i32_0 : i32, i32
  }
  func.func @transform_9(%arg0: i32) -> (i32, i32) {
    %c0_i32 = arith.constant 0 : i32
    %c0_i32_0 = arith.constant 0 : i32
    %c0_i32_1 = arith.constant 0 : i32
    return %c0_i32, %c0_i32_0 : i32, i32
  }
  func.func @transform_10(%arg0: i32) -> (i32, i32) {
    %c0_i32 = arith.constant 0 : i32
    %c0_i32_0 = arith.constant 0 : i32
    %c0_i32_1 = arith.constant 0 : i32
    return %c0_i32, %c0_i32_0 : i32, i32
  }
  func.func @transform_11(%arg0: i32) -> (i32, i32) {
    %c0_i32 = arith.constant 0 : i32
    %c0_i32_0 = arith.constant 0 : i32
    return %arg0, %c0_i32 : i32, i32
  }
}

</mosaic_0001>

<llo_original>
// kernel: tpu_custom_call.1
$region0: #{tpu_custom_call.1}
  #allocation0 [shape = 'u32[]', space=smem, size = 0x4, offset = 0x4, fixed_abs, tag = 'smem constant byte address 0x4 - core index']
  #allocation1 [shape = 'u32[144,128]{1,0:T(1,128)}', space=vmem, size = 0x12000, scoped, tag = 'internal scratch']
  #allocation2 [shape = 'f32[192,384]{1,0:T(8,128)}', space=vmem, size = 0x48000, scoped, tag = 'scratch operand']
  %s0 = inlined_call_operand.hbm [shape: bf16[384,128], index: 0, kind: input, shape index: {}]
  %s1 = inlined_call_operand.hbm [shape: bf16[128,384], index: 1, kind: input, shape index: {}]
  %s2 = inlined_call_operand.hbm [shape: bf16[128,384], index: 2, kind: input, shape index: {}]
  %s3 = inlined_call_operand.vmem [shape: f32[1,384], index: 3, kind: input, shape index: {}]
  %s4 = inlined_call_operand.vmem [shape: f32[1,128], index: 4, kind: input, shape index: {}]
  %s5 = inlined_call_operand.hbm [shape: bf16[128,384], index: 5, kind: input, shape index: {}]
  %s6 = inlined_call_operand.hbm [shape: bf16[128,384], index: 6, kind: input, shape index: {}]
  %s7 = inlined_call_operand.vmem [shape: f32[1,384], index: 7, kind: input, shape index: {}]
  %s8 = inlined_call_operand.vmem [shape: f32[1,128], index: 8, kind: input, shape index: {}]
  %s9 = inlined_call_operand.hbm [shape: bf16[128,128], index: 9, kind: input, shape index: {}]
  %s10 = inlined_call_operand.vmem [shape: f32[1,128], index: 10, kind: input, shape index: {}]
  %s11 = inlined_call_operand.hbm [shape: f32[48,128], index: 11, kind: output, shape index: {}]
  %s12 = sld [smem:[#allocation0]]
  $region112: #{tpu_custom_call.1} parent=0
    _
  %s14 = ssub.s32 1, %s12
  %s15 = scalar_select 0, %s14, %s12
  $region1: #{tpu_custom_call.1} parent=0
    #allocation3 [shape = 'u8[98304]{0}', space=vmem, size = 0x18000, scoped, tag = 'input window, operand 0']
    #allocation4 [shape = 's32[2]{0}', space=sflag, size = 0x8, scoped, tag = 'scoped memory for tpu_custom_call.1']
    #allocation5 [shape = 's32[2]{0}', space=sflag, size = 0x8, scoped, tag = 'scoped memory for tpu_custom_call.1']
    #allocation6 [shape = 'u8[98304]{0}', space=vmem, size = 0x18000, scoped, tag = 'input window, operand 1, single buffered']
    #allocation7 [shape = 's32[1]{0}', space=sflag, size = 0x4, scoped, tag = 'scoped memory for tpu_custom_call.1']
    #allocation8 [shape = 'u8[98304]{0}', space=vmem, size = 0x18000, scoped, tag = 'input window, operand 2, single buffered']
    #allocation9 [shape = 'u8[98304]{0}', space=vmem, size = 0x18000, scoped, tag = 'input window, operand 5, single buffered']
    #allocation10 [shape = 's32[1]{0}', space=sflag, size = 0x4, scoped, tag = 'scoped memory for tpu_custom_call.1']
    #allocation11 [shape = 'u8[98304]{0}', space=vmem, size = 0x18000, scoped, tag = 'input window, operand 6, single buffered']
    #allocation12 [shape = 'u8[32768]{0}', space=vmem, size = 0x8000, scoped, tag = 'input window, operand 9, single buffered']
    #allocation13 [shape = 's32[1]{0}', space=sflag, size = 0x4, scoped, tag = 'scoped memory for tpu_custom_call.1']
    #allocation14 [shape = 'u8[24576]{0}', space=vmem, size = 0x6000, scoped, tag = 'output window, operand 0']
    %16 = vsyncpa [#allocation4], 0
    %s17 = scalar_lea.sflag [#allocation4], 1
    %18 = vsyncpa %s17, 0
    %19 = vsyncpa [#allocation7], 0
    %20 = vsyncpa [#allocation10], 0
    %21 = vsyncpa [#allocation13], 0
    %22 = vsyncpa [#allocation5], 0
    %s23 = scalar_lea.sflag [#allocation5], 1
    %24 = vsyncpa %s23, 0
    loop: start=0, step=1, limit=4
    $region2: #{tpu_custom_call.1} parent=1 // loop_pre_header
      _
    $region3: #{tpu_custom_call.1} parent=1 // loop_header
      %s26 = sphi 0, %s30
      %p27 = scmp.ge.s32.totalorder %s26, 4
      %s36 = sphi 0, %s38
      %s39 = sphi 0, %s36
      %s40 = sphi 0, %s39
      %s56 = sphi 0, %s40
      %s60 = sphi 0, %s60
      %s62 = sphi 0, %s60
      %s63 = sphi 0, %s62
      %s77 = sphi 0, %s63
      %s81 = sphi 0, %s81
      %s83 = sphi 0, %s81
      %s84 = sphi 0, %s83
      %s98 = sphi 0, %s84
      %s102 = sphi 0, %s102
      %s104 = sphi 0, %s102
      %s105 = sphi 0, %s104
      %s119 = sphi 0, %s105
      %s123 = sphi 0, %s123
      %s125 = sphi 0, %s123
      %s126 = sphi 0, %s125
      %s140 = sphi 0, %s126
      %s144 = sphi 0, %s144
      %s146 = sphi 0, %s144
      %s147 = sphi 0, %s146
      %s161 = sphi 0, %s147
      %s165 = sphi 0, %s165
      %s167 = sphi 0, %s165
      %s168 = sphi 0, %s167
      %s182 = sphi 0, %s168
      %s186 = sphi 0, %s186
      %s188 = sphi 0, %s186
      %s189 = sphi 0, %s188
      %s203 = sphi 0, %s189
      %s207 = sphi 0, %s207
      %s209 = sphi 0, %s207
      %s210 = sphi 0, %s209
      %s224 = sphi 0, %s210
      %s228 = sphi 0, %s228
      %s230 = sphi 0, %s228
      %s231 = sphi 0, %s230
      %s245 = sphi 0, %s231
      %s249 = sphi 0, %s249
      %s251 = sphi 0, %s249
      %s252 = sphi 0, %s251
      %s266 = sphi 0, %s252
      %s272 = sphi 0, %s274
      %s275 = sphi 0, %s272
      %s276 = sphi 0, %s275
      %s292 = sphi 0, %s276
    $region4: #{tpu_custom_call.1} parent=1 // loop_header_branch
      %29 = sbr.rel (%p27) target = $region8
    $region5: #{tpu_custom_call.1} parent=1 // loop_body
      %s31 = ssub.s32 %s26, 1
      %s32 = ssub.s32 %s26, 2
      %s33 = sadd.s32 %s26, 1
      %s34 = ssub.s32 %s26, %s33
      %p35 = scmp.eq.s32.totalorder %s34, 0
      %s37 = sadd.s32 %s36, 1
      %s38 = scalar_select %p35, %s36, %s37
      %p41 = pneg %p35
      %p42 = scmp.eq.s32.totalorder %s26, 1
      %p43 = por %p41, %p42
      %p44 = scmp.ne.s32.totalorder %s36, %s39
      %p45 = scmp.eq.s32.totalorder %s26, 0
      %p46 = por %p44, %p45
      %p47 = scmp.ne.s32.totalorder %s36, %s39
      %p48 = scmp.eq.s32.totalorder %s31, 1
      %p49 = por %p47, %p48
      %p50 = scmp.ne.s32.totalorder %s39, %s40
      %p51 = scmp.eq.s32.totalorder %s31, 0
      %p52 = por %p50, %p51
      %p53 = scmp.ne.s32.totalorder %s39, %s40
      %p54 = scmp.eq.s32.totalorder %s32, 1
      %p55 = por %p53, %p54
      %p57 = scmp.ne.s32.totalorder %s40, %s56
      %p58 = scmp.eq.s32.totalorder %s32, 0
      %p59 = por %p57, %p58
      %s61 = sadd.s32 %s60, 1
      %p64 = scmp.eq.s32.totalorder %s26, 1
      %p65 = scmp.ne.s32.totalorder %s60, %s62
      %p66 = scmp.eq.s32.totalorder %s26, 0
      %p67 = por %p65, %p66
      %p68 = scmp.ne.s32.totalorder %s60, %s62
      %p69 = scmp.eq.s32.totalorder %s31, 1
      %p70 = por %p68, %p69
      %p71 = scmp.ne.s32.totalorder %s62, %s63
      %p72 = scmp.eq.s32.totalorder %s31, 0
      %p73 = por %p71, %p72
      %p74 = scmp.ne.s32.totalorder %s62, %s63
      %p75 = scmp.eq.s32.totalorder %s32, 1
      %p76 = por %p74, %p75
      %p78 = scmp.ne.s32.totalorder %s63, %s77
      %p79 = scmp.eq.s32.totalorder %s32, 0
      %p80 = por %p78, %p79
      %s82 = sadd.s32 %s81, 1
      %p85 = scmp.eq.s32.totalorder %s26, 1
      %p86 = scmp.ne.s32.totalorder %s81, %s83
      %p87 = scmp.eq.s32.totalorder %s26, 0
      %p88 = por %p86, %p87
      %p89 = scmp.ne.s32.totalorder %s81, %s83
      %p90 = scmp.eq.s32.totalorder %s31, 1
      %p91 = por %p89, %p90
      %p92 = scmp.ne.s32.totalorder %s83, %s84
      %p93 = scmp.eq.s32.totalorder %s31, 0
      %p94 = por %p92, %p93
      %p95 = scmp.ne.s32.totalorder %s83, %s84
      %p96 = scmp.eq.s32.totalorder %s32, 1
      %p97 = por %p95, %p96
      %p99 = scmp.ne.s32.totalorder %s84, %s98
      %p100 = scmp.eq.s32.totalorder %s32, 0
      %p101 = por %p99, %p100
      %s103 = sadd.s32 %s102, 1
      %p106 = scmp.eq.s32.totalorder %s26, 1
      %p107 = scmp.ne.s32.totalorder %s102, %s104
      %p108 = scmp.eq.s32.totalorder %s26, 0
      %p109 = por %p107, %p108
      %p110 = scmp.ne.s32.totalorder %s102, %s104
      %p111 = scmp.eq.s32.totalorder %s31, 1
      %p112 = por %p110, %p111
      %p113 = scmp.ne.s32.totalorder %s104, %s105
      %p114 = scmp.eq.s32.totalorder %s31, 0
      %p115 = por %p113, %p114
      %p116 = scmp.ne.s32.totalorder %s104, %s105
      %p117 = scmp.eq.s32.totalorder %s32, 1
      %p118 = por %p116, %p117
      %p120 = scmp.ne.s32.totalorder %s105, %s119
      %p121 = scmp.eq.s32.totalorder %s32, 0
      %p122 = por %p120, %p121
      %s124 = sadd.s32 %s123, 1
      %p127 = scmp.eq.s32.totalorder %s26, 1
      %p128 = scmp.ne.s32.totalorder %s123, %s125
      %p129 = scmp.eq.s32.totalorder %s26, 0
      %p130 = por %p128, %p129
      %p131 = scmp.ne.s32.totalorder %s123, %s125
      %p132 = scmp.eq.s32.totalorder %s31, 1
      %p133 = por %p131, %p132
      %p134 = scmp.ne.s32.totalorder %s125, %s126
      %p135 = scmp.eq.s32.totalorder %s31, 0
      %p136 = por %p134, %p135
      %p137 = scmp.ne.s32.totalorder %s125, %s126
      %p138 = scmp.eq.s32.totalorder %s32, 1
      %p139 = por %p137, %p138
      %p141 = scmp.ne.s32.totalorder %s126, %s140
      %p142 = scmp.eq.s32.totalorder %s32, 0
      %p143 = por %p141, %p142
      %s145 = sadd.s32 %s144, 1
      %p148 = scmp.eq.s32.totalorder %s26, 1
      %p149 = scmp.ne.s32.totalorder %s144, %s146
      %p150 = scmp.eq.s32.totalorder %s26, 0
      %p151 = por %p149, %p150
      %p152 = scmp.ne.s32.totalorder %s144, %s146
      %p153 = scmp.eq.s32.totalorder %s31, 1
      %p154 = por %p152, %p153
      %p155 = scmp.ne.s32.totalorder %s146, %s147
      %p156 = scmp.eq.s32.totalorder %s31, 0
      %p157 = por %p155, %p156
      %p158 = scmp.ne.s32.totalorder %s146, %s147
      %p159 = scmp.eq.s32.totalorder %s32, 1
      %p160 = por %p158, %p159
      %p162 = scmp.ne.s32.totalorder %s147, %s161
      %p163 = scmp.eq.s32.totalorder %s32, 0
      %p164 = por %p162, %p163
      %s166 = sadd.s32 %s165, 1
      %p169 = scmp.eq.s32.totalorder %s26, 1
      %p170 = scmp.ne.s32.totalorder %s165, %s167
      %p171 = scmp.eq.s32.totalorder %s26, 0
      %p172 = por %p170, %p171
      %p173 = scmp.ne.s32.totalorder %s165, %s167
      %p174 = scmp.eq.s32.totalorder %s31, 1
      %p175 = por %p173, %p174
      %p176 = scmp.ne.s32.totalorder %s167, %s168
      %p177 = scmp.eq.s32.totalorder %s31, 0
      %p178 = por %p176, %p177
      %p179 = scmp.ne.s32.totalorder %s167, %s168
      %p180 = scmp.eq.s32.totalorder %s32, 1
      %p181 = por %p179, %p180
      %p183 = scmp.ne.s32.totalorder %s168, %s182
      %p184 = scmp.eq.s32.totalorder %s32, 0
      %p185 = por %p183, %p184
      %s187 = sadd.s32 %s186, 1
      %p190 = scmp.eq.s32.totalorder %s26, 1
      %p191 = scmp.ne.s32.totalorder %s186, %s188
      %p192 = scmp.eq.s32.totalorder %s26, 0
      %p193 = por %p191, %p192
      %p194 = scmp.ne.s32.totalorder %s186, %s188
      %p195 = scmp.eq.s32.totalorder %s31, 1
      %p196 = por %p194, %p195
      %p197 = scmp.ne.s32.totalorder %s188, %s189
      %p198 = scmp.eq.s32.totalorder %s31, 0
      %p199 = por %p197, %p198
      %p200 = scmp.ne.s32.totalorder %s188, %s189
      %p201 = scmp.eq.s32.totalorder %s32, 1
      %p202 = por %p200, %p201
      %p204 = scmp.ne.s32.totalorder %s189, %s203
      %p205 = scmp.eq.s32.totalorder %s32, 0
      %p206 = por %p204, %p205
      %s208 = sadd.s32 %s207, 1
      %p211 = scmp.eq.s32.totalorder %s26, 1
      %p212 = scmp.ne.s32.totalorder %s207, %s209
      %p213 = scmp.eq.s32.totalorder %s26, 0
      %p214 = por %p212, %p213
      %p215 = scmp.ne.s32.totalorder %s207, %s209
      %p216 = scmp.eq.s32.totalorder %s31, 1
      %p217 = por %p215, %p216
      %p218 = scmp.ne.s32.totalorder %s209, %s210
      %p219 = scmp.eq.s32.totalorder %s31, 0
      %p220 = por %p218, %p219
      %p221 = scmp.ne.s32.totalorder %s209, %s210
      %p222 = scmp.eq.s32.totalorder %s32, 1
      %p223 = por %p221, %p222
      %p225 = scmp.ne.s32.totalorder %s210, %s224
      %p226 = scmp.eq.s32.totalorder %s32, 0
      %p227 = por %p225, %p226
      %s229 = sadd.s32 %s228, 1
      %p232 = scmp.eq.s32.totalorder %s26, 1
      %p233 = scmp.ne.s32.totalorder %s228, %s230
      %p234 = scmp.eq.s32.totalorder %s26, 0
      %p235 = por %p233, %p234
      %p236 = scmp.ne.s32.totalorder %s228, %s230
      %p237 = scmp.eq.s32.totalorder %s31, 1
      %p238 = por %p236, %p237
      %p239 = scmp.ne.s32.totalorder %s230, %s231
      %p240 = scmp.eq.s32.totalorder %s31, 0
      %p241 = por %p239, %p240
      %p242 = scmp.ne.s32.totalorder %s230, %s231
      %p243 = scmp.eq.s32.totalorder %s32, 1
      %p244 = por %p242, %p243
      %p246 = scmp.ne.s32.totalorder %s231, %s245
      %p247 = scmp.eq.s32.totalorder %s32, 0
      %p248 = por %p246, %p247
      %s250 = sadd.s32 %s249, 1
      %p253 = scmp.eq.s32.totalorder %s26, 1
      %p254 = scmp.ne.s32.totalorder %s249, %s251
      %p255 = scmp.eq.s32.totalorder %s26, 0
      %p256 = por %p254, %p255
      %p257 = scmp.ne.s32.totalorder %s249, %s251
      %p258 = scmp.eq.s32.totalorder %s31, 1
      %p259 = por %p257, %p258
      %p260 = scmp.ne.s32.totalorder %s251, %s252
      %p261 = scmp.eq.s32.totalorder %s31, 0
      %p262 = por %p260, %p261
      %p263 = scmp.ne.s32.totalorder %s251, %s252
      %p264 = scmp.eq.s32.totalorder %s32, 1
      %p265 = por %p263, %p264
      %p267 = scmp.ne.s32.totalorder %s252, %s266
      %p268 = scmp.eq.s32.totalorder %s32, 0
      %p269 = por %p267, %p268
      %s270 = ssub.s32 %s26, %s33
      %p271 = scmp.eq.s32.totalorder %s270, 0
      %s273 = sadd.s32 %s272, 1
      %s274 = scalar_select %p271, %s272, %s273
      %p277 = pneg %p271
      %p278 = scmp.eq.s32.totalorder %s26, 1
      %p279 = por %p277, %p278
      %p280 = scmp.ne.s32.totalorder %s272, %s275
      %p281 = scmp.eq.s32.totalorder %s26, 0
      %p282 = por %p280, %p281
      %p283 = scmp.ne.s32.totalorder %s272, %s275
      %p284 = scmp.eq.s32.totalorder %s31, 1
      %p285 = por %p283, %p284
      %p286 = scmp.ne.s32.totalorder %s275, %s276
      %p287 = scmp.eq.s32.totalorder %s31, 0
      %p288 = por %p286, %p287
      %p289 = scmp.ne.s32.totalorder %s275, %s276
      %p290 = scmp.eq.s32.totalorder %s32, 1
      %p291 = por %p289, %p290
      %p293 = scmp.ne.s32.totalorder %s276, %s292
      %p294 = scmp.eq.s32.totalorder %s32, 0
      %p295 = por %p293, %p294
      %p296 = scmp.le.s32.totalorder 1, %s26
      %p297 = scmp.lt.s32.totalorder %s26, 3
      %p298 = pnand %p296, %p297
      %p299 = pneg %p298
      // Predicated region
      $region9: #{tpu_custom_call.1} parent=5 // pred_check
        _
      $region10: #{tpu_custom_call.1} parent=5 // pred_check_branch
        %301 = sbr.rel (%p298) target = $region12
      $region11: #{tpu_custom_call.1} parent=5 // pred_region
        %s302 = ssub.s32 %s26, 1
        // Predicated region
        $region13: #{tpu_custom_call.1} parent=11 // pred_check
          %p303 = pneg %p73
        $region14: #{tpu_custom_call.1} parent=11 // pred_check_branch
          %305 = sbr.rel (%p303) target = $region16
        $region15: #{tpu_custom_call.1} parent=11 // pred_region
          %s307 = ssub.s32 3072, 3072
          %308 = vsyncadd [#allocation7], %s307
          %s309 = sshll.u32 [#allocation6], 4
          %s310 = int_to_ptr.vmem [resolvable:$true] %s309
          %315 = dma.hbm_to_vmem [thread:$0]  %s1, 3072, %s310, [#allocation7], 192, 192, 12
        $region16: #{tpu_custom_call.1} parent=11 // pred_fallthru
          _
        // Predicated region
        $region17: #{tpu_custom_call.1} parent=11 // pred_check
          %p316 = pneg %p94
        $region18: #{tpu_custom_call.1} parent=11 // pred_check_branch
          %318 = sbr.rel (%p316) target = $region20
        $region19: #{tpu_custom_call.1} parent=11 // pred_region
          %s320 = ssub.s32 3072, 3072
          %321 = vsyncadd [#allocation7], %s320
          %s322 = sshll.u32 [#allocation8], 4
          %s323 = int_to_ptr.vmem [resolvable:$true] %s322
          %328 = dma.hbm_to_vmem [thread:$0]  %s2, 3072, %s323, [#allocation7], 192, 192, 12
        $region20: #{tpu_custom_call.1} parent=11 // pred_fallthru
          _
        // Predicated region
        $region21: #{tpu_custom_call.1} parent=11 // pred_check
          %p329 = pneg %p115
        $region22: #{tpu_custom_call.1} parent=11 // pred_check_branch
          %331 = sbr.rel (%p329) target = $region24
        $region23: #{tpu_custom_call.1} parent=11 // pred_region
          _
        $region24: #{tpu_custom_call.1} parent=11 // pred_fallthru
          _
        // Predicated region
        $region25: #{tpu_custom_call.1} parent=11 // pred_check
          %p332 = pneg %p136
        $region26: #{tpu_custom_call.1} parent=11 // pred_check_branch
          %334 = sbr.rel (%p332) target = $region28
        $region27: #{tpu_custom_call.1} parent=11 // pred_region
          _
        $region28: #{tpu_custom_call.1} parent=11 // pred_fallthru
          _
        // Predicated region
        $region29: #{tpu_custom_call.1} parent=11 // pred_check
          %p335 = pneg %p157
        $region30: #{tpu_custom_call.1} parent=11 // pred_check_branch
          %337 = sbr.rel (%p335) target = $region32
        $region31: #{tpu_custom_call.1} parent=11 // pred_region
          %s339 = ssub.s32 3072, 3072
          %340 = vsyncadd [#allocation10], %s339
          %s341 = sshll.u32 [#allocation9], 4
          %s342 = int_to_ptr.vmem [resolvable:$true] %s341
          %347 = dma.hbm_to_vmem [thread:$0]  %s5, 3072, %s342, [#allocation10], 192, 192, 12
        $region32: #{tpu_custom_call.1} parent=11 // pred_fallthru
          _
        // Predicated region
        $region33: #{tpu_custom_call.1} parent=11 // pred_check
          %p348 = pneg %p178
        $region34: #{tpu_custom_call.1} parent=11 // pred_check_branch
          %350 = sbr.rel (%p348) target = $region36
        $region35: #{tpu_custom_call.1} parent=11 // pred_region
          %s352 = ssub.s32 3072, 3072
          %353 = vsyncadd [#allocation10], %s352
          %s354 = sshll.u32 [#allocation11], 4
          %s355 = int_to_ptr.vmem [resolvable:$true] %s354
          %360 = dma.hbm_to_vmem [thread:$0]  %s6, 3072, %s355, [#allocation10], 192, 192, 12
        $region36: #{tpu_custom_call.1} parent=11 // pred_fallthru
          _
        // Predicated region
        $region37: #{tpu_custom_call.1} parent=11 // pred_check
          %p361 = pneg %p199
        $region38: #{tpu_custom_call.1} parent=11 // pred_check_branch
          %363 = sbr.rel (%p361) target = $region40
        $region39: #{tpu_custom_call.1} parent=11 // pred_region
          _
        $region40: #{tpu_custom_call.1} parent=11 // pred_fallthru
          _
        // Predicated region
        $region41: #{tpu_custom_call.1} parent=11 // pred_check
          %p364 = pneg %p220
        $region42: #{tpu_custom_call.1} parent=11 // pred_check_branch
          %366 = sbr.rel (%p364) target = $region44
        $region43: #{tpu_custom_call.1} parent=11 // pred_region
          _
        $region44: #{tpu_custom_call.1} parent=11 // pred_fallthru
          _
        // Predicated region
        $region45: #{tpu_custom_call.1} parent=11 // pred_check
          %p367 = pneg %p241
        $region46: #{tpu_custom_call.1} parent=11 // pred_check_branch
          %369 = sbr.rel (%p367) target = $region48
        $region47: #{tpu_custom_call.1} parent=11 // pred_region
          %s371 = ssub.s32 1024, 1024
          %372 = vsyncadd [#allocation13], %s371
          %s373 = sshll.u32 [#allocation12], 4
          %s374 = int_to_ptr.vmem [resolvable:$true] %s373
          %379 = dma.hbm_to_vmem [thread:$0]  %s9, 1024, %s374, [#allocation13], 64, 64, 4
        $region48: #{tpu_custom_call.1} parent=11 // pred_fallthru
          _
        // Predicated region
        $region49: #{tpu_custom_call.1} parent=11 // pred_check
          %p380 = pneg %p262
        $region50: #{tpu_custom_call.1} parent=11 // pred_check_branch
          %382 = sbr.rel (%p380) target = $region52
        $region51: #{tpu_custom_call.1} parent=11 // pred_region
          _
        $region52: #{tpu_custom_call.1} parent=11 // pred_fallthru
          _
      $region12: #{tpu_custom_call.1} parent=5 // pred_fallthru
        _
      %p383 = scmp.lt.s32.totalorder %s26, 2
      // Predicated region
      $region53: #{tpu_custom_call.1} parent=5 // pred_check
        %p384 = pneg %p383
      $region54: #{tpu_custom_call.1} parent=5 // pred_check_branch
        %386 = sbr.rel (%p384) target = $region56
      $region55: #{tpu_custom_call.1} parent=5 // pred_region
        // Predicated region
        $region57: #{tpu_custom_call.1} parent=55 // pred_check
          %p387 = pneg %p46
        $region58: #{tpu_custom_call.1} parent=55 // pred_check_branch
          %389 = sbr.rel (%p387) target = $region60
        $region59: #{tpu_custom_call.1} parent=55 // pred_region
          %s390 = sand.u32 %s36, 1
          %s391 = scalar_lea.sflag [#allocation4], %s390
          %s392 = sand.u32 %s36, 1
          %s393 = smul.addr %s392, 96
          %s394 = scalar_lea.vmem [#allocation3], %s393
          %s395 = smul.u32 24, %s26
          %s397 = ssub.s32 1536, 1536
          %398 = vsyncadd %s391, %s397
          %s399 = smul.addr %s395, 64
          %s400 = scalar_lea.hbm %s0, %s399
          %s401 = sshll.u32 %s394, 4
          %s402 = int_to_ptr.vmem [resolvable:$true] %s401
          %407 = dma.hbm_to_vmem [thread:$0]  %s400, 1536, %s402, %s391, 64, 64, 4
        $region60: #{tpu_custom_call.1} parent=55 // pred_fallthru
          _
      $region56: #{tpu_custom_call.1} parent=5 // pred_fallthru
        _
      %p408 = scmp.le.s32.totalorder 1, %s26
      %p409 = scmp.lt.s32.totalorder %s26, 3
      %p410 = pnand %p408, %p409
      %p411 = pneg %p410
      // Predicated region
      $region61: #{tpu_custom_call.1} parent=5 // pred_check
        _
      $region62: #{tpu_custom_call.1} parent=5 // pred_check_branch
        %413 = sbr.rel (%p410) target = $region64
      $region63: #{tpu_custom_call.1} parent=5 // pred_region
        %s414 = ssub.s32 %s26, 1
        %s415 = sand.u32 %s39, 1
        %s416 = scalar_lea.sflag [#allocation4], %s415
        %s417 = sand.u32 %s39, 1
        %s418 = smul.addr %s417, 96
        %s419 = scalar_lea.vmem [#allocation3], %s418
        // Predicated region
        $region65: #{tpu_custom_call.1} parent=63 // pred_check
          %p420 = pneg %p52
        $region66: #{tpu_custom_call.1} parent=63 // pred_check_branch
          %422 = sbr.rel (%p420) target = $region68
        $region67: #{tpu_custom_call.1} parent=63 // pred_region
          %423 = dma.done %s416, 1536
        $region68: #{tpu_custom_call.1} parent=63 // pred_fallthru
          _
        // Predicated region
        $region69: #{tpu_custom_call.1} parent=63 // pred_check
          %p424 = pneg %p73
        $region70: #{tpu_custom_call.1} parent=63 // pred_check_branch
          %426 = sbr.rel (%p424) target = $region72
        $region71: #{tpu_custom_call.1} parent=63 // pred_region
          %427 = dma.done [#allocation7], 3072
        $region72: #{tpu_custom_call.1} parent=63 // pred_fallthru
          _
        // Predicated region
        $region73: #{tpu_custom_call.1} parent=63 // pred_check
          %p428 = pneg %p94
        $region74: #{tpu_custom_call.1} parent=63 // pred_check_branch
          %430 = sbr.rel (%p428) target = $region76
        $region75: #{tpu_custom_call.1} parent=63 // pred_region
          %431 = dma.done [#allocation7], 3072
        $region76: #{tpu_custom_call.1} parent=63 // pred_fallthru
          _
        // Predicated region
        $region77: #{tpu_custom_call.1} parent=63 // pred_check
          %p432 = pneg %p157
        $region78: #{tpu_custom_call.1} parent=63 // pred_check_branch
          %434 = sbr.rel (%p432) target = $region80
        $region79: #{tpu_custom_call.1} parent=63 // pred_region
          %435 = dma.done [#allocation10], 3072
        $region80: #{tpu_custom_call.1} parent=63 // pred_fallthru
          _
        // Predicated region
        $region81: #{tpu_custom_call.1} parent=63 // pred_check
          %p436 = pneg %p178
        $region82: #{tpu_custom_call.1} parent=63 // pred_check_branch
          %438 = sbr.rel (%p436) target = $region84
        $region83: #{tpu_custom_call.1} parent=63 // pred_region
          %439 = dma.done [#allocation10], 3072
        $region84: #{tpu_custom_call.1} parent=63 // pred_fallthru
          _
        // Predicated region
        $region85: #{tpu_custom_call.1} parent=63 // pred_check
          %p440 = pneg %p241
        $region86: #{tpu_custom_call.1} parent=63 // pred_check_branch
          %442 = sbr.rel (%p440) target = $region88
        $region87: #{tpu_custom_call.1} parent=63 // pred_region
          %443 = dma.done [#allocation13], 1024
        $region88: #{tpu_custom_call.1} parent=63 // pred_fallthru
          _
        %s444 = sand.u32 %s39, 1
        %s445 = scalar_lea.sflag [#allocation4], %s444
        %s446 = sand.u32 %s39, 1
        %s447 = smul.addr %s446, 96
        %s448 = scalar_lea.vmem [#allocation3], %s447
        %p449 = pneg %p52
        %p450 = pneg %p49
        %p451 = pneg %p73
        %p452 = pneg %p70
        %p453 = pneg %p94
        %p454 = pneg %p91
        %p455 = pneg %p115
        %p456 = pneg %p112
        %p457 = pneg %p136
        %p458 = pneg %p133
        %p459 = pneg %p157
        %p460 = pneg %p154
        %p461 = pneg %p178
        %p462 = pneg %p175
        %p463 = pneg %p199
        %p464 = pneg %p196
        %p465 = pneg %p220
        %p466 = pneg %p217
        %p467 = pneg %p241
        %p468 = pneg %p238
        %p469 = pneg %p262
        %p470 = pneg %p259
        %p471 = pneg %p288
        %p472 = pneg %p285
        %s473 = sand.u32 %s275, 1
        %s474 = scalar_lea.sflag [#allocation5], %s473
        %s475 = sand.u32 %s275, 1
        %s476 = smul.addr %s475, 24
        %s477 = scalar_lea.vmem [#allocation14], %s476
        %s478 = smul.u32 24, %s31
        %s479 = smul.u32 3, %s31
        %v481 = vld [vmem:[%s3] sm:$0x7]
        %v482 = vld [vmem:[%s4] sm:$0x1]
        %v483 = vld [vmem:[%s7] sm:$0x7]
        %v484 = vld [vmem:[%s8] sm:$0x1]
        %v485 = vld [vmem:[%s419] sm:$0xf]
        %v486 = vld [vmem:[%s419 + $0x4] sm:$0xf]
        %v487 = vld [vmem:[%s419 + $0x8] sm:$0xf]
        %v488 = vld [vmem:[%s419 + $0xc] sm:$0xf]
        %v489 = vld [vmem:[%s419 + $0x10] sm:$0xf]
        %v490 = vld [vmem:[%s419 + $0x14] sm:$0xf]
        %v491 = vld [vmem:[%s419 + $0x18] sm:$0xf]
        %v492 = vld [vmem:[%s419 + $0x1c] sm:$0xf]
        %v493 = vld [vmem:[%s419 + $0x20] sm:$0xf]
        %v494 = vld [vmem:[%s419 + $0x24] sm:$0xf]
        %v495 = vld [vmem:[%s419 + $0x28] sm:$0xf]
        %v496 = vld [vmem:[%s419 + $0x2c] sm:$0xf]
        %v497 = vld [vmem:[#allocation6] sm:$0xff]
        %v498 = vld [vmem:[#allocation6 + $0x8] sm:$0xf]
        %v499 = vld [vmem:[#allocation6 + $0xc] sm:$0xff]
        %v500 = vld [vmem:[#allocation6 + $0x14] sm:$0xf]
        %v501 = vld [vmem:[#allocation6 + $0x18] sm:$0xff]
        %v502 = vld [vmem:[#allocation6 + $0x20] sm:$0xf]
        %v503 = vld [vmem:[#allocation6 + $0x24] sm:$0xff]
        %v504 = vld [vmem:[#allocation6 + $0x2c] sm:$0xf]
        %v505 = vld [vmem:[#allocation6 + $0x30] sm:$0xff]
        %v506 = vld [vmem:[#allocation6 + $0x38] sm:$0xf]
        %v507 = vld [vmem:[#allocation6 + $0x3c] sm:$0xff]
        %v508 = vld [vmem:[#allocation6 + $0x44] sm:$0xf]
        %v509 = vld [vmem:[#allocation6 + $0x48] sm:$0xff]
        %v510 = vld [vmem:[#allocation6 + $0x50] sm:$0xf]
        %v511 = vld [vmem:[#allocation6 + $0x54] sm:$0xff]
        %v512 = vld [vmem:[#allocation6 + $0x5c] sm:$0xf]
        %v513 = vld [vmem:[#allocation6 + $0x60] sm:$0xff]
        %v514 = vld [vmem:[#allocation6 + $0x68] sm:$0xf]
        %v515 = vld [vmem:[#allocation6 + $0x6c] sm:$0xff]
        %v516 = vld [vmem:[#allocation6 + $0x74] sm:$0xf]
        %v517 = vld [vmem:[#allocation6 + $0x78] sm:$0xff]
        %v518 = vld [vmem:[#allocation6 + $0x80] sm:$0xf]
        %v519 = vld [vmem:[#allocation6 + $0x84] sm:$0xff]
        %v520 = vld [vmem:[#allocation6 + $0x8c] sm:$0xf]
        %v521 = vld [vmem:[#allocation6 + $0x90] sm:$0xff]
        %v522 = vld [vmem:[#allocation6 + $0x98] sm:$0xf]
        %v523 = vld [vmem:[#allocation6 + $0x9c] sm:$0xff]
        %v524 = vld [vmem:[#allocation6 + $0xa4] sm:$0xf]
        %v525 = vld [vmem:[#allocation6 + $0xa8] sm:$0xff]
        %v526 = vld [vmem:[#allocation6 + $0xb0] sm:$0xf]
        %v527 = vld [vmem:[#allocation6 + $0xb4] sm:$0xff]
        %v528 = vld [vmem:[#allocation6 + $0xbc] sm:$0xf]
        %v530 = vlaneseq
        %v531 = vshrl.u32 %v530, 7
        %v532 = vsub.s32 0, %v531
        %v533 = vrot.slane %v481, %v532
        %v534 = vlaneseq
        %v535 = vshrl.u32 %v534, 7
        %v536 = vsub.s32 1, %v535
        %v537 = vrot.slane %v481, %v536
        %v538 = vlaneseq
        %v539 = vshrl.u32 %v538, 7
        %v540 = vsub.s32 2, %v539
        %v541 = vrot.slane %v481, %v540
        %v557 = vunpack.c.l.b16 %v485
        %v558 = vunpack.c.l.b16 %v486
        %v559 = vunpack.c.l.b16 %v487
        %v560 = vunpack.c.l.b16 %v488
        %v561 = vunpack.c.l.b16 %v489
        %v562 = vunpack.c.l.b16 %v490
        %v563 = vunpack.c.l.b16 %v491
        %v564 = vunpack.c.l.b16 %v492
        %v565 = vunpack.c.l.b16 %v493
        %v566 = vunpack.c.l.b16 %v494
        %v567 = vunpack.c.l.b16 %v495
        %v568 = vunpack.c.l.b16 %v496
        %v569 = vpack.c.b16 %v558, %v557
        %v570 = vpack.c.b16 %v560, %v559
        %v571 = vpack.c.b16 %v562, %v561
        %v572 = vpack.c.b16 %v564, %v563
        %v573 = vpack.c.b16 %v566, %v565
        %v574 = vpack.c.b16 %v568, %v567
        %v613 = vunpack.c.l.b16 %v497
        %v614 = vunpack.c.h.b16 %v497
        %v615 = vunpack.c.l.b16 %v498
        %v616 = vunpack.c.l.b16 %v499
        %v617 = vunpack.c.h.b16 %v499
        %v618 = vunpack.c.l.b16 %v500
        %v619 = vunpack.c.l.b16 %v501
        %v620 = vunpack.c.h.b16 %v501
        %v621 = vunpack.c.l.b16 %v502
        %v622 = vunpack.c.l.b16 %v503
        %v623 = vunpack.c.h.b16 %v503
        %v624 = vunpack.c.l.b16 %v504
        %v625 = vunpack.c.l.b16 %v505
        %v626 = vunpack.c.h.b16 %v505
        %v627 = vunpack.c.l.b16 %v506
        %v628 = vunpack.c.l.b16 %v507
        %v629 = vunpack.c.h.b16 %v507
        %v630 = vunpack.c.l.b16 %v508
        %v631 = vunpack.c.l.b16 %v509
        %v632 = vunpack.c.h.b16 %v509
        %v633 = vunpack.c.l.b16 %v510
        %v634 = vunpack.c.l.b16 %v511
        %v635 = vunpack.c.h.b16 %v511
        %v636 = vunpack.c.l.b16 %v512
        %v637 = vunpack.c.l.b16 %v513
        %v638 = vunpack.c.h.b16 %v513
        %v639 = vunpack.c.l.b16 %v514
        %v640 = vunpack.c.l.b16 %v515
        %v641 = vunpack.c.h.b16 %v515
        %v642 = vunpack.c.l.b16 %v516
        %v643 = vunpack.c.l.b16 %v517
        %v644 = vunpack.c.h.b16 %v517
        %v645 = vunpack.c.l.b16 %v518
        %v646 = vunpack.c.l.b16 %v519
        %v647 = vunpack.c.h.b16 %v519
        %v648 = vunpack.c.l.b16 %v520
        %v649 = vunpack.c.l.b16 %v521
        %v650 = vunpack.c.h.b16 %v521
        %v651 = vunpack.c.l.b16 %v522
        %v652 = vunpack.c.l.b16 %v523
        %v653 = vunpack.c.h.b16 %v523
        %v654 = vunpack.c.l.b16 %v524
        %v655 = vunpack.c.l.b16 %v525
        %v656 = vunpack.c.h.b16 %v525
        %v657 = vunpack.c.l.b16 %v526
        %v658 = vunpack.c.l.b16 %v527
        %v659 = vunpack.c.h.b16 %v527
        %v660 = vunpack.c.l.b16 %v528
        %v661 = vpack.c.b16 %v616, %v613
        %v662 = vpack.c.b16 %v617, %v614
        %v663 = vpack.c.b16 %v618, %v615
        %v664 = vpack.c.b16 %v622, %v619
        %v665 = vpack.c.b16 %v623, %v620
        %v666 = vpack.c.b16 %v624, %v621
        %v667 = vpack.c.b16 %v628, %v625
        %v668 = vpack.c.b16 %v629, %v626
        %v669 = vpack.c.b16 %v630, %v627
        %v670 = vpack.c.b16 %v634, %v631
        %v671 = vpack.c.b16 %v635, %v632
        %v672 = vpack.c.b16 %v636, %v633
        %v673 = vpack.c.b16 %v640, %v637
        %v674 = vpack.c.b16 %v641, %v638
        %v675 = vpack.c.b16 %v642, %v639
        %v676 = vpack.c.b16 %v646, %v643
        %v677 = vpack.c.b16 %v647, %v644
        %v678 = vpack.c.b16 %v648, %v645
        %v679 = vpack.c.b16 %v652, %v649
        %v680 = vpack.c.b16 %v653, %v650
        %v681 = vpack.c.b16 %v654, %v651
        %v682 = vpack.c.b16 %v658, %v655
        %v683 = vpack.c.b16 %v659, %v656
        %v684 = vpack.c.b16 %v660, %v657
        %709 = vmatprep.subr.bf16.mxu0 %v683
        %710 = vmatpush1.bf16.msra.mxu0 %v682
        %711 = vmatprep.subr.bf16.mxu0 %v680
        %712 = vmatpush1.bf16.msra.mxu0 %v679
        %713 = vmatprep.subr.bf16.mxu0 %v677
        %714 = vmatpush1.bf16.msra.mxu0 %v676
        %715 = vmatprep.subr.bf16.mxu0 %v674
        %716 = vmatpush1.bf16.msra.mxu0 %v673
        %717 = vmatprep.subr.bf16.mxu0 %v671
        %718 = vmatpush1.bf16.msra.mxu0 %v670
        %719 = vmatprep.subr.bf16.mxu0 %v668
        %720 = vmatpush1.bf16.msra.mxu0 %v667
        %721 = vmatprep.subr.bf16.mxu0 %v665
        %722 = vmatpush1.bf16.msra.mxu0 %v664
        %723 = vmatprep.subr.bf16.mxu0 %v662
        %724 = vmatpush1.bf16.msra.mxu0 %v661
        %725 = vmatprep.subr.bf16.mxu0 0
        %726 = vmatpush2.bf16.msra.mxu0 0
        %727 = vmatprep.subr.bf16.mxu0 0
        %728 = vmatpush2.bf16.msra.mxu0 0
        %729 = vmatprep.subr.bf16.mxu0 0
        %730 = vmatpush2.bf16.msra.mxu0 0
        %731 = vmatprep.subr.bf16.mxu0 0
        %732 = vmatpush2.bf16.msra.mxu0 0
        %733 = vmatprep.subr.bf16.mxu0 0
        %734 = vmatpush2.bf16.msra.mxu0 0
        %735 = vmatprep.subr.bf16.mxu0 0
        %736 = vmatpush2.bf16.msra.mxu0 0
        %737 = vmatprep.subr.bf16.mxu0 0
        %738 = vmatpush2.bf16.msra.mxu0 0
        %739 = vmatprep.subr.bf16.mxu0 0
        %740 = vmatpush2.bf16.msra.mxu0 0
        %741 = vmatprep.mubr.bf16.mxu0 0
        %742 = vmatmul.mubr.bf16.gmra.mxu0 %v569
        %v743 = vpop.f32.mrf.mxu0
        %v744 = vadd.f32 %v533, %v743
        %v745 = vpop.f32.mrf.mxu0
        %v746 = vadd.f32 %v537, %v745
        %v747 = vpop.f32.mrf.mxu0
        %v748 = vadd.f32 %v533, %v747
        %v749 = vpop.f32.mrf.mxu0
        %v750 = vadd.f32 %v537, %v749
        %751 = vmatprep.mubr.bf16.mxu0 0
        %752 = vmatmul.mubr.bf16.gmra.mxu0 %v570
        %v753 = vpop.f32.mrf.mxu0
        %v754 = vadd.f32 %v533, %v753
        %v755 = vpop.f32.mrf.mxu0
        %v756 = vadd.f32 %v537, %v755
        %v757 = vpop.f32.mrf.mxu0
        %v758 = vadd.f32 %v533, %v757
        %v759 = vpop.f32.mrf.mxu0
        %v760 = vadd.f32 %v537, %v759
        %761 = vmatprep.mubr.bf16.mxu0 0
        %762 = vmatmul.mubr.bf16.gmra.mxu0 %v571
        %v763 = vpop.f32.mrf.mxu0
        %v764 = vadd.f32 %v533, %v763
        %v765 = vpop.f32.mrf.mxu0
        %v766 = vadd.f32 %v537, %v765
        %v767 = vpop.f32.mrf.mxu0
        %v768 = vadd.f32 %v533, %v767
        %v769 = vpop.f32.mrf.mxu0
        %v770 = vadd.f32 %v537, %v769
        %771 = vmatprep.mubr.bf16.mxu0 0
        %772 = vmatmul.mubr.bf16.gmra.mxu0 %v572
        %v773 = vpop.f32.mrf.mxu0
        %v774 = vadd.f32 %v533, %v773
        %v775 = vpop.f32.mrf.mxu0
        %v776 = vadd.f32 %v537, %v775
        %v777 = vpop.f32.mrf.mxu0
        %v778 = vadd.f32 %v533, %v777
        %v779 = vpop.f32.mrf.mxu0
        %v780 = vadd.f32 %v537, %v779
        %781 = vmatprep.mubr.bf16.mxu0 0
        %782 = vmatmul.mubr.bf16.gmra.mxu0 %v573
        %v783 = vpop.f32.mrf.mxu0
        %v784 = vadd.f32 %v533, %v783
        %v785 = vpop.f32.mrf.mxu0
        %v786 = vadd.f32 %v537, %v785
        %v787 = vpop.f32.mrf.mxu0
        %v788 = vadd.f32 %v533, %v787
        %v789 = vpop.f32.mrf.mxu0
        %v790 = vadd.f32 %v537, %v789
        %791 = vmatprep.mubr.bf16.mxu0 0
        %792 = vmatmul.mubr.bf16.gmra.mxu0 %v574
        %v793 = vpop.f32.mrf.mxu0
        %v794 = vadd.f32 %v533, %v793
        %v795 = vpop.f32.mrf.mxu0
        %v796 = vadd.f32 %v537, %v795
        %v797 = vpop.f32.mrf.mxu0
        %v798 = vadd.f32 %v533, %v797
        %v799 = vpop.f32.mrf.mxu0
        %v800 = vadd.f32 %v537, %v799
        %801 = vdwg.mxu0
        %802 = vmatprep.subr.bf16.mxu0 0
        %803 = vmatpush1.bf16.msra.mxu0 %v684
        %804 = vmatprep.subr.bf16.mxu0 0
        %805 = vmatpush1.bf16.msra.mxu0 %v681
        %806 = vmatprep.subr.bf16.mxu0 0
        %807 = vmatpush1.bf16.msra.mxu0 %v678
        %808 = vmatprep.subr.bf16.mxu0 0
        %809 = vmatpush1.bf16.msra.mxu0 %v675
        %810 = vmatprep.subr.bf16.mxu0 0
        %811 = vmatpush1.bf16.msra.mxu0 %v672
        %812 = vmatprep.subr.bf16.mxu0 0
        %813 = vmatpush1.bf16.msra.mxu0 %v669
        %814 = vmatprep.subr.bf16.mxu0 0
        %815 = vmatpush1.bf16.msra.mxu0 %v666
        %816 = vmatprep.subr.bf16.mxu0 0
        %817 = vmatpush1.bf16.msra.mxu0 %v663
        %818 = vmatprep.subr.bf16.mxu0 0
        %819 = vmatpush2.bf16.msra.mxu0 0
        %820 = vmatprep.subr.bf16.mxu0 0
        %821 = vmatpush2.bf16.msra.mxu0 0
        %822 = vmatprep.subr.bf16.mxu0 0
        %823 = vmatpush2.bf16.msra.mxu0 0
        %824 = vmatprep.subr.bf16.mxu0 0
        %825 = vmatpush2.bf16.msra.mxu0 0
        %826 = vmatprep.subr.bf16.mxu0 0
        %827 = vmatpush2.bf16.msra.mxu0 0
        %828 = vmatprep.subr.bf16.mxu0 0
        %829 = vmatpush2.bf16.msra.mxu0 0
        %830 = vmatprep.subr.bf16.mxu0 0
        %831 = vmatpush2.bf16.msra.mxu0 0
        %832 = vmatprep.subr.bf16.mxu0 0
        %833 = vmatpush2.bf16.msra.mxu0 0
        %834 = vmatprep.mubr.bf16.mxu0 0
        %835 = vmatmul.mubr.bf16.gmra.mxu0 %v569
        %v836 = vpop.f32.mrf.mxu0
        %v837 = vadd.f32 %v541, %v836
        %v838 = vpop.f32.mrf.mxu0
        %v839 = vpop.f32.mrf.mxu0
        %v840 = vadd.f32 %v541, %v839
        %v841 = vpop.f32.mrf.mxu0
        %842 = vmatprep.mubr.bf16.mxu0 0
        %843 = vmatmul.mubr.bf16.gmra.mxu0 %v570
        %v844 = vpop.f32.mrf.mxu0
        %v845 = vadd.f32 %v541, %v844
        %v846 = vpop.f32.mrf.mxu0
        %v847 = vpop.f32.mrf.mxu0
        %v848 = vadd.f32 %v541, %v847
        %v849 = vpop.f32.mrf.mxu0
        %850 = vmatprep.mubr.bf16.mxu0 0
        %851 = vmatmul.mubr.bf16.gmra.mxu0 %v571
        %v852 = vpop.f32.mrf.mxu0
        %v853 = vadd.f32 %v541, %v852
        %v854 = vpop.f32.mrf.mxu0
        %v855 = vpop.f32.mrf.mxu0
        %v856 = vadd.f32 %v541, %v855
        %v857 = vpop.f32.mrf.mxu0
        %858 = vmatprep.mubr.bf16.mxu0 0
        %859 = vmatmul.mubr.bf16.gmra.mxu0 %v572
        %v860 = vpop.f32.mrf.mxu0
        %v861 = vadd.f32 %v541, %v860
        %v862 = vpop.f32.mrf.mxu0
        %v863 = vpop.f32.mrf.mxu0
        %v864 = vadd.f32 %v541, %v863
        %v865 = vpop.f32.mrf.mxu0
        %866 = vmatprep.mubr.bf16.mxu0 0
        %867 = vmatmul.mubr.bf16.gmra.mxu0 %v573
        %v868 = vpop.f32.mrf.mxu0
        %v869 = vadd.f32 %v541, %v868
        %v870 = vpop.f32.mrf.mxu0
        %v871 = vpop.f32.mrf.mxu0
        %v872 = vadd.f32 %v541, %v871
        %v873 = vpop.f32.mrf.mxu0
        %874 = vmatprep.mubr.bf16.mxu0 0
        %875 = vmatmul.mubr.bf16.gmra.mxu0 %v574
        %v876 = vpop.f32.mrf.mxu0
        %v877 = vadd.f32 %v541, %v876
        %v878 = vpop.f32.mrf.mxu0
        %v879 = vpop.f32.mrf.mxu0
        %v880 = vadd.f32 %v541, %v879
        %v881 = vpop.f32.mrf.mxu0
        %882 = vdwg.mxu0
        %883 = vst [vmem:[#allocation2] sm:$0xff] %v744
        %884 = vst [vmem:[#allocation2 + $0x8] sm:$0xff] %v746
        %885 = vst [vmem:[#allocation2 + $0x10] sm:$0xff] %v837
        %886 = vst [vmem:[#allocation2 + $0x18] sm:$0xff] %v748
        %887 = vst [vmem:[#allocation2 + $0x20] sm:$0xff] %v750
        %888 = vst [vmem:[#allocation2 + $0x28] sm:$0xff] %v840
        %889 = vst [vmem:[#allocation2 + $0x30] sm:$0xff] %v754
        %890 = vst [vmem:[#allocation2 + $0x38] sm:$0xff] %v756
        %891 = vst [vmem:[#allocation2 + $0x40] sm:$0xff] %v845
        %892 = vst [vmem:[#allocation2 + $0x48] sm:$0xff] %v758
        %893 = vst [vmem:[#allocation2 + $0x50] sm:$0xff] %v760
        %894 = vst [vmem:[#allocation2 + $0x58] sm:$0xff] %v848
        %895 = vst [vmem:[#allocation2 + $0x60] sm:$0xff] %v764
        %896 = vst [vmem:[#allocation2 + $0x68] sm:$0xff] %v766
        %897 = vst [vmem:[#allocation2 + $0x70] sm:$0xff] %v853
        %898 = vst [vmem:[#allocation2 + $0x78] sm:$0xff] %v768
        %899 = vst [vmem:[#allocation2 + $0x80] sm:$0xff] %v770
        %900 = vst [vmem:[#allocation2 + $0x88] sm:$0xff] %v856
        %901 = vst [vmem:[#allocation2 + $0x90] sm:$0xff] %v774
        %902 = vst [vmem:[#allocation2 + $0x98] sm:$0xff] %v776
        %903 = vst [vmem:[#allocation2 + $0xa0] sm:$0xff] %v861
        %904 = vst [vmem:[#allocation2 + $0xa8] sm:$0xff] %v778
        %905 = vst [vmem:[#allocation2 + $0xb0] sm:$0xff] %v780
        %906 = vst [vmem:[#allocation2 + $0xb8] sm:$0xff] %v864
        %907 = vst [vmem:[#allocation2 + $0xc0] sm:$0xff] %v784
        %908 = vst [vmem:[#allocation2 + $0xc8] sm:$0xff] %v786
        %909 = vst [vmem:[#allocation2 + $0xd0] sm:$0xff] %v869
        %910 = vst [vmem:[#allocation2 + $0xd8] sm:$0xff] %v788
        %911 = vst [vmem:[#allocation2 + $0xe0] sm:$0xff] %v790
        %912 = vst [vmem:[#allocation2 + $0xe8] sm:$0xff] %v872
        %913 = vst [vmem:[#allocation2 + $0xf0] sm:$0xff] %v794
        %914 = vst [vmem:[#allocation2 + $0xf8] sm:$0xff] %v796
        %915 = vst [vmem:[#allocation2 + $0x100] sm:$0xff] %v877
        %916 = vst [vmem:[#allocation2 + $0x108] sm:$0xff] %v798
        %917 = vst [vmem:[#allocation2 + $0x110] sm:$0xff] %v800
        %918 = vst [vmem:[#allocation2 + $0x118] sm:$0xff] %v880
        loop: start=0, step=1, limit=2
        $region89: #{tpu_custom_call.1} parent=63 // loop_pre_header
          _
        $region90: #{tpu_custom_call.1} parent=63 // loop_header
          %s920 = sphi 0, %s924
          %p921 = scmp.ge.s32.totalorder %s920, 2
          %v925 = vphi 0.0, %v3337
          %v926 = vphi 0.0, %v3338
          %v927 = vphi 0.0, %v3339
          %v928 = vphi 0.0, %v3593
          %v929 = vphi 0.0, %v3594
          %v930 = vphi 0.0, %v3595
        $region91: #{tpu_custom_call.1} parent=63 // loop_header_branch
          %923 = sbr.rel (%p921) target = $region95
        $region92: #{tpu_custom_call.1} parent=63 // loop_body
          %p931 = scmp.lt.s32.totalorder %s920, 0
          %s932 = ssub.s32 0, %s920
          %s933 = scalar_select %p931, %s932, %s920
          %s934 = sand.u32 %s933, 1
          %s935 = ssub.s32 0, %s934
          %s936 = scalar_select %p931, %s935, %s934
          %p937 = scmp.ne.s32.totalorder %s936, 0
          %p938 = scmp.lt.s32.totalorder %s936, 0
          %p939 = pnand %p938, %p937
          %p940 = pneg %p939
          %s941 = sadd.s32 %s936, 2
          %s942 = scalar_select %p940, %s941, %s936
          %s943 = sadd.s32 %s920, 1
          %p944 = scmp.lt.s32.totalorder %s943, 2
          // Predicated region
          $region96: #{tpu_custom_call.1} parent=92 // pred_check
            %p945 = pneg %p944
          $region97: #{tpu_custom_call.1} parent=92 // pred_check_branch
            %947 = sbr.rel (%p945) target = $region99
          $region98: #{tpu_custom_call.1} parent=92 // pred_region
            %s948 = sadd.s32 %s942, 1
            %p949 = scmp.lt.s32.totalorder %s948, 0
            %s950 = ssub.s32 0, %s948
            %s951 = scalar_select %p949, %s950, %s948
            %s952 = sand.u32 %s951, 1
            %s953 = ssub.s32 0, %s952
            %s954 = scalar_select %p949, %s953, %s952
            %p955 = scmp.ne.s32.totalorder %s954, 0
            %p956 = scmp.lt.s32.totalorder %s954, 0
            %p957 = pnand %p956, %p955
            %p958 = pneg %p957
            %s959 = sadd.s32 %s954, 2
            %s960 = scalar_select %p958, %s959, %s954
            %s961 = smul.u32 %s943, 96
            %s962 = sshra.s32 %s961, 3
            %s963 = sand.u32 %s961, 7
            %s964 = smul.addr %s962, 4
            %s965 = scalar_lea.vmem %s419, %s964 [#allocation3]
            %v966 = vld [vmem:[%s965] sm:$0xf]
            %v967 = vld [vmem:[%s965 + $0x4] sm:$0xf]
            %v968 = vld [vmem:[%s965 + $0x8] sm:$0xf]
            %v969 = vld [vmem:[%s965 + $0xc] sm:$0xf]
            %v970 = vld [vmem:[%s965 + $0x10] sm:$0xf]
            %v971 = vld [vmem:[%s965 + $0x14] sm:$0xf]
            %v972 = vld [vmem:[%s965 + $0x18] sm:$0xf]
            %v973 = vld [vmem:[%s965 + $0x1c] sm:$0xf]
            %v974 = vld [vmem:[%s965 + $0x20] sm:$0xf]
            %v975 = vld [vmem:[%s965 + $0x24] sm:$0xf]
            %v976 = vld [vmem:[%s965 + $0x28] sm:$0xf]
            %v977 = vld [vmem:[%s965 + $0x2c] sm:$0xf]
            %v978 = vld [vmem:[#allocation6] sm:$0xff]
            %v979 = vld [vmem:[#allocation6 + $0x8] sm:$0xf]
            %v980 = vld [vmem:[#allocation6 + $0xc] sm:$0xff]
            %v981 = vld [vmem:[#allocation6 + $0x14] sm:$0xf]
            %v982 = vld [vmem:[#allocation6 + $0x18] sm:$0xff]
            %v983 = vld [vmem:[#allocation6 + $0x20] sm:$0xf]
            %v984 = vld [vmem:[#allocation6 + $0x24] sm:$0xff]
            %v985 = vld [vmem:[#allocation6 + $0x2c] sm:$0xf]
            %v986 = vld [vmem:[#allocation6 + $0x30] sm:$0xff]
            %v987 = vld [vmem:[#allocation6 + $0x38] sm:$0xf]
            %v988 = vld [vmem:[#allocation6 + $0x3c] sm:$0xff]
            %v989 = vld [vmem:[#allocation6 + $0x44] sm:$0xf]
            %v990 = vld [vmem:[#allocation6 + $0x48] sm:$0xff]
            %v991 = vld [vmem:[#allocation6 + $0x50] sm:$0xf]
            %v992 = vld [vmem:[#allocation6 + $0x54] sm:$0xff]
            %v993 = vld [vmem:[#allocation6 + $0x5c] sm:$0xf]
            %v994 = vld [vmem:[#allocation6 + $0x60] sm:$0xff]
            %v995 = vld [vmem:[#allocation6 + $0x68] sm:$0xf]
            %v996 = vld [vmem:[#allocation6 + $0x6c] sm:$0xff]
            %v997 = vld [vmem:[#allocation6 + $0x74] sm:$0xf]
            %v998 = vld [vmem:[#allocation6 + $0x78] sm:$0xff]
            %v999 = vld [vmem:[#allocation6 + $0x80] sm:$0xf]
            %v1000 = vld [vmem:[#allocation6 + $0x84] sm:$0xff]
            %v1001 = vld [vmem:[#allocation6 + $0x8c] sm:$0xf]
            %v1002 = vld [vmem:[#allocation6 + $0x90] sm:$0xff]
            %v1003 = vld [vmem:[#allocation6 + $0x98] sm:$0xf]
            %v1004 = vld [vmem:[#allocation6 + $0x9c] sm:$0xff]
            %v1005 = vld [vmem:[#allocation6 + $0xa4] sm:$0xf]
            %v1006 = vld [vmem:[#allocation6 + $0xa8] sm:$0xff]
            %v1007 = vld [vmem:[#allocation6 + $0xb0] sm:$0xf]
            %v1008 = vld [vmem:[#allocation6 + $0xb4] sm:$0xff]
            %v1009 = vld [vmem:[#allocation6 + $0xbc] sm:$0xf]
            %v1022 = vunpack.c.l.b16 %v966
            %v1023 = vunpack.c.l.b16 %v967
            %v1024 = vunpack.c.l.b16 %v968
            %v1025 = vunpack.c.l.b16 %v969
            %v1026 = vunpack.c.l.b16 %v970
            %v1027 = vunpack.c.l.b16 %v971
            %v1028 = vunpack.c.l.b16 %v972
            %v1029 = vunpack.c.l.b16 %v973
            %v1030 = vunpack.c.l.b16 %v974
            %v1031 = vunpack.c.l.b16 %v975
            %v1032 = vunpack.c.l.b16 %v976
            %v1033 = vunpack.c.l.b16 %v977
            %v1034 = vpack.c.b16 %v1023, %v1022
            %v1035 = vpack.c.b16 %v1025, %v1024
            %v1036 = vpack.c.b16 %v1027, %v1026
            %v1037 = vpack.c.b16 %v1029, %v1028
            %v1038 = vpack.c.b16 %v1031, %v1030
            %v1039 = vpack.c.b16 %v1033, %v1032
            %v1078 = vunpack.c.l.b16 %v978
            %v1079 = vunpack.c.h.b16 %v978
            %v1080 = vunpack.c.l.b16 %v979
            %v1081 = vunpack.c.l.b16 %v980
            %v1082 = vunpack.c.h.b16 %v980
            %v1083 = vunpack.c.l.b16 %v981
            %v1084 = vunpack.c.l.b16 %v982
            %v1085 = vunpack.c.h.b16 %v982
            %v1086 = vunpack.c.l.b16 %v983
            %v1087 = vunpack.c.l.b16 %v984
            %v1088 = vunpack.c.h.b16 %v984
            %v1089 = vunpack.c.l.b16 %v985
            %v1090 = vunpack.c.l.b16 %v986
            %v1091 = vunpack.c.h.b16 %v986
            %v1092 = vunpack.c.l.b16 %v987
            %v1093 = vunpack.c.l.b16 %v988
            %v1094 = vunpack.c.h.b16 %v988
            %v1095 = vunpack.c.l.b16 %v989
            %v1096 = vunpack.c.l.b16 %v990
            %v1097 = vunpack.c.h.b16 %v990
            %v1098 = vunpack.c.l.b16 %v991
            %v1099 = vunpack.c.l.b16 %v992
            %v1100 = vunpack.c.h.b16 %v992
            %v1101 = vunpack.c.l.b16 %v993
            %v1102 = vunpack.c.l.b16 %v994
            %v1103 = vunpack.c.h.b16 %v994
            %v1104 = vunpack.c.l.b16 %v995
            %v1105 = vunpack.c.l.b16 %v996
            %v1106 = vunpack.c.h.b16 %v996
            %v1107 = vunpack.c.l.b16 %v997
            %v1108 = vunpack.c.l.b16 %v998
            %v1109 = vunpack.c.h.b16 %v998
            %v1110 = vunpack.c.l.b16 %v999
            %v1111 = vunpack.c.l.b16 %v1000
            %v1112 = vunpack.c.h.b16 %v1000
            %v1113 = vunpack.c.l.b16 %v1001
            %v1114 = vunpack.c.l.b16 %v1002
            %v1115 = vunpack.c.h.b16 %v1002
            %v1116 = vunpack.c.l.b16 %v1003
            %v1117 = vunpack.c.l.b16 %v1004
            %v1118 = vunpack.c.h.b16 %v1004
            %v1119 = vunpack.c.l.b16 %v1005
            %v1120 = vunpack.c.l.b16 %v1006
            %v1121 = vunpack.c.h.b16 %v1006
            %v1122 = vunpack.c.l.b16 %v1007
            %v1123 = vunpack.c.l.b16 %v1008
            %v1124 = vunpack.c.h.b16 %v1008
            %v1125 = vunpack.c.l.b16 %v1009
            %v1126 = vpack.c.b16 %v1081, %v1078
            %v1127 = vpack.c.b16 %v1082, %v1079
            %v1128 = vpack.c.b16 %v1083, %v1080
            %v1129 = vpack.c.b16 %v1087, %v1084
            %v1130 = vpack.c.b16 %v1088, %v1085
            %v1131 = vpack.c.b16 %v1089, %v1086
            %v1132 = vpack.c.b16 %v1093, %v1090
            %v1133 = vpack.c.b16 %v1094, %v1091
            %v1134 = vpack.c.b16 %v1095, %v1092
            %v1135 = vpack.c.b16 %v1099, %v1096
            %v1136 = vpack.c.b16 %v1100, %v1097
            %v1137 = vpack.c.b16 %v1101, %v1098
            %v1138 = vpack.c.b16 %v1105, %v1102
            %v1139 = vpack.c.b16 %v1106, %v1103
            %v1140 = vpack.c.b16 %v1107, %v1104
            %v1141 = vpack.c.b16 %v1111, %v1108
            %v1142 = vpack.c.b16 %v1112, %v1109
            %v1143 = vpack.c.b16 %v1113, %v1110
            %v1144 = vpack.c.b16 %v1117, %v1114
            %v1145 = vpack.c.b16 %v1118, %v1115
            %v1146 = vpack.c.b16 %v1119, %v1116
            %v1147 = vpack.c.b16 %v1123, %v1120
            %v1148 = vpack.c.b16 %v1124, %v1121
            %v1149 = vpack.c.b16 %v1125, %v1122
            %1174 = vmatprep.subr.bf16.mxu0 %v1148
            %1175 = vmatpush1.bf16.msra.mxu0 %v1147
            %1176 = vmatprep.subr.bf16.mxu0 %v1145
            %1177 = vmatpush1.bf16.msra.mxu0 %v1144
            %1178 = vmatprep.subr.bf16.mxu0 %v1142
            %1179 = vmatpush1.bf16.msra.mxu0 %v1141
            %1180 = vmatprep.subr.bf16.mxu0 %v1139
            %1181 = vmatpush1.bf16.msra.mxu0 %v1138
            %1182 = vmatprep.subr.bf16.mxu0 %v1136
            %1183 = vmatpush1.bf16.msra.mxu0 %v1135
            %1184 = vmatprep.subr.bf16.mxu0 %v1133
            %1185 = vmatpush1.bf16.msra.mxu0 %v1132
            %1186 = vmatprep.subr.bf16.mxu0 %v1130
            %1187 = vmatpush1.bf16.msra.mxu0 %v1129
            %1188 = vmatprep.subr.bf16.mxu0 %v1127
            %1189 = vmatpush1.bf16.msra.mxu0 %v1126
            %1190 = vmatprep.subr.bf16.mxu0 0
            %1191 = vmatpush2.bf16.msra.mxu0 0
            %1192 = vmatprep.subr.bf16.mxu0 0
            %1193 = vmatpush2.bf16.msra.mxu0 0
            %1194 = vmatprep.subr.bf16.mxu0 0
            %1195 = vmatpush2.bf16.msra.mxu0 0
            %1196 = vmatprep.subr.bf16.mxu0 0
            %1197 = vmatpush2.bf16.msra.mxu0 0
            %1198 = vmatprep.subr.bf16.mxu0 0
            %1199 = vmatpush2.bf16.msra.mxu0 0
            %1200 = vmatprep.subr.bf16.mxu0 0
            %1201 = vmatpush2.bf16.msra.mxu0 0
            %1202 = vmatprep.subr.bf16.mxu0 0
            %1203 = vmatpush2.bf16.msra.mxu0 0
            %1204 = vmatprep.subr.bf16.mxu0 0
            %1205 = vmatpush2.bf16.msra.mxu0 0
            %1206 = vmatprep.mubr.bf16.mxu0 0
            %1207 = vmatmul.mubr.bf16.gmra.mxu0 %v1034
            %v1208 = vpop.f32.mrf.mxu0
            %v1209 = vadd.f32 %v533, %v1208
            %v1210 = vpop.f32.mrf.mxu0
            %v1211 = vadd.f32 %v537, %v1210
            %v1212 = vpop.f32.mrf.mxu0
            %v1213 = vadd.f32 %v533, %v1212
            %v1214 = vpop.f32.mrf.mxu0
            %v1215 = vadd.f32 %v537, %v1214
            %1216 = vmatprep.mubr.bf16.mxu0 0
            %1217 = vmatmul.mubr.bf16.gmra.mxu0 %v1035
            %v1218 = vpop.f32.mrf.mxu0
            %v1219 = vadd.f32 %v533, %v1218
            %v1220 = vpop.f32.mrf.mxu0
            %v1221 = vadd.f32 %v537, %v1220
            %v1222 = vpop.f32.mrf.mxu0
            %v1223 = vadd.f32 %v533, %v1222
            %v1224 = vpop.f32.mrf.mxu0
            %v1225 = vadd.f32 %v537, %v1224
            %1226 = vmatprep.mubr.bf16.mxu0 0
            %1227 = vmatmul.mubr.bf16.gmra.mxu0 %v1036
            %v1228 = vpop.f32.mrf.mxu0
            %v1229 = vadd.f32 %v533, %v1228
            %v1230 = vpop.f32.mrf.mxu0
            %v1231 = vadd.f32 %v537, %v1230
            %v1232 = vpop.f32.mrf.mxu0
            %v1233 = vadd.f32 %v533, %v1232
            %v1234 = vpop.f32.mrf.mxu0
            %v1235 = vadd.f32 %v537, %v1234
            %1236 = vmatprep.mubr.bf16.mxu0 0
            %1237 = vmatmul.mubr.bf16.gmra.mxu0 %v1037
            %v1238 = vpop.f32.mrf.mxu0
            %v1239 = vadd.f32 %v533, %v1238
            %v1240 = vpop.f32.mrf.mxu0
            %v1241 = vadd.f32 %v537, %v1240
            %v1242 = vpop.f32.mrf.mxu0
            %v1243 = vadd.f32 %v533, %v1242
            %v1244 = vpop.f32.mrf.mxu0
            %v1245 = vadd.f32 %v537, %v1244
            %1246 = vmatprep.mubr.bf16.mxu0 0
            %1247 = vmatmul.mubr.bf16.gmra.mxu0 %v1038
            %v1248 = vpop.f32.mrf.mxu0
            %v1249 = vadd.f32 %v533, %v1248
            %v1250 = vpop.f32.mrf.mxu0
            %v1251 = vadd.f32 %v537, %v1250
            %v1252 = vpop.f32.mrf.mxu0
            %v1253 = vadd.f32 %v533, %v1252
            %v1254 = vpop.f32.mrf.mxu0
            %v1255 = vadd.f32 %v537, %v1254
            %1256 = vmatprep.mubr.bf16.mxu0 0
            %1257 = vmatmul.mubr.bf16.gmra.mxu0 %v1039
            %v1258 = vpop.f32.mrf.mxu0
            %v1259 = vadd.f32 %v533, %v1258
            %v1260 = vpop.f32.mrf.mxu0
            %v1261 = vadd.f32 %v537, %v1260
            %v1262 = vpop.f32.mrf.mxu0
            %v1263 = vadd.f32 %v533, %v1262
            %v1264 = vpop.f32.mrf.mxu0
            %v1265 = vadd.f32 %v537, %v1264
            %1266 = vdwg.mxu0
            %1267 = vmatprep.subr.bf16.mxu0 0
            %1268 = vmatpush1.bf16.msra.mxu0 %v1149
            %1269 = vmatprep.subr.bf16.mxu0 0
            %1270 = vmatpush1.bf16.msra.mxu0 %v1146
            %1271 = vmatprep.subr.bf16.mxu0 0
            %1272 = vmatpush1.bf16.msra.mxu0 %v1143
            %1273 = vmatprep.subr.bf16.mxu0 0
            %1274 = vmatpush1.bf16.msra.mxu0 %v1140
            %1275 = vmatprep.subr.bf16.mxu0 0
            %1276 = vmatpush1.bf16.msra.mxu0 %v1137
            %1277 = vmatprep.subr.bf16.mxu0 0
            %1278 = vmatpush1.bf16.msra.mxu0 %v1134
            %1279 = vmatprep.subr.bf16.mxu0 0
            %1280 = vmatpush1.bf16.msra.mxu0 %v1131
            %1281 = vmatprep.subr.bf16.mxu0 0
            %1282 = vmatpush1.bf16.msra.mxu0 %v1128
            %1283 = vmatprep.subr.bf16.mxu0 0
            %1284 = vmatpush2.bf16.msra.mxu0 0
            %1285 = vmatprep.subr.bf16.mxu0 0
            %1286 = vmatpush2.bf16.msra.mxu0 0
            %1287 = vmatprep.subr.bf16.mxu0 0
            %1288 = vmatpush2.bf16.msra.mxu0 0
            %1289 = vmatprep.subr.bf16.mxu0 0
            %1290 = vmatpush2.bf16.msra.mxu0 0
            %1291 = vmatprep.subr.bf16.mxu0 0
            %1292 = vmatpush2.bf16.msra.mxu0 0
            %1293 = vmatprep.subr.bf16.mxu0 0
            %1294 = vmatpush2.bf16.msra.mxu0 0
            %1295 = vmatprep.subr.bf16.mxu0 0
            %1296 = vmatpush2.bf16.msra.mxu0 0
            %1297 = vmatprep.subr.bf16.mxu0 0
            %1298 = vmatpush2.bf16.msra.mxu0 0
            %1299 = vmatprep.mubr.bf16.mxu0 0
            %1300 = vmatmul.mubr.bf16.gmra.mxu0 %v1034
            %v1301 = vpop.f32.mrf.mxu0
            %v1302 = vadd.f32 %v541, %v1301
            %v1303 = vpop.f32.mrf.mxu0
            %v1304 = vpop.f32.mrf.mxu0
            %v1305 = vadd.f32 %v541, %v1304
            %v1306 = vpop.f32.mrf.mxu0
            %1307 = vmatprep.mubr.bf16.mxu0 0
            %1308 = vmatmul.mubr.bf16.gmra.mxu0 %v1035
            %v1309 = vpop.f32.mrf.mxu0
            %v1310 = vadd.f32 %v541, %v1309
            %v1311 = vpop.f32.mrf.mxu0
            %v1312 = vpop.f32.mrf.mxu0
            %v1313 = vadd.f32 %v541, %v1312
            %v1314 = vpop.f32.mrf.mxu0
            %1315 = vmatprep.mubr.bf16.mxu0 0
            %1316 = vmatmul.mubr.bf16.gmra.mxu0 %v1036
            %v1317 = vpop.f32.mrf.mxu0
            %v1318 = vadd.f32 %v541, %v1317
            %v1319 = vpop.f32.mrf.mxu0
            %v1320 = vpop.f32.mrf.mxu0
            %v1321 = vadd.f32 %v541, %v1320
            %v1322 = vpop.f32.mrf.mxu0
            %1323 = vmatprep.mubr.bf16.mxu0 0
            %1324 = vmatmul.mubr.bf16.gmra.mxu0 %v1037
            %v1325 = vpop.f32.mrf.mxu0
            %v1326 = vadd.f32 %v541, %v1325
            %v1327 = vpop.f32.mrf.mxu0
            %v1328 = vpop.f32.mrf.mxu0
            %v1329 = vadd.f32 %v541, %v1328
            %v1330 = vpop.f32.mrf.mxu0
            %1331 = vmatprep.mubr.bf16.mxu0 0
            %1332 = vmatmul.mubr.bf16.gmra.mxu0 %v1038
            %v1333 = vpop.f32.mrf.mxu0
            %v1334 = vadd.f32 %v541, %v1333
            %v1335 = vpop.f32.mrf.mxu0
            %v1336 = vpop.f32.mrf.mxu0
            %v1337 = vadd.f32 %v541, %v1336
            %v1338 = vpop.f32.mrf.mxu0
            %1339 = vmatprep.mubr.bf16.mxu0 0
            %1340 = vmatmul.mubr.bf16.gmra.mxu0 %v1039
            %v1341 = vpop.f32.mrf.mxu0
            %v1342 = vadd.f32 %v541, %v1341
            %v1343 = vpop.f32.mrf.mxu0
            %v1344 = vpop.f32.mrf.mxu0
            %v1345 = vadd.f32 %v541, %v1344
            %v1346 = vpop.f32.mrf.mxu0
            %1347 = vdwg.mxu0
            %s1348 = smul.u32 %s960, 96
            %s1349 = sshra.s32 %s1348, 3
            %s1350 = sand.u32 %s1348, 7
            %s1351 = smul.u32 %s1349, 3
            %s1352 = smul.addr %s1351, 8
            %s1353 = scalar_lea.vmem [#allocation2], %s1352
            %1354 = vst [vmem:[%s1353] sm:$0xff] %v1209
            %1355 = vst [vmem:[%s1353 + $0x8] sm:$0xff] %v1211
            %1356 = vst [vmem:[%s1353 + $0x10] sm:$0xff] %v1302
            %1357 = vst [vmem:[%s1353 + $0x18] sm:$0xff] %v1213
            %1358 = vst [vmem:[%s1353 + $0x20] sm:$0xff] %v1215
            %1359 = vst [vmem:[%s1353 + $0x28] sm:$0xff] %v1305
            %1360 = vst [vmem:[%s1353 + $0x30] sm:$0xff] %v1219
            %1361 = vst [vmem:[%s1353 + $0x38] sm:$0xff] %v1221
            %1362 = vst [vmem:[%s1353 + $0x40] sm:$0xff] %v1310
            %1363 = vst [vmem:[%s1353 + $0x48] sm:$0xff] %v1223
            %1364 = vst [vmem:[%s1353 + $0x50] sm:$0xff] %v1225
            %1365 = vst [vmem:[%s1353 + $0x58] sm:$0xff] %v1313
            %1366 = vst [vmem:[%s1353 + $0x60] sm:$0xff] %v1229
            %1367 = vst [vmem:[%s1353 + $0x68] sm:$0xff] %v1231
            %1368 = vst [vmem:[%s1353 + $0x70] sm:$0xff] %v1318
            %1369 = vst [vmem:[%s1353 + $0x78] sm:$0xff] %v1233
            %1370 = vst [vmem:[%s1353 + $0x80] sm:$0xff] %v1235
            %1371 = vst [vmem:[%s1353 + $0x88] sm:$0xff] %v1321
            %1372 = vst [vmem:[%s1353 + $0x90] sm:$0xff] %v1239
            %1373 = vst [vmem:[%s1353 + $0x98] sm:$0xff] %v1241
            %1374 = vst [vmem:[%s1353 + $0xa0] sm:$0xff] %v1326
            %1375 = vst [vmem:[%s1353 + $0xa8] sm:$0xff] %v1243
            %1376 = vst [vmem:[%s1353 + $0xb0] sm:$0xff] %v1245
            %1377 = vst [vmem:[%s1353 + $0xb8] sm:$0xff] %v1329
            %1378 = vst [vmem:[%s1353 + $0xc0] sm:$0xff] %v1249
            %1379 = vst [vmem:[%s1353 + $0xc8] sm:$0xff] %v1251
            %1380 = vst [vmem:[%s1353 + $0xd0] sm:$0xff] %v1334
            %1381 = vst [vmem:[%s1353 + $0xd8] sm:$0xff] %v1253
            %1382 = vst [vmem:[%s1353 + $0xe0] sm:$0xff] %v1255
            %1383 = vst [vmem:[%s1353 + $0xe8] sm:$0xff] %v1337
            %1384 = vst [vmem:[%s1353 + $0xf0] sm:$0xff] %v1259
            %1385 = vst [vmem:[%s1353 + $0xf8] sm:$0xff] %v1261
            %1386 = vst [vmem:[%s1353 + $0x100] sm:$0xff] %v1342
            %1387 = vst [vmem:[%s1353 + $0x108] sm:$0xff] %v1263
            %1388 = vst [vmem:[%s1353 + $0x110] sm:$0xff] %v1265
            %1389 = vst [vmem:[%s1353 + $0x118] sm:$0xff] %v1345
          $region99: #{tpu_custom_call.1} parent=92 // pred_fallthru
            _
          %s1390 = smul.u32 %s942, 96
          %s1391 = sshra.s32 %s1390, 3
          %s1392 = sand.u32 %s1390, 7
          %s1393 = smul.u32 %s1391, 3
          %s1394 = smul.addr %s1393, 8
          %s1395 = scalar_lea.vmem [#allocation2], %s1394
          %v1396 = vld [vmem:[%s1395] sm:$0xff]
          %v1397 = vld [vmem:[%s1395 + $0x8] sm:$0xff]
          %v1398 = vld [vmem:[%s1395 + $0x10] sm:$0xff]
          %v1399 = vld [vmem:[%s1395 + $0x18] sm:$0xff]
          %v1400 = vld [vmem:[%s1395 + $0x20] sm:$0xff]
          %v1401 = vld [vmem:[%s1395 + $0x28] sm:$0xff]
          %v1402 = vld [vmem:[%s1395 + $0x30] sm:$0xff]
          %v1403 = vld [vmem:[%s1395 + $0x38] sm:$0xff]
          %v1404 = vld [vmem:[%s1395 + $0x40] sm:$0xff]
          %v1405 = vpack.c.bf16 %v926, %v925
          %v1406 = vpack.c.bf16 %v927, %v927
          %v1407 = vld [vmem:[#allocation8] sm:$0xff]
          %v1408 = vld [vmem:[#allocation8 + $0x8] sm:$0xf]
          %v1409 = vld [vmem:[#allocation8 + $0xc] sm:$0xff]
          %v1410 = vld [vmem:[#allocation8 + $0x14] sm:$0xf]
          %v1411 = vld [vmem:[#allocation8 + $0x18] sm:$0xff]
          %v1412 = vld [vmem:[#allocation8 + $0x20] sm:$0xf]
          %v1413 = vld [vmem:[#allocation8 + $0x24] sm:$0xff]
          %v1414 = vld [vmem:[#allocation8 + $0x2c] sm:$0xf]
          %v1415 = vld [vmem:[#allocation8 + $0x30] sm:$0xff]
          %v1416 = vld [vmem:[#allocation8 + $0x38] sm:$0xf]
          %v1417 = vld [vmem:[#allocation8 + $0x3c] sm:$0xff]
          %v1418 = vld [vmem:[#allocation8 + $0x44] sm:$0xf]
          %v1419 = vld [vmem:[#allocation8 + $0x48] sm:$0xff]
          %v1420 = vld [vmem:[#allocation8 + $0x50] sm:$0xf]
          %v1421 = vld [vmem:[#allocation8 + $0x54] sm:$0xff]
          %v1422 = vld [vmem:[#allocation8 + $0x5c] sm:$0xf]
          %v1423 = vld [vmem:[#allocation8 + $0x60] sm:$0xff]
          %v1424 = vld [vmem:[#allocation8 + $0x68] sm:$0xf]
          %v1425 = vld [vmem:[#allocation8 + $0x6c] sm:$0xff]
          %v1426 = vld [vmem:[#allocation8 + $0x74] sm:$0xf]
          %v1427 = vld [vmem:[#allocation8 + $0x78] sm:$0xff]
          %v1428 = vld [vmem:[#allocation8 + $0x80] sm:$0xf]
          %v1429 = vld [vmem:[#allocation8 + $0x84] sm:$0xff]
          %v1430 = vld [vmem:[#allocation8 + $0x8c] sm:$0xf]
          %v1431 = vld [vmem:[#allocation8 + $0x90] sm:$0xff]
          %v1432 = vld [vmem:[#allocation8 + $0x98] sm:$0xf]
          %v1433 = vld [vmem:[#allocation8 + $0x9c] sm:$0xff]
          %v1434 = vld [vmem:[#allocation8 + $0xa4] sm:$0xf]
          %v1435 = vld [vmem:[#allocation8 + $0xa8] sm:$0xff]
          %v1436 = vld [vmem:[#allocation8 + $0xb0] sm:$0xf]
          %v1437 = vld [vmem:[#allocation8 + $0xb4] sm:$0xff]
          %v1438 = vld [vmem:[#allocation8 + $0xbc] sm:$0xf]
          %v1471 = vunpack.c.l.b16 %v1407
          %v1472 = vunpack.c.h.b16 %v1407
          %v1473 = vunpack.c.l.b16 %v1408
          %v1474 = vunpack.c.l.b16 %v1409
          %v1475 = vunpack.c.h.b16 %v1409
          %v1476 = vunpack.c.l.b16 %v1410
          %v1477 = vunpack.c.l.b16 %v1411
          %v1478 = vunpack.c.h.b16 %v1411
          %v1479 = vunpack.c.l.b16 %v1412
          %v1480 = vunpack.c.l.b16 %v1413
          %v1481 = vunpack.c.h.b16 %v1413
          %v1482 = vunpack.c.l.b16 %v1414
          %v1483 = vunpack.c.l.b16 %v1415
          %v1484 = vunpack.c.h.b16 %v1415
          %v1485 = vunpack.c.l.b16 %v1416
          %v1486 = vunpack.c.l.b16 %v1417
          %v1487 = vunpack.c.h.b16 %v1417
          %v1488 = vunpack.c.l.b16 %v1418
          %v1489 = vunpack.c.l.b16 %v1419
          %v1490 = vunpack.c.h.b16 %v1419
          %v1491 = vunpack.c.l.b16 %v1420
          %v1492 = vunpack.c.l.b16 %v1421
          %v1493 = vunpack.c.h.b16 %v1421
          %v1494 = vunpack.c.l.b16 %v1422
          %v1495 = vunpack.c.l.b16 %v1423
          %v1496 = vunpack.c.h.b16 %v1423
          %v1497 = vunpack.c.l.b16 %v1424
          %v1498 = vunpack.c.l.b16 %v1425
          %v1499 = vunpack.c.h.b16 %v1425
          %v1500 = vunpack.c.l.b16 %v1426
          %v1501 = vunpack.c.l.b16 %v1427
          %v1502 = vunpack.c.h.b16 %v1427
          %v1503 = vunpack.c.l.b16 %v1428
          %v1504 = vunpack.c.l.b16 %v1429
          %v1505 = vunpack.c.h.b16 %v1429
          %v1506 = vunpack.c.l.b16 %v1430
          %v1507 = vunpack.c.l.b16 %v1431
          %v1508 = vunpack.c.h.b16 %v1431
          %v1509 = vunpack.c.l.b16 %v1432
          %v1510 = vunpack.c.l.b16 %v1433
          %v1511 = vunpack.c.h.b16 %v1433
          %v1512 = vunpack.c.l.b16 %v1434
          %v1513 = vunpack.c.l.b16 %v1435
          %v1514 = vunpack.c.h.b16 %v1435
          %v1515 = vunpack.c.l.b16 %v1436
          %v1516 = vunpack.c.l.b16 %v1437
          %v1517 = vunpack.c.h.b16 %v1437
          %v1518 = vunpack.c.l.b16 %v1438
          %v1519 = vpack.c.b16 %v1474, %v1471
          %v1520 = vpack.c.b16 %v1475, %v1472
          %v1521 = vpack.c.b16 %v1476, %v1473
          %v1522 = vpack.c.b16 %v1480, %v1477
          %v1523 = vpack.c.b16 %v1481, %v1478
          %v1524 = vpack.c.b16 %v1482, %v1479
          %v1525 = vpack.c.b16 %v1486, %v1483
          %v1526 = vpack.c.b16 %v1487, %v1484
          %v1527 = vpack.c.b16 %v1488, %v1485
          %v1528 = vpack.c.b16 %v1492, %v1489
          %v1529 = vpack.c.b16 %v1493, %v1490
          %v1530 = vpack.c.b16 %v1494, %v1491
          %v1531 = vpack.c.b16 %v1498, %v1495
          %v1532 = vpack.c.b16 %v1499, %v1496
          %v1533 = vpack.c.b16 %v1500, %v1497
          %v1534 = vpack.c.b16 %v1504, %v1501
          %v1535 = vpack.c.b16 %v1505, %v1502
          %v1536 = vpack.c.b16 %v1506, %v1503
          %v1537 = vpack.c.b16 %v1510, %v1507
          %v1538 = vpack.c.b16 %v1511, %v1508
          %v1539 = vpack.c.b16 %v1512, %v1509
          %v1540 = vpack.c.b16 %v1516, %v1513
          %v1541 = vpack.c.b16 %v1517, %v1514
          %v1542 = vpack.c.b16 %v1518, %v1515
          %1567 = vmatprep.subr.bf16.mxu0 %v1541
          %1568 = vmatpush1.bf16.msra.mxu0 %v1540
          %1569 = vmatprep.subr.bf16.mxu0 %v1538
          %1570 = vmatpush1.bf16.msra.mxu0 %v1537
          %1571 = vmatprep.subr.bf16.mxu0 %v1535
          %1572 = vmatpush1.bf16.msra.mxu0 %v1534
          %1573 = vmatprep.subr.bf16.mxu0 %v1532
          %1574 = vmatpush1.bf16.msra.mxu0 %v1531
          %1575 = vmatprep.subr.bf16.mxu0 %v1529
          %1576 = vmatpush1.bf16.msra.mxu0 %v1528
          %1577 = vmatprep.subr.bf16.mxu0 %v1526
          %1578 = vmatpush1.bf16.msra.mxu0 %v1525
          %1579 = vmatprep.subr.bf16.mxu0 %v1523
          %1580 = vmatpush1.bf16.msra.mxu0 %v1522
          %1581 = vmatprep.subr.bf16.mxu0 %v1520
          %1582 = vmatpush1.bf16.msra.mxu0 %v1519
          %1583 = vmatprep.subr.bf16.mxu0 0
          %1584 = vmatpush2.bf16.msra.mxu0 0
          %1585 = vmatprep.subr.bf16.mxu0 0
          %1586 = vmatpush2.bf16.msra.mxu0 0
          %1587 = vmatprep.subr.bf16.mxu0 0
          %1588 = vmatpush2.bf16.msra.mxu0 0
          %1589 = vmatprep.subr.bf16.mxu0 0
          %1590 = vmatpush2.bf16.msra.mxu0 0
          %1591 = vmatprep.subr.bf16.mxu0 0
          %1592 = vmatpush2.bf16.msra.mxu0 0
          %1593 = vmatprep.subr.bf16.mxu0 0
          %1594 = vmatpush2.bf16.msra.mxu0 0
          %1595 = vmatprep.subr.bf16.mxu0 0
          %1596 = vmatpush2.bf16.msra.mxu0 0
          %1597 = vmatprep.subr.bf16.mxu0 0
          %1598 = vmatpush2.bf16.msra.mxu0 0
          %1599 = vmatprep.mubr.bf16.mxu0 0
          %1600 = vmatmul.mubr.bf16.gmra.mxu0 %v1405
          %v1601 = vpop.f32.mrf.mxu0
          %v1602 = vadd.f32 0.0, %v1601
          %v1603 = vpop.f32.mrf.mxu0
          %v1604 = vadd.f32 0.0, %v1603
          %v1605 = vpop.f32.mrf.mxu0
          %v1606 = vadd.f32 0.0, %v1605
          %v1607 = vpop.f32.mrf.mxu0
          %v1608 = vadd.f32 0.0, %v1607
          %1609 = vmatprep.mubr.bf16.mxu0 0
          %1610 = vmatmul.mubr.bf16.gmra.mxu0 %v1406
          %v1611 = vpop.f32.mrf.mxu0
          %v1612 = vadd.f32 0.0, %v1611
          %v1613 = vpop.f32.mrf.mxu0
          %v1614 = vadd.f32 0.0, %v1613
          %v1615 = vpop.f32.mrf.mxu0
          %v1616 = vpop.f32.mrf.mxu0
          %1617 = vdwg.mxu0
          %1618 = vmatprep.subr.bf16.mxu0 0
          %1619 = vmatpush1.bf16.msra.mxu0 %v1542
          %1620 = vmatprep.subr.bf16.mxu0 0
          %1621 = vmatpush1.bf16.msra.mxu0 %v1539
          %1622 = vmatprep.subr.bf16.mxu0 0
          %1623 = vmatpush1.bf16.msra.mxu0 %v1536
          %1624 = vmatprep.subr.bf16.mxu0 0
          %1625 = vmatpush1.bf16.msra.mxu0 %v1533
          %1626 = vmatprep.subr.bf16.mxu0 0
          %1627 = vmatpush1.bf16.msra.mxu0 %v1530
          %1628 = vmatprep.subr.bf16.mxu0 0
          %1629 = vmatpush1.bf16.msra.mxu0 %v1527
          %1630 = vmatprep.subr.bf16.mxu0 0
          %1631 = vmatpush1.bf16.msra.mxu0 %v1524
          %1632 = vmatprep.subr.bf16.mxu0 0
          %1633 = vmatpush1.bf16.msra.mxu0 %v1521
          %1634 = vmatprep.subr.bf16.mxu0 0
          %1635 = vmatpush2.bf16.msra.mxu0 0
          %1636 = vmatprep.subr.bf16.mxu0 0
          %1637 = vmatpush2.bf16.msra.mxu0 0
          %1638 = vmatprep.subr.bf16.mxu0 0
          %1639 = vmatpush2.bf16.msra.mxu0 0
          %1640 = vmatprep.subr.bf16.mxu0 0
          %1641 = vmatpush2.bf16.msra.mxu0 0
          %1642 = vmatprep.subr.bf16.mxu0 0
          %1643 = vmatpush2.bf16.msra.mxu0 0
          %1644 = vmatprep.subr.bf16.mxu0 0
          %1645 = vmatpush2.bf16.msra.mxu0 0
          %1646 = vmatprep.subr.bf16.mxu0 0
          %1647 = vmatpush2.bf16.msra.mxu0 0
          %1648 = vmatprep.subr.bf16.mxu0 0
          %1649 = vmatpush2.bf16.msra.mxu0 0
          %1650 = vmatprep.mubr.bf16.mxu0 0
          %1651 = vmatmul.mubr.bf16.gmra.mxu0 %v1405
          %v1652 = vpop.f32.mrf.mxu0
          %v1653 = vadd.f32 0.0, %v1652
          %v1654 = vpop.f32.mrf.mxu0
          %v1655 = vpop.f32.mrf.mxu0
          %v1656 = vadd.f32 0.0, %v1655
          %v1657 = vpop.f32.mrf.mxu0
          %1658 = vmatprep.mubr.bf16.mxu0 0
          %1659 = vmatmul.mubr.bf16.gmra.mxu0 %v1406
          %v1660 = vpop.f32.mrf.mxu0
          %v1661 = vadd.f32 0.0, %v1660
          %v1662 = vpop.f32.mrf.mxu0
          %v1663 = vpop.f32.mrf.mxu0
          %v1664 = vpop.f32.mrf.mxu0
          %1665 = vdwg.mxu0
          %v1666 = vadd.f32 %v1396, %v1602
          %v1667 = vadd.f32 %v1399, %v1606
          %v1668 = vadd.f32 %v1402, %v1612
          %v1669 = vmul.f32 %v1666, 0.5
          %v1670 = vmul.f32 %v1667, 0.5
          %v1671 = vmul.f32 %v1668, 0.5
          %v1672 = vtanh.pop %v1669
          %v1673 = vtanh.pop %v1670
          %v1674 = vtanh.pop %v1671
          %v1675 = vadd.f32 %v1672, 1.0
          %v1676 = vadd.f32 %v1673, 1.0
          %v1677 = vadd.f32 %v1674, 1.0
          %v1678 = vmul.f32 %v1675, 0.5
          %v1679 = vmul.f32 %v1676, 0.5
          %v1680 = vmul.f32 %v1677, 0.5
          %v1681 = vadd.f32 %v1397, %v1604
          %v1682 = vadd.f32 %v1400, %v1608
          %v1683 = vadd.f32 %v1403, %v1614
          %v1684 = vmul.f32 %v1681, 0.5
          %v1685 = vmul.f32 %v1682, 0.5
          %v1686 = vmul.f32 %v1683, 0.5
          %v1687 = vtanh.pop %v1684
          %v1688 = vtanh.pop %v1685
          %v1689 = vtanh.pop %v1686
          %v1690 = vadd.f32 %v1687, 1.0
          %v1691 = vadd.f32 %v1688, 1.0
          %v1692 = vadd.f32 %v1689, 1.0
          %v1693 = vmul.f32 %v1690, 0.5
          %v1694 = vmul.f32 %v1691, 0.5
          %v1695 = vmul.f32 %v1692, 0.5
          %v1697 = vlaneseq
          %v1698 = vshrl.u32 %v1697, 7
          %v1699 = vsub.s32 0, %v1698
          %v1700 = vrot.slane %v482, %v1699
          %v1702 = vadd.f32 %v1653, %v1700
          %v1703 = vadd.f32 %v1656, %v1700
          %v1704 = vadd.f32 %v1661, %v1700
          %v1705 = vmul.f32 %v1678, %v1702
          %v1706 = vmul.f32 %v1679, %v1703
          %v1707 = vmul.f32 %v1680, %v1704
          %v1708 = vadd.f32 %v1398, %v1705
          %v1709 = vadd.f32 %v1401, %v1706
          %v1710 = vadd.f32 %v1404, %v1707
          %v1711 = vtanh.pop %v1708
          %v1712 = vtanh.pop %v1709
          %v1713 = vtanh.pop %v1710
          %v1714 = vsub.f32 1.0, %v1693
          %v1715 = vsub.f32 1.0, %v1694
          %v1716 = vsub.f32 1.0, %v1695
          %v1717 = vmul.f32 %v1714, %v1711
          %v1718 = vmul.f32 %v1715, %v1712
          %v1719 = vmul.f32 %v1716, %v1713
          %v1720 = vmul.f32 %v1693, %v925
          %v1721 = vmul.f32 %v1694, %v926
          %v1722 = vmul.f32 %v1695, %v927
          %v1723 = vadd.f32 %v1717, %v1720
          %v1724 = vadd.f32 %v1718, %v1721
          %v1725 = vadd.f32 %v1719, %v1722
          %v1726 = vpack.c.bf16 %v1724, %v1723
          %v1727 = vpack.c.bf16 %v1725, %v1725
          %v1728 = vld [vmem:[#allocation9] sm:$0xff]
          %v1729 = vld [vmem:[#allocation9 + $0x8] sm:$0xf]
          %v1730 = vld [vmem:[#allocation9 + $0xc] sm:$0xff]
          %v1731 = vld [vmem:[#allocation9 + $0x14] sm:$0xf]
          %v1732 = vld [vmem:[#allocation9 + $0x18] sm:$0xff]
          %v1733 = vld [vmem:[#allocation9 + $0x20] sm:$0xf]
          %v1734 = vld [vmem:[#allocation9 + $0x24] sm:$0xff]
          %v1735 = vld [vmem:[#allocation9 + $0x2c] sm:$0xf]
          %v1736 = vld [vmem:[#allocation9 + $0x30] sm:$0xff]
          %v1737 = vld [vmem:[#allocation9 + $0x38] sm:$0xf]
          %v1738 = vld [vmem:[#allocation9 + $0x3c] sm:$0xff]
          %v1739 = vld [vmem:[#allocation9 + $0x44] sm:$0xf]
          %v1740 = vld [vmem:[#allocation9 + $0x48] sm:$0xff]
          %v1741 = vld [vmem:[#allocation9 + $0x50] sm:$0xf]
          %v1742 = vld [vmem:[#allocation9 + $0x54] sm:$0xff]
          %v1743 = vld [vmem:[#allocation9 + $0x5c] sm:$0xf]
          %v1744 = vld [vmem:[#allocation9 + $0x60] sm:$0xff]
          %v1745 = vld [vmem:[#allocation9 + $0x68] sm:$0xf]
          %v1746 = vld [vmem:[#allocation9 + $0x6c] sm:$0xff]
          %v1747 = vld [vmem:[#allocation9 + $0x74] sm:$0xf]
          %v1748 = vld [vmem:[#allocation9 + $0x78] sm:$0xff]
          %v1749 = vld [vmem:[#allocation9 + $0x80] sm:$0xf]
          %v1750 = vld [vmem:[#allocation9 + $0x84] sm:$0xff]
          %v1751 = vld [vmem:[#allocation9 + $0x8c] sm:$0xf]
          %v1752 = vld [vmem:[#allocation9 + $0x90] sm:$0xff]
          %v1753 = vld [vmem:[#allocation9 + $0x98] sm:$0xf]
          %v1754 = vld [vmem:[#allocation9 + $0x9c] sm:$0xff]
          %v1755 = vld [vmem:[#allocation9 + $0xa4] sm:$0xf]
          %v1756 = vld [vmem:[#allocation9 + $0xa8] sm:$0xff]
          %v1757 = vld [vmem:[#allocation9 + $0xb0] sm:$0xf]
          %v1758 = vld [vmem:[#allocation9 + $0xb4] sm:$0xff]
          %v1759 = vld [vmem:[#allocation9 + $0xbc] sm:$0xf]
          %v1761 = vlaneseq
          %v1762 = vshrl.u32 %v1761, 7
          %v1763 = vsub.s32 0, %v1762
          %v1764 = vrot.slane %v483, %v1763
          %v1765 = vlaneseq
          %v1766 = vshrl.u32 %v1765, 7
          %v1767 = vsub.s32 1, %v1766
          %v1768 = vrot.slane %v483, %v1767
          %v1769 = vlaneseq
          %v1770 = vshrl.u32 %v1769, 7
          %v1771 = vsub.s32 2, %v1770
          %v1772 = vrot.slane %v483, %v1771
          %v1808 = vunpack.c.l.b16 %v1728
          %v1809 = vunpack.c.h.b16 %v1728
          %v1810 = vunpack.c.l.b16 %v1729
          %v1811 = vunpack.c.l.b16 %v1730
          %v1812 = vunpack.c.h.b16 %v1730
          %v1813 = vunpack.c.l.b16 %v1731
          %v1814 = vunpack.c.l.b16 %v1732
          %v1815 = vunpack.c.h.b16 %v1732
          %v1816 = vunpack.c.l.b16 %v1733
          %v1817 = vunpack.c.l.b16 %v1734
          %v1818 = vunpack.c.h.b16 %v1734
          %v1819 = vunpack.c.l.b16 %v1735
          %v1820 = vunpack.c.l.b16 %v1736
          %v1821 = vunpack.c.h.b16 %v1736
          %v1822 = vunpack.c.l.b16 %v1737
          %v1823 = vunpack.c.l.b16 %v1738
          %v1824 = vunpack.c.h.b16 %v1738
          %v1825 = vunpack.c.l.b16 %v1739
          %v1826 = vunpack.c.l.b16 %v1740
          %v1827 = vunpack.c.h.b16 %v1740
          %v1828 = vunpack.c.l.b16 %v1741
          %v1829 = vunpack.c.l.b16 %v1742
          %v1830 = vunpack.c.h.b16 %v1742
          %v1831 = vunpack.c.l.b16 %v1743
          %v1832 = vunpack.c.l.b16 %v1744
          %v1833 = vunpack.c.h.b16 %v1744
          %v1834 = vunpack.c.l.b16 %v1745
          %v1835 = vunpack.c.l.b16 %v1746
          %v1836 = vunpack.c.h.b16 %v1746
          %v1837 = vunpack.c.l.b16 %v1747
          %v1838 = vunpack.c.l.b16 %v1748
          %v1839 = vunpack.c.h.b16 %v1748
          %v1840 = vunpack.c.l.b16 %v1749
          %v1841 = vunpack.c.l.b16 %v1750
          %v1842 = vunpack.c.h.b16 %v1750
          %v1843 = vunpack.c.l.b16 %v1751
          %v1844 = vunpack.c.l.b16 %v1752
          %v1845 = vunpack.c.h.b16 %v1752
          %v1846 = vunpack.c.l.b16 %v1753
          %v1847 = vunpack.c.l.b16 %v1754
          %v1848 = vunpack.c.h.b16 %v1754
          %v1849 = vunpack.c.l.b16 %v1755
          %v1850 = vunpack.c.l.b16 %v1756
          %v1851 = vunpack.c.h.b16 %v1756
          %v1852 = vunpack.c.l.b16 %v1757
          %v1853 = vunpack.c.l.b16 %v1758
          %v1854 = vunpack.c.h.b16 %v1758
          %v1855 = vunpack.c.l.b16 %v1759
          %v1856 = vpack.c.b16 %v1811, %v1808
          %v1857 = vpack.c.b16 %v1812, %v1809
          %v1858 = vpack.c.b16 %v1813, %v1810
          %v1859 = vpack.c.b16 %v1817, %v1814
          %v1860 = vpack.c.b16 %v1818, %v1815
          %v1861 = vpack.c.b16 %v1819, %v1816
          %v1862 = vpack.c.b16 %v1823, %v1820
          %v1863 = vpack.c.b16 %v1824, %v1821
          %v1864 = vpack.c.b16 %v1825, %v1822
          %v1865 = vpack.c.b16 %v1829, %v1826
          %v1866 = vpack.c.b16 %v1830, %v1827
          %v1867 = vpack.c.b16 %v1831, %v1828
          %v1868 = vpack.c.b16 %v1835, %v1832
          %v1869 = vpack.c.b16 %v1836, %v1833
          %v1870 = vpack.c.b16 %v1837, %v1834
          %v1871 = vpack.c.b16 %v1841, %v1838
          %v1872 = vpack.c.b16 %v1842, %v1839
          %v1873 = vpack.c.b16 %v1843, %v1840
          %v1874 = vpack.c.b16 %v1847, %v1844
          %v1875 = vpack.c.b16 %v1848, %v1845
          %v1876 = vpack.c.b16 %v1849, %v1846
          %v1877 = vpack.c.b16 %v1853, %v1850
          %v1878 = vpack.c.b16 %v1854, %v1851
          %v1879 = vpack.c.b16 %v1855, %v1852
          %1904 = vmatprep.subr.bf16.mxu0 %v1878
          %1905 = vmatpush1.bf16.msra.mxu0 %v1877
          %1906 = vmatprep.subr.bf16.mxu0 %v1875
          %1907 = vmatpush1.bf16.msra.mxu0 %v1874
          %1908 = vmatprep.subr.bf16.mxu0 %v1872
          %1909 = vmatpush1.bf16.msra.mxu0 %v1871
          %1910 = vmatprep.subr.bf16.mxu0 %v1869
          %1911 = vmatpush1.bf16.msra.mxu0 %v1868
          %1912 = vmatprep.subr.bf16.mxu0 %v1866
          %1913 = vmatpush1.bf16.msra.mxu0 %v1865
          %1914 = vmatprep.subr.bf16.mxu0 %v1863
          %1915 = vmatpush1.bf16.msra.mxu0 %v1862
          %1916 = vmatprep.subr.bf16.mxu0 %v1860
          %1917 = vmatpush1.bf16.msra.mxu0 %v1859
          %1918 = vmatprep.subr.bf16.mxu0 %v1857
          %1919 = vmatpush1.bf16.msra.mxu0 %v1856
          %1920 = vmatprep.subr.bf16.mxu0 0
          %1921 = vmatpush2.bf16.msra.mxu0 0
          %1922 = vmatprep.subr.bf16.mxu0 0
          %1923 = vmatpush2.bf16.msra.mxu0 0
          %1924 = vmatprep.subr.bf16.mxu0 0
          %1925 = vmatpush2.bf16.msra.mxu0 0
          %1926 = vmatprep.subr.bf16.mxu0 0
          %1927 = vmatpush2.bf16.msra.mxu0 0
          %1928 = vmatprep.subr.bf16.mxu0 0
          %1929 = vmatpush2.bf16.msra.mxu0 0
          %1930 = vmatprep.subr.bf16.mxu0 0
          %1931 = vmatpush2.bf16.msra.mxu0 0
          %1932 = vmatprep.subr.bf16.mxu0 0
          %1933 = vmatpush2.bf16.msra.mxu0 0
          %1934 = vmatprep.subr.bf16.mxu0 0
          %1935 = vmatpush2.bf16.msra.mxu0 0
          %1936 = vmatprep.mubr.bf16.mxu0 0
          %1937 = vmatmul.mubr.bf16.gmra.mxu0 %v1726
          %v1938 = vpop.f32.mrf.mxu0
          %v1939 = vadd.f32 %v1764, %v1938
          %v1940 = vpop.f32.mrf.mxu0
          %v1941 = vadd.f32 %v1768, %v1940
          %v1942 = vpop.f32.mrf.mxu0
          %v1943 = vadd.f32 %v1764, %v1942
          %v1944 = vpop.f32.mrf.mxu0
          %v1945 = vadd.f32 %v1768, %v1944
          %1946 = vmatprep.mubr.bf16.mxu0 0
          %1947 = vmatmul.mubr.bf16.gmra.mxu0 %v1727
          %v1948 = vpop.f32.mrf.mxu0
          %v1949 = vadd.f32 %v1764, %v1948
          %v1950 = vpop.f32.mrf.mxu0
          %v1951 = vadd.f32 %v1768, %v1950
          %v1952 = vpop.f32.mrf.mxu0
          %v1953 = vpop.f32.mrf.mxu0
          %1954 = vdwg.mxu0
          %1955 = vmatprep.subr.bf16.mxu0 0
          %1956 = vmatpush1.bf16.msra.mxu0 %v1879
          %1957 = vmatprep.subr.bf16.mxu0 0
          %1958 = vmatpush1.bf16.msra.mxu0 %v1876
          %1959 = vmatprep.subr.bf16.mxu0 0
          %1960 = vmatpush1.bf16.msra.mxu0 %v1873
          %1961 = vmatprep.subr.bf16.mxu0 0
          %1962 = vmatpush1.bf16.msra.mxu0 %v1870
          %1963 = vmatprep.subr.bf16.mxu0 0
          %1964 = vmatpush1.bf16.msra.mxu0 %v1867
          %1965 = vmatprep.subr.bf16.mxu0 0
          %1966 = vmatpush1.bf16.msra.mxu0 %v1864
          %1967 = vmatprep.subr.bf16.mxu0 0
          %1968 = vmatpush1.bf16.msra.mxu0 %v1861
          %1969 = vmatprep.subr.bf16.mxu0 0
          %1970 = vmatpush1.bf16.msra.mxu0 %v1858
          %1971 = vmatprep.subr.bf16.mxu0 0
          %1972 = vmatpush2.bf16.msra.mxu0 0
          %1973 = vmatprep.subr.bf16.mxu0 0
          %1974 = vmatpush2.bf16.msra.mxu0 0
          %1975 = vmatprep.subr.bf16.mxu0 0
          %1976 = vmatpush2.bf16.msra.mxu0 0
          %1977 = vmatprep.subr.bf16.mxu0 0
          %1978 = vmatpush2.bf16.msra.mxu0 0
          %1979 = vmatprep.subr.bf16.mxu0 0
          %1980 = vmatpush2.bf16.msra.mxu0 0
          %1981 = vmatprep.subr.bf16.mxu0 0
          %1982 = vmatpush2.bf16.msra.mxu0 0
          %1983 = vmatprep.subr.bf16.mxu0 0
          %1984 = vmatpush2.bf16.msra.mxu0 0
          %1985 = vmatprep.subr.bf16.mxu0 0
          %1986 = vmatpush2.bf16.msra.mxu0 0
          %1987 = vmatprep.mubr.bf16.mxu0 0
          %1988 = vmatmul.mubr.bf16.gmra.mxu0 %v1726
          %v1989 = vpop.f32.mrf.mxu0
          %v1990 = vadd.f32 %v1772, %v1989
          %v1991 = vpop.f32.mrf.mxu0
          %v1992 = vpop.f32.mrf.mxu0
          %v1993 = vadd.f32 %v1772, %v1992
          %v1994 = vpop.f32.mrf.mxu0
          %1995 = vmatprep.mubr.bf16.mxu0 0
          %1996 = vmatmul.mubr.bf16.gmra.mxu0 %v1727
          %v1997 = vpop.f32.mrf.mxu0
          %v1998 = vadd.f32 %v1772, %v1997
          %v1999 = vpop.f32.mrf.mxu0
          %v2000 = vpop.f32.mrf.mxu0
          %v2001 = vpop.f32.mrf.mxu0
          %2002 = vdwg.mxu0
          %v2003 = vpack.c.bf16 %v929, %v928
          %v2004 = vpack.c.bf16 %v930, %v930
          %v2005 = vld [vmem:[#allocation11] sm:$0xff]
          %v2006 = vld [vmem:[#allocation11 + $0x8] sm:$0xf]
          %v2007 = vld [vmem:[#allocation11 + $0xc] sm:$0xff]
          %v2008 = vld [vmem:[#allocation11 + $0x14] sm:$0xf]
          %v2009 = vld [vmem:[#allocation11 + $0x18] sm:$0xff]
          %v2010 = vld [vmem:[#allocation11 + $0x20] sm:$0xf]
          %v2011 = vld [vmem:[#allocation11 + $0x24] sm:$0xff]
          %v2012 = vld [vmem:[#allocation11 + $0x2c] sm:$0xf]
          %v2013 = vld [vmem:[#allocation11 + $0x30] sm:$0xff]
          %v2014 = vld [vmem:[#allocation11 + $0x38] sm:$0xf]
          %v2015 = vld [vmem:[#allocation11 + $0x3c] sm:$0xff]
          %v2016 = vld [vmem:[#allocation11 + $0x44] sm:$0xf]
          %v2017 = vld [vmem:[#allocation11 + $0x48] sm:$0xff]
          %v2018 = vld [vmem:[#allocation11 + $0x50] sm:$0xf]
          %v2019 = vld [vmem:[#allocation11 + $0x54] sm:$0xff]
          %v2020 = vld [vmem:[#allocation11 + $0x5c] sm:$0xf]
          %v2021 = vld [vmem:[#allocation11 + $0x60] sm:$0xff]
          %v2022 = vld [vmem:[#allocation11 + $0x68] sm:$0xf]
          %v2023 = vld [vmem:[#allocation11 + $0x6c] sm:$0xff]
          %v2024 = vld [vmem:[#allocation11 + $0x74] sm:$0xf]
          %v2025 = vld [vmem:[#allocation11 + $0x78] sm:$0xff]
          %v2026 = vld [vmem:[#allocation11 + $0x80] sm:$0xf]
          %v2027 = vld [vmem:[#allocation11 + $0x84] sm:$0xff]
          %v2028 = vld [vmem:[#allocation11 + $0x8c] sm:$0xf]
          %v2029 = vld [vmem:[#allocation11 + $0x90] sm:$0xff]
          %v2030 = vld [vmem:[#allocation11 + $0x98] sm:$0xf]
          %v2031 = vld [vmem:[#allocation11 + $0x9c] sm:$0xff]
          %v2032 = vld [vmem:[#allocation11 + $0xa4] sm:$0xf]
          %v2033 = vld [vmem:[#allocation11 + $0xa8] sm:$0xff]
          %v2034 = vld [vmem:[#allocation11 + $0xb0] sm:$0xf]
          %v2035 = vld [vmem:[#allocation11 + $0xb4] sm:$0xff]
          %v2036 = vld [vmem:[#allocation11 + $0xbc] sm:$0xf]
          %v2069 = vunpack.c.l.b16 %v2005
          %v2070 = vunpack.c.h.b16 %v2005
          %v2071 = vunpack.c.l.b16 %v2006
          %v2072 = vunpack.c.l.b16 %v2007
          %v2073 = vunpack.c.h.b16 %v2007
          %v2074 = vunpack.c.l.b16 %v2008
          %v2075 = vunpack.c.l.b16 %v2009
          %v2076 = vunpack.c.h.b16 %v2009
          %v2077 = vunpack.c.l.b16 %v2010
          %v2078 = vunpack.c.l.b16 %v2011
          %v2079 = vunpack.c.h.b16 %v2011
          %v2080 = vunpack.c.l.b16 %v2012
          %v2081 = vunpack.c.l.b16 %v2013
          %v2082 = vunpack.c.h.b16 %v2013
          %v2083 = vunpack.c.l.b16 %v2014
          %v2084 = vunpack.c.l.b16 %v2015
          %v2085 = vunpack.c.h.b16 %v2015
          %v2086 = vunpack.c.l.b16 %v2016
          %v2087 = vunpack.c.l.b16 %v2017
          %v2088 = vunpack.c.h.b16 %v2017
          %v2089 = vunpack.c.l.b16 %v2018
          %v2090 = vunpack.c.l.b16 %v2019
          %v2091 = vunpack.c.h.b16 %v2019
          %v2092 = vunpack.c.l.b16 %v2020
          %v2093 = vunpack.c.l.b16 %v2021
          %v2094 = vunpack.c.h.b16 %v2021
          %v2095 = vunpack.c.l.b16 %v2022
          %v2096 = vunpack.c.l.b16 %v2023
          %v2097 = vunpack.c.h.b16 %v2023
          %v2098 = vunpack.c.l.b16 %v2024
          %v2099 = vunpack.c.l.b16 %v2025
          %v2100 = vunpack.c.h.b16 %v2025
          %v2101 = vunpack.c.l.b16 %v2026
          %v2102 = vunpack.c.l.b16 %v2027
          %v2103 = vunpack.c.h.b16 %v2027
          %v2104 = vunpack.c.l.b16 %v2028
          %v2105 = vunpack.c.l.b16 %v2029
          %v2106 = vunpack.c.h.b16 %v2029
          %v2107 = vunpack.c.l.b16 %v2030
          %v2108 = vunpack.c.l.b16 %v2031
          %v2109 = vunpack.c.h.b16 %v2031
          %v2110 = vunpack.c.l.b16 %v2032
          %v2111 = vunpack.c.l.b16 %v2033
          %v2112 = vunpack.c.h.b16 %v2033
          %v2113 = vunpack.c.l.b16 %v2034
          %v2114 = vunpack.c.l.b16 %v2035
          %v2115 = vunpack.c.h.b16 %v2035
          %v2116 = vunpack.c.l.b16 %v2036
          %v2117 = vpack.c.b16 %v2072, %v2069
          %v2118 = vpack.c.b16 %v2073, %v2070
          %v2119 = vpack.c.b16 %v2074, %v2071
          %v2120 = vpack.c.b16 %v2078, %v2075
          %v2121 = vpack.c.b16 %v2079, %v2076
          %v2122 = vpack.c.b16 %v2080, %v2077
          %v2123 = vpack.c.b16 %v2084, %v2081
          %v2124 = vpack.c.b16 %v2085, %v2082
          %v2125 = vpack.c.b16 %v2086, %v2083
          %v2126 = vpack.c.b16 %v2090, %v2087
          %v2127 = vpack.c.b16 %v2091, %v2088
          %v2128 = vpack.c.b16 %v2092, %v2089
          %v2129 = vpack.c.b16 %v2096, %v2093
          %v2130 = vpack.c.b16 %v2097, %v2094
          %v2131 = vpack.c.b16 %v2098, %v2095
          %v2132 = vpack.c.b16 %v2102, %v2099
          %v2133 = vpack.c.b16 %v2103, %v2100
          %v2134 = vpack.c.b16 %v2104, %v2101
          %v2135 = vpack.c.b16 %v2108, %v2105
          %v2136 = vpack.c.b16 %v2109, %v2106
          %v2137 = vpack.c.b16 %v2110, %v2107
          %v2138 = vpack.c.b16 %v2114, %v2111
          %v2139 = vpack.c.b16 %v2115, %v2112
          %v2140 = vpack.c.b16 %v2116, %v2113
          %2165 = vmatprep.subr.bf16.mxu0 %v2139
          %2166 = vmatpush1.bf16.msra.mxu0 %v2138
          %2167 = vmatprep.subr.bf16.mxu0 %v2136
          %2168 = vmatpush1.bf16.msra.mxu0 %v2135
          %2169 = vmatprep.subr.bf16.mxu0 %v2133
          %2170 = vmatpush1.bf16.msra.mxu0 %v2132
          %2171 = vmatprep.subr.bf16.mxu0 %v2130
          %2172 = vmatpush1.bf16.msra.mxu0 %v2129
          %2173 = vmatprep.subr.bf16.mxu0 %v2127
          %2174 = vmatpush1.bf16.msra.mxu0 %v2126
          %2175 = vmatprep.subr.bf16.mxu0 %v2124
          %2176 = vmatpush1.bf16.msra.mxu0 %v2123
          %2177 = vmatprep.subr.bf16.mxu0 %v2121
          %2178 = vmatpush1.bf16.msra.mxu0 %v2120
          %2179 = vmatprep.subr.bf16.mxu0 %v2118
          %2180 = vmatpush1.bf16.msra.mxu0 %v2117
          %2181 = vmatprep.subr.bf16.mxu0 0
          %2182 = vmatpush2.bf16.msra.mxu0 0
          %2183 = vmatprep.subr.bf16.mxu0 0
          %2184 = vmatpush2.bf16.msra.mxu0 0
          %2185 = vmatprep.subr.bf16.mxu0 0
          %2186 = vmatpush2.bf16.msra.mxu0 0
          %2187 = vmatprep.subr.bf16.mxu0 0
          %2188 = vmatpush2.bf16.msra.mxu0 0
          %2189 = vmatprep.subr.bf16.mxu0 0
          %2190 = vmatpush2.bf16.msra.mxu0 0
          %2191 = vmatprep.subr.bf16.mxu0 0
          %2192 = vmatpush2.bf16.msra.mxu0 0
          %2193 = vmatprep.subr.bf16.mxu0 0
          %2194 = vmatpush2.bf16.msra.mxu0 0
          %2195 = vmatprep.subr.bf16.mxu0 0
          %2196 = vmatpush2.bf16.msra.mxu0 0
          %2197 = vmatprep.mubr.bf16.mxu0 0
          %2198 = vmatmul.mubr.bf16.gmra.mxu0 %v2003
          %v2199 = vpop.f32.mrf.mxu0
          %v2200 = vadd.f32 0.0, %v2199
          %v2201 = vpop.f32.mrf.mxu0
          %v2202 = vadd.f32 0.0, %v2201
          %v2203 = vpop.f32.mrf.mxu0
          %v2204 = vadd.f32 0.0, %v2203
          %v2205 = vpop.f32.mrf.mxu0
          %v2206 = vadd.f32 0.0, %v2205
          %2207 = vmatprep.mubr.bf16.mxu0 0
          %2208 = vmatmul.mubr.bf16.gmra.mxu0 %v2004
          %v2209 = vpop.f32.mrf.mxu0
          %v2210 = vadd.f32 0.0, %v2209
          %v2211 = vpop.f32.mrf.mxu0
          %v2212 = vadd.f32 0.0, %v2211
          %v2213 = vpop.f32.mrf.mxu0
          %v2214 = vpop.f32.mrf.mxu0
          %2215 = vdwg.mxu0
          %2216 = vmatprep.subr.bf16.mxu0 0
          %2217 = vmatpush1.bf16.msra.mxu0 %v2140
          %2218 = vmatprep.subr.bf16.mxu0 0
          %2219 = vmatpush1.bf16.msra.mxu0 %v2137
          %2220 = vmatprep.subr.bf16.mxu0 0
          %2221 = vmatpush1.bf16.msra.mxu0 %v2134
          %2222 = vmatprep.subr.bf16.mxu0 0
          %2223 = vmatpush1.bf16.msra.mxu0 %v2131
          %2224 = vmatprep.subr.bf16.mxu0 0
          %2225 = vmatpush1.bf16.msra.mxu0 %v2128
          %2226 = vmatprep.subr.bf16.mxu0 0
          %2227 = vmatpush1.bf16.msra.mxu0 %v2125
          %2228 = vmatprep.subr.bf16.mxu0 0
          %2229 = vmatpush1.bf16.msra.mxu0 %v2122
          %2230 = vmatprep.subr.bf16.mxu0 0
          %2231 = vmatpush1.bf16.msra.mxu0 %v2119
          %2232 = vmatprep.subr.bf16.mxu0 0
          %2233 = vmatpush2.bf16.msra.mxu0 0
          %2234 = vmatprep.subr.bf16.mxu0 0
          %2235 = vmatpush2.bf16.msra.mxu0 0
          %2236 = vmatprep.subr.bf16.mxu0 0
          %2237 = vmatpush2.bf16.msra.mxu0 0
          %2238 = vmatprep.subr.bf16.mxu0 0
          %2239 = vmatpush2.bf16.msra.mxu0 0
          %2240 = vmatprep.subr.bf16.mxu0 0
          %2241 = vmatpush2.bf16.msra.mxu0 0
          %2242 = vmatprep.subr.bf16.mxu0 0
          %2243 = vmatpush2.bf16.msra.mxu0 0
          %2244 = vmatprep.subr.bf16.mxu0 0
          %2245 = vmatpush2.bf16.msra.mxu0 0
          %2246 = vmatprep.subr.bf16.mxu0 0
          %2247 = vmatpush2.bf16.msra.mxu0 0
          %2248 = vmatprep.mubr.bf16.mxu0 0
          %2249 = vmatmul.mubr.bf16.gmra.mxu0 %v2003
          %v2250 = vpop.f32.mrf.mxu0
          %v2251 = vadd.f32 0.0, %v2250
          %v2252 = vpop.f32.mrf.mxu0
          %v2253 = vpop.f32.mrf.mxu0
          %v2254 = vadd.f32 0.0, %v2253
          %v2255 = vpop.f32.mrf.mxu0
          %2256 = vmatprep.mubr.bf16.mxu0 0
          %2257 = vmatmul.mubr.bf16.gmra.mxu0 %v2004
          %v2258 = vpop.f32.mrf.mxu0
          %v2259 = vadd.f32 0.0, %v2258
          %v2260 = vpop.f32.mrf.mxu0
          %v2261 = vpop.f32.mrf.mxu0
          %v2262 = vpop.f32.mrf.mxu0
          %2263 = vdwg.mxu0
          %v2264 = vadd.f32 %v1939, %v2200
          %v2265 = vadd.f32 %v1943, %v2204
          %v2266 = vadd.f32 %v1949, %v2210
          %v2267 = vmul.f32 %v2264, 0.5
          %v2268 = vmul.f32 %v2265, 0.5
          %v2269 = vmul.f32 %v2266, 0.5
          %v2270 = vtanh.pop %v2267
          %v2271 = vtanh.pop %v2268
          %v2272 = vtanh.pop %v2269
          %v2273 = vadd.f32 %v2270, 1.0
          %v2274 = vadd.f32 %v2271, 1.0
          %v2275 = vadd.f32 %v2272, 1.0
          %v2276 = vmul.f32 %v2273, 0.5
          %v2277 = vmul.f32 %v2274, 0.5
          %v2278 = vmul.f32 %v2275, 0.5
          %v2279 = vadd.f32 %v1941, %v2202
          %v2280 = vadd.f32 %v1945, %v2206
          %v2281 = vadd.f32 %v1951, %v2212
          %v2282 = vmul.f32 %v2279, 0.5
          %v2283 = vmul.f32 %v2280, 0.5
          %v2284 = vmul.f32 %v2281, 0.5
          %v2285 = vtanh.pop %v2282
          %v2286 = vtanh.pop %v2283
          %v2287 = vtanh.pop %v2284
          %v2288 = vadd.f32 %v2285, 1.0
          %v2289 = vadd.f32 %v2286, 1.0
          %v2290 = vadd.f32 %v2287, 1.0
          %v2291 = vmul.f32 %v2288, 0.5
          %v2292 = vmul.f32 %v2289, 0.5
          %v2293 = vmul.f32 %v2290, 0.5
          %v2295 = vlaneseq
          %v2296 = vshrl.u32 %v2295, 7
          %v2297 = vsub.s32 0, %v2296
          %v2298 = vrot.slane %v484, %v2297
          %v2300 = vadd.f32 %v2251, %v2298
          %v2301 = vadd.f32 %v2254, %v2298
          %v2302 = vadd.f32 %v2259, %v2298
          %v2303 = vmul.f32 %v2276, %v2300
          %v2304 = vmul.f32 %v2277, %v2301
          %v2305 = vmul.f32 %v2278, %v2302
          %v2306 = vadd.f32 %v1990, %v2303
          %v2307 = vadd.f32 %v1993, %v2304
          %v2308 = vadd.f32 %v1998, %v2305
          %v2309 = vtanh.pop %v2306
          %v2310 = vtanh.pop %v2307
          %v2311 = vtanh.pop %v2308
          %v2312 = vsub.f32 1.0, %v2291
          %v2313 = vsub.f32 1.0, %v2292
          %v2314 = vsub.f32 1.0, %v2293
          %v2315 = vmul.f32 %v2312, %v2309
          %v2316 = vmul.f32 %v2313, %v2310
          %v2317 = vmul.f32 %v2314, %v2311
          %v2318 = vmul.f32 %v2291, %v928
          %v2319 = vmul.f32 %v2292, %v929
          %v2320 = vmul.f32 %v2293, %v930
          %v2321 = vadd.f32 %v2315, %v2318
          %v2322 = vadd.f32 %v2316, %v2319
          %v2323 = vadd.f32 %v2317, %v2320
          %s2324 = sadd.s32 %s1390, 24
          %s2325 = sshra.s32 %s2324, 3
          %s2326 = sand.u32 %s2324, 7
          %s2327 = smul.u32 %s2325, 3
          %s2328 = smul.addr %s2327, 8
          %s2329 = scalar_lea.vmem [#allocation2], %s2328
          %v2330 = vld [vmem:[%s2329] sm:$0xff]
          %v2331 = vld [vmem:[%s2329 + $0x8] sm:$0xff]
          %v2332 = vld [vmem:[%s2329 + $0x10] sm:$0xff]
          %v2333 = vld [vmem:[%s2329 + $0x18] sm:$0xff]
          %v2334 = vld [vmem:[%s2329 + $0x20] sm:$0xff]
          %v2335 = vld [vmem:[%s2329 + $0x28] sm:$0xff]
          %v2336 = vld [vmem:[%s2329 + $0x30] sm:$0xff]
          %v2337 = vld [vmem:[%s2329 + $0x38] sm:$0xff]
          %v2338 = vld [vmem:[%s2329 + $0x40] sm:$0xff]
          %2339 = vmatprep.subr.bf16.mxu0 %v1541
          %2340 = vmatpush1.bf16.msra.mxu0 %v1540
          %2341 = vmatprep.subr.bf16.mxu0 %v1538
          %2342 = vmatpush1.bf16.msra.mxu0 %v1537
          %2343 = vmatprep.subr.bf16.mxu0 %v1535
          %2344 = vmatpush1.bf16.msra.mxu0 %v1534
          %2345 = vmatprep.subr.bf16.mxu0 %v1532
          %2346 = vmatpush1.bf16.msra.mxu0 %v1531
          %2347 = vmatprep.subr.bf16.mxu0 %v1529
          %2348 = vmatpush1.bf16.msra.mxu0 %v1528
          %2349 = vmatprep.subr.bf16.mxu0 %v1526
          %2350 = vmatpush1.bf16.msra.mxu0 %v1525
          %2351 = vmatprep.subr.bf16.mxu0 %v1523
          %2352 = vmatpush1.bf16.msra.mxu0 %v1522
          %2353 = vmatprep.subr.bf16.mxu0 %v1520
          %2354 = vmatpush1.bf16.msra.mxu0 %v1519
          %2355 = vmatprep.subr.bf16.mxu0 0
          %2356 = vmatpush2.bf16.msra.mxu0 0
          %2357 = vmatprep.subr.bf16.mxu0 0
          %2358 = vmatpush2.bf16.msra.mxu0 0
          %2359 = vmatprep.subr.bf16.mxu0 0
          %2360 = vmatpush2.bf16.msra.mxu0 0
          %2361 = vmatprep.subr.bf16.mxu0 0
          %2362 = vmatpush2.bf16.msra.mxu0 0
          %2363 = vmatprep.subr.bf16.mxu0 0
          %2364 = vmatpush2.bf16.msra.mxu0 0
          %2365 = vmatprep.subr.bf16.mxu0 0
          %2366 = vmatpush2.bf16.msra.mxu0 0
          %2367 = vmatprep.subr.bf16.mxu0 0
          %2368 = vmatpush2.bf16.msra.mxu0 0
          %2369 = vmatprep.subr.bf16.mxu0 0
          %2370 = vmatpush2.bf16.msra.mxu0 0
          %2371 = vmatprep.mubr.bf16.mxu0 0
          %2372 = vmatmul.mubr.bf16.gmra.mxu0 %v1726
          %v2373 = vpop.f32.mrf.mxu0
          %v2374 = vadd.f32 0.0, %v2373
          %v2375 = vpop.f32.mrf.mxu0
          %v2376 = vadd.f32 0.0, %v2375
          %v2377 = vpop.f32.mrf.mxu0
          %v2378 = vadd.f32 0.0, %v2377
          %v2379 = vpop.f32.mrf.mxu0
          %v2380 = vadd.f32 0.0, %v2379
          %2381 = vmatprep.mubr.bf16.mxu0 0
          %2382 = vmatmul.mubr.bf16.gmra.mxu0 %v1727
          %v2383 = vpop.f32.mrf.mxu0
          %v2384 = vadd.f32 0.0, %v2383
          %v2385 = vpop.f32.mrf.mxu0
          %v2386 = vadd.f32 0.0, %v2385
          %v2387 = vpop.f32.mrf.mxu0
          %v2388 = vpop.f32.mrf.mxu0
          %2389 = vdwg.mxu0
          %2390 = vmatprep.subr.bf16.mxu0 0
          %2391 = vmatpush1.bf16.msra.mxu0 %v1542
          %2392 = vmatprep.subr.bf16.mxu0 0
          %2393 = vmatpush1.bf16.msra.mxu0 %v1539
          %2394 = vmatprep.subr.bf16.mxu0 0
          %2395 = vmatpush1.bf16.msra.mxu0 %v1536
          %2396 = vmatprep.subr.bf16.mxu0 0
          %2397 = vmatpush1.bf16.msra.mxu0 %v1533
          %2398 = vmatprep.subr.bf16.mxu0 0
          %2399 = vmatpush1.bf16.msra.mxu0 %v1530
          %2400 = vmatprep.subr.bf16.mxu0 0
          %2401 = vmatpush1.bf16.msra.mxu0 %v1527
          %2402 = vmatprep.subr.bf16.mxu0 0
          %2403 = vmatpush1.bf16.msra.mxu0 %v1524
          %2404 = vmatprep.subr.bf16.mxu0 0
          %2405 = vmatpush1.bf16.msra.mxu0 %v1521
          %2406 = vmatprep.subr.bf16.mxu0 0
          %2407 = vmatpush2.bf16.msra.mxu0 0
          %2408 = vmatprep.subr.bf16.mxu0 0
          %2409 = vmatpush2.bf16.msra.mxu0 0
          %2410 = vmatprep.subr.bf16.mxu0 0
          %2411 = vmatpush2.bf16.msra.mxu0 0
          %2412 = vmatprep.subr.bf16.mxu0 0
          %2413 = vmatpush2.bf16.msra.mxu0 0
          %2414 = vmatprep.subr.bf16.mxu0 0
          %2415 = vmatpush2.bf16.msra.mxu0 0
          %2416 = vmatprep.subr.bf16.mxu0 0
          %2417 = vmatpush2.bf16.msra.mxu0 0
          %2418 = vmatprep.subr.bf16.mxu0 0
          %2419 = vmatpush2.bf16.msra.mxu0 0
          %2420 = vmatprep.subr.bf16.mxu0 0
          %2421 = vmatpush2.bf16.msra.mxu0 0
          %2422 = vmatprep.mubr.bf16.mxu0 0
          %2423 = vmatmul.mubr.bf16.gmra.mxu0 %v1726
          %v2424 = vpop.f32.mrf.mxu0
          %v2425 = vadd.f32 0.0, %v2424
          %v2426 = vpop.f32.mrf.mxu0
          %v2427 = vpop.f32.mrf.mxu0
          %v2428 = vadd.f32 0.0, %v2427
          %v2429 = vpop.f32.mrf.mxu0
          %2430 = vmatprep.mubr.bf16.mxu0 0
          %2431 = vmatmul.mubr.bf16.gmra.mxu0 %v1727
          %v2432 = vpop.f32.mrf.mxu0
          %v2433 = vadd.f32 0.0, %v2432
          %v2434 = vpop.f32.mrf.mxu0
          %v2435 = vpop.f32.mrf.mxu0
          %v2436 = vpop.f32.mrf.mxu0
          %2437 = vdwg.mxu0
          %v2438 = vadd.f32 %v2330, %v2374
          %v2439 = vadd.f32 %v2333, %v2378
          %v2440 = vadd.f32 %v2336, %v2384
          %v2441 = vmul.f32 %v2438, 0.5
          %v2442 = vmul.f32 %v2439, 0.5
          %v2443 = vmul.f32 %v2440, 0.5
          %v2444 = vtanh.pop %v2441
          %v2445 = vtanh.pop %v2442
          %v2446 = vtanh.pop %v2443
          %v2447 = vadd.f32 %v2444, 1.0
          %v2448 = vadd.f32 %v2445, 1.0
          %v2449 = vadd.f32 %v2446, 1.0
          %v2450 = vmul.f32 %v2447, 0.5
          %v2451 = vmul.f32 %v2448, 0.5
          %v2452 = vmul.f32 %v2449, 0.5
          %v2453 = vadd.f32 %v2331, %v2376
          %v2454 = vadd.f32 %v2334, %v2380
          %v2455 = vadd.f32 %v2337, %v2386
          %v2456 = vmul.f32 %v2453, 0.5
          %v2457 = vmul.f32 %v2454, 0.5
          %v2458 = vmul.f32 %v2455, 0.5
          %v2459 = vtanh.pop %v2456
          %v2460 = vtanh.pop %v2457
          %v2461 = vtanh.pop %v2458
          %v2462 = vadd.f32 %v2459, 1.0
          %v2463 = vadd.f32 %v2460, 1.0
          %v2464 = vadd.f32 %v2461, 1.0
          %v2465 = vmul.f32 %v2462, 0.5
          %v2466 = vmul.f32 %v2463, 0.5
          %v2467 = vmul.f32 %v2464, 0.5
          %v2468 = vadd.f32 %v2425, %v1700
          %v2469 = vadd.f32 %v2428, %v1700
          %v2470 = vadd.f32 %v2433, %v1700
          %v2471 = vmul.f32 %v2450, %v2468
          %v2472 = vmul.f32 %v2451, %v2469
          %v2473 = vmul.f32 %v2452, %v2470
          %v2474 = vadd.f32 %v2332, %v2471
          %v2475 = vadd.f32 %v2335, %v2472
          %v2476 = vadd.f32 %v2338, %v2473
          %v2477 = vtanh.pop %v2474
          %v2478 = vtanh.pop %v2475
          %v2479 = vtanh.pop %v2476
          %v2480 = vsub.f32 1.0, %v2465
          %v2481 = vsub.f32 1.0, %v2466
          %v2482 = vsub.f32 1.0, %v2467
          %v2483 = vmul.f32 %v2480, %v2477
          %v2484 = vmul.f32 %v2481, %v2478
          %v2485 = vmul.f32 %v2482, %v2479
          %v2486 = vmul.f32 %v2465, %v1723
          %v2487 = vmul.f32 %v2466, %v1724
          %v2488 = vmul.f32 %v2467, %v1725
          %v2489 = vadd.f32 %v2483, %v2486
          %v2490 = vadd.f32 %v2484, %v2487
          %v2491 = vadd.f32 %v2485, %v2488
          %v2492 = vpack.c.bf16 %v2490, %v2489
          %v2493 = vpack.c.bf16 %v2491, %v2491
          %2494 = vmatprep.subr.bf16.mxu0 %v1878
          %2495 = vmatpush1.bf16.msra.mxu0 %v1877
          %2496 = vmatprep.subr.bf16.mxu0 %v1875
          %2497 = vmatpush1.bf16.msra.mxu0 %v1874
          %2498 = vmatprep.subr.bf16.mxu0 %v1872
          %2499 = vmatpush1.bf16.msra.mxu0 %v1871
          %2500 = vmatprep.subr.bf16.mxu0 %v1869
          %2501 = vmatpush1.bf16.msra.mxu0 %v1868
          %2502 = vmatprep.subr.bf16.mxu0 %v1866
          %2503 = vmatpush1.bf16.msra.mxu0 %v1865
          %2504 = vmatprep.subr.bf16.mxu0 %v1863
          %2505 = vmatpush1.bf16.msra.mxu0 %v1862
          %2506 = vmatprep.subr.bf16.mxu0 %v1860
          %2507 = vmatpush1.bf16.msra.mxu0 %v1859
          %2508 = vmatprep.subr.bf16.mxu0 %v1857
          %2509 = vmatpush1.bf16.msra.mxu0 %v1856
          %2510 = vmatprep.subr.bf16.mxu0 0
          %2511 = vmatpush2.bf16.msra.mxu0 0
          %2512 = vmatprep.subr.bf16.mxu0 0
          %2513 = vmatpush2.bf16.msra.mxu0 0
          %2514 = vmatprep.subr.bf16.mxu0 0
          %2515 = vmatpush2.bf16.msra.mxu0 0
          %2516 = vmatprep.subr.bf16.mxu0 0
          %2517 = vmatpush2.bf16.msra.mxu0 0
          %2518 = vmatprep.subr.bf16.mxu0 0
          %2519 = vmatpush2.bf16.msra.mxu0 0
          %2520 = vmatprep.subr.bf16.mxu0 0
          %2521 = vmatpush2.bf16.msra.mxu0 0
          %2522 = vmatprep.subr.bf16.mxu0 0
          %2523 = vmatpush2.bf16.msra.mxu0 0
          %2524 = vmatprep.subr.bf16.mxu0 0
          %2525 = vmatpush2.bf16.msra.mxu0 0
          %2526 = vmatprep.mubr.bf16.mxu0 0
          %2527 = vmatmul.mubr.bf16.gmra.mxu0 %v2492
          %v2528 = vpop.f32.mrf.mxu0
          %v2529 = vadd.f32 %v1764, %v2528
          %v2530 = vpop.f32.mrf.mxu0
          %v2531 = vadd.f32 %v1768, %v2530
          %v2532 = vpop.f32.mrf.mxu0
          %v2533 = vadd.f32 %v1764, %v2532
          %v2534 = vpop.f32.mrf.mxu0
          %v2535 = vadd.f32 %v1768, %v2534
          %2536 = vmatprep.mubr.bf16.mxu0 0
          %2537 = vmatmul.mubr.bf16.gmra.mxu0 %v2493
          %v2538 = vpop.f32.mrf.mxu0
          %v2539 = vadd.f32 %v1764, %v2538
          %v2540 = vpop.f32.mrf.mxu0
          %v2541 = vadd.f32 %v1768, %v2540
          %v2542 = vpop.f32.mrf.mxu0
          %v2543 = vpop.f32.mrf.mxu0
          %2544 = vdwg.mxu0
          %2545 = vmatprep.subr.bf16.mxu0 0
          %2546 = vmatpush1.bf16.msra.mxu0 %v1879
          %2547 = vmatprep.subr.bf16.mxu0 0
          %2548 = vmatpush1.bf16.msra.mxu0 %v1876
          %2549 = vmatprep.subr.bf16.mxu0 0
          %2550 = vmatpush1.bf16.msra.mxu0 %v1873
          %2551 = vmatprep.subr.bf16.mxu0 0
          %2552 = vmatpush1.bf16.msra.mxu0 %v1870
          %2553 = vmatprep.subr.bf16.mxu0 0
          %2554 = vmatpush1.bf16.msra.mxu0 %v1867
          %2555 = vmatprep.subr.bf16.mxu0 0
          %2556 = vmatpush1.bf16.msra.mxu0 %v1864
          %2557 = vmatprep.subr.bf16.mxu0 0
          %2558 = vmatpush1.bf16.msra.mxu0 %v1861
          %2559 = vmatprep.subr.bf16.mxu0 0
          %2560 = vmatpush1.bf16.msra.mxu0 %v1858
          %2561 = vmatprep.subr.bf16.mxu0 0
          %2562 = vmatpush2.bf16.msra.mxu0 0
          %2563 = vmatprep.subr.bf16.mxu0 0
          %2564 = vmatpush2.bf16.msra.mxu0 0
          %2565 = vmatprep.subr.bf16.mxu0 0
          %2566 = vmatpush2.bf16.msra.mxu0 0
          %2567 = vmatprep.subr.bf16.mxu0 0
          %2568 = vmatpush2.bf16.msra.mxu0 0
          %2569 = vmatprep.subr.bf16.mxu0 0
          %2570 = vmatpush2.bf16.msra.mxu0 0
          %2571 = vmatprep.subr.bf16.mxu0 0
          %2572 = vmatpush2.bf16.msra.mxu0 0
          %2573 = vmatprep.subr.bf16.mxu0 0
          %2574 = vmatpush2.bf16.msra.mxu0 0
          %2575 = vmatprep.subr.bf16.mxu0 0
          %2576 = vmatpush2.bf16.msra.mxu0 0
          %2577 = vmatprep.mubr.bf16.mxu0 0
          %2578 = vmatmul.mubr.bf16.gmra.mxu0 %v2492
          %v2579 = vpop.f32.mrf.mxu0
          %v2580 = vadd.f32 %v1772, %v2579
          %v2581 = vpop.f32.mrf.mxu0
          %v2582 = vpop.f32.mrf.mxu0
          %v2583 = vadd.f32 %v1772, %v2582
          %v2584 = vpop.f32.mrf.mxu0
          %2585 = vmatprep.mubr.bf16.mxu0 0
          %2586 = vmatmul.mubr.bf16.gmra.mxu0 %v2493
          %v2587 = vpop.f32.mrf.mxu0
          %v2588 = vadd.f32 %v1772, %v2587
          %v2589 = vpop.f32.mrf.mxu0
          %v2590 = vpop.f32.mrf.mxu0
          %v2591 = vpop.f32.mrf.mxu0
          %2592 = vdwg.mxu0
          %v2593 = vpack.c.bf16 %v2322, %v2321
          %v2594 = vpack.c.bf16 %v2323, %v2323
          %2595 = vmatprep.subr.bf16.mxu0 %v2139
          %2596 = vmatpush1.bf16.msra.mxu0 %v2138
          %2597 = vmatprep.subr.bf16.mxu0 %v2136
          %2598 = vmatpush1.bf16.msra.mxu0 %v2135
          %2599 = vmatprep.subr.bf16.mxu0 %v2133
          %2600 = vmatpush1.bf16.msra.mxu0 %v2132
          %2601 = vmatprep.subr.bf16.mxu0 %v2130
          %2602 = vmatpush1.bf16.msra.mxu0 %v2129
          %2603 = vmatprep.subr.bf16.mxu0 %v2127
          %2604 = vmatpush1.bf16.msra.mxu0 %v2126
          %2605 = vmatprep.subr.bf16.mxu0 %v2124
          %2606 = vmatpush1.bf16.msra.mxu0 %v2123
          %2607 = vmatprep.subr.bf16.mxu0 %v2121
          %2608 = vmatpush1.bf16.msra.mxu0 %v2120
          %2609 = vmatprep.subr.bf16.mxu0 %v2118
          %2610 = vmatpush1.bf16.msra.mxu0 %v2117
          %2611 = vmatprep.subr.bf16.mxu0 0
          %2612 = vmatpush2.bf16.msra.mxu0 0
          %2613 = vmatprep.subr.bf16.mxu0 0
          %2614 = vmatpush2.bf16.msra.mxu0 0
          %2615 = vmatprep.subr.bf16.mxu0 0
          %2616 = vmatpush2.bf16.msra.mxu0 0
          %2617 = vmatprep.subr.bf16.mxu0 0
          %2618 = vmatpush2.bf16.msra.mxu0 0
          %2619 = vmatprep.subr.bf16.mxu0 0
          %2620 = vmatpush2.bf16.msra.mxu0 0
          %2621 = vmatprep.subr.bf16.mxu0 0
          %2622 = vmatpush2.bf16.msra.mxu0 0
          %2623 = vmatprep.subr.bf16.mxu0 0
          %2624 = vmatpush2.bf16.msra.mxu0 0
          %2625 = vmatprep.subr.bf16.mxu0 0
          %2626 = vmatpush2.bf16.msra.mxu0 0
          %2627 = vmatprep.mubr.bf16.mxu0 0
          %2628 = vmatmul.mubr.bf16.gmra.mxu0 %v2593
          %v2629 = vpop.f32.mrf.mxu0
          %v2630 = vadd.f32 0.0, %v2629
          %v2631 = vpop.f32.mrf.mxu0
          %v2632 = vadd.f32 0.0, %v2631
          %v2633 = vpop.f32.mrf.mxu0
          %v2634 = vadd.f32 0.0, %v2633
          %v2635 = vpop.f32.mrf.mxu0
          %v2636 = vadd.f32 0.0, %v2635
          %2637 = vmatprep.mubr.bf16.mxu0 0
          %2638 = vmatmul.mubr.bf16.gmra.mxu0 %v2594
          %v2639 = vpop.f32.mrf.mxu0
          %v2640 = vadd.f32 0.0, %v2639
          %v2641 = vpop.f32.mrf.mxu0
          %v2642 = vadd.f32 0.0, %v2641
          %v2643 = vpop.f32.mrf.mxu0
          %v2644 = vpop.f32.mrf.mxu0
          %2645 = vdwg.mxu0
          %2646 = vmatprep.subr.bf16.mxu0 0
          %2647 = vmatpush1.bf16.msra.mxu0 %v2140
          %2648 = vmatprep.subr.bf16.mxu0 0
          %2649 = vmatpush1.bf16.msra.mxu0 %v2137
          %2650 = vmatprep.subr.bf16.mxu0 0
          %2651 = vmatpush1.bf16.msra.mxu0 %v2134
          %2652 = vmatprep.subr.bf16.mxu0 0
          %2653 = vmatpush1.bf16.msra.mxu0 %v2131
          %2654 = vmatprep.subr.bf16.mxu0 0
          %2655 = vmatpush1.bf16.msra.mxu0 %v2128
          %2656 = vmatprep.subr.bf16.mxu0 0
          %2657 = vmatpush1.bf16.msra.mxu0 %v2125
          %2658 = vmatprep.subr.bf16.mxu0 0
          %2659 = vmatpush1.bf16.msra.mxu0 %v2122
          %2660 = vmatprep.subr.bf16.mxu0 0
          %2661 = vmatpush1.bf16.msra.mxu0 %v2119
          %2662 = vmatprep.subr.bf16.mxu0 0
          %2663 = vmatpush2.bf16.msra.mxu0 0
          %2664 = vmatprep.subr.bf16.mxu0 0
          %2665 = vmatpush2.bf16.msra.mxu0 0
          %2666 = vmatprep.subr.bf16.mxu0 0
          %2667 = vmatpush2.bf16.msra.mxu0 0
          %2668 = vmatprep.subr.bf16.mxu0 0
          %2669 = vmatpush2.bf16.msra.mxu0 0
          %2670 = vmatprep.subr.bf16.mxu0 0
          %2671 = vmatpush2.bf16.msra.mxu0 0
          %2672 = vmatprep.subr.bf16.mxu0 0
          %2673 = vmatpush2.bf16.msra.mxu0 0
          %2674 = vmatprep.subr.bf16.mxu0 0
          %2675 = vmatpush2.bf16.msra.mxu0 0
          %2676 = vmatprep.subr.bf16.mxu0 0
          %2677 = vmatpush2.bf16.msra.mxu0 0
          %2678 = vmatprep.mubr.bf16.mxu0 0
          %2679 = vmatmul.mubr.bf16.gmra.mxu0 %v2593
          %v2680 = vpop.f32.mrf.mxu0
          %v2681 = vadd.f32 0.0, %v2680
          %v2682 = vpop.f32.mrf.mxu0
          %v2683 = vpop.f32.mrf.mxu0
          %v2684 = vadd.f32 0.0, %v2683
          %v2685 = vpop.f32.mrf.mxu0
          %2686 = vmatprep.mubr.bf16.mxu0 0
          %2687 = vmatmul.mubr.bf16.gmra.mxu0 %v2594
          %v2688 = vpop.f32.mrf.mxu0
          %v2689 = vadd.f32 0.0, %v2688
          %v2690 = vpop.f32.mrf.mxu0
          %v2691 = vpop.f32.mrf.mxu0
          %v2692 = vpop.f32.mrf.mxu0
          %2693 = vdwg.mxu0
          %v2694 = vadd.f32 %v2529, %v2630
          %v2695 = vadd.f32 %v2533, %v2634
          %v2696 = vadd.f32 %v2539, %v2640
          %v2697 = vmul.f32 %v2694, 0.5
          %v2698 = vmul.f32 %v2695, 0.5
          %v2699 = vmul.f32 %v2696, 0.5
          %v2700 = vtanh.pop %v2697
          %v2701 = vtanh.pop %v2698
          %v2702 = vtanh.pop %v2699
          %v2703 = vadd.f32 %v2700, 1.0
          %v2704 = vadd.f32 %v2701, 1.0
          %v2705 = vadd.f32 %v2702, 1.0
          %v2706 = vmul.f32 %v2703, 0.5
          %v2707 = vmul.f32 %v2704, 0.5
          %v2708 = vmul.f32 %v2705, 0.5
          %v2709 = vadd.f32 %v2531, %v2632
          %v2710 = vadd.f32 %v2535, %v2636
          %v2711 = vadd.f32 %v2541, %v2642
          %v2712 = vmul.f32 %v2709, 0.5
          %v2713 = vmul.f32 %v2710, 0.5
          %v2714 = vmul.f32 %v2711, 0.5
          %v2715 = vtanh.pop %v2712
          %v2716 = vtanh.pop %v2713
          %v2717 = vtanh.pop %v2714
          %v2718 = vadd.f32 %v2715, 1.0
          %v2719 = vadd.f32 %v2716, 1.0
          %v2720 = vadd.f32 %v2717, 1.0
          %v2721 = vmul.f32 %v2718, 0.5
          %v2722 = vmul.f32 %v2719, 0.5
          %v2723 = vmul.f32 %v2720, 0.5
          %v2724 = vadd.f32 %v2681, %v2298
          %v2725 = vadd.f32 %v2684, %v2298
          %v2726 = vadd.f32 %v2689, %v2298
          %v2727 = vmul.f32 %v2706, %v2724
          %v2728 = vmul.f32 %v2707, %v2725
          %v2729 = vmul.f32 %v2708, %v2726
          %v2730 = vadd.f32 %v2580, %v2727
          %v2731 = vadd.f32 %v2583, %v2728
          %v2732 = vadd.f32 %v2588, %v2729
          %v2733 = vtanh.pop %v2730
          %v2734 = vtanh.pop %v2731
          %v2735 = vtanh.pop %v2732
          %v2736 = vsub.f32 1.0, %v2721
          %v2737 = vsub.f32 1.0, %v2722
          %v2738 = vsub.f32 1.0, %v2723
          %v2739 = vmul.f32 %v2736, %v2733
          %v2740 = vmul.f32 %v2737, %v2734
          %v2741 = vmul.f32 %v2738, %v2735
          %v2742 = vmul.f32 %v2721, %v2321
          %v2743 = vmul.f32 %v2722, %v2322
          %v2744 = vmul.f32 %v2723, %v2323
          %v2745 = vadd.f32 %v2739, %v2742
          %v2746 = vadd.f32 %v2740, %v2743
          %v2747 = vadd.f32 %v2741, %v2744
          %s2748 = sadd.s32 %s1390, 48
          %s2749 = sshra.s32 %s2748, 3
          %s2750 = sand.u32 %s2748, 7
          %s2751 = smul.u32 %s2749, 3
          %s2752 = smul.addr %s2751, 8
          %s2753 = scalar_lea.vmem [#allocation2], %s2752
          %v2754 = vld [vmem:[%s2753] sm:$0xff]
          %v2755 = vld [vmem:[%s2753 + $0x8] sm:$0xff]
          %v2756 = vld [vmem:[%s2753 + $0x10] sm:$0xff]
          %v2757 = vld [vmem:[%s2753 + $0x18] sm:$0xff]
          %v2758 = vld [vmem:[%s2753 + $0x20] sm:$0xff]
          %v2759 = vld [vmem:[%s2753 + $0x28] sm:$0xff]
          %v2760 = vld [vmem:[%s2753 + $0x30] sm:$0xff]
          %v2761 = vld [vmem:[%s2753 + $0x38] sm:$0xff]
          %v2762 = vld [vmem:[%s2753 + $0x40] sm:$0xff]
          %2763 = vmatprep.subr.bf16.mxu0 %v1541
          %2764 = vmatpush1.bf16.msra.mxu0 %v1540
          %2765 = vmatprep.subr.bf16.mxu0 %v1538
          %2766 = vmatpush1.bf16.msra.mxu0 %v1537
          %2767 = vmatprep.subr.bf16.mxu0 %v1535
          %2768 = vmatpush1.bf16.msra.mxu0 %v1534
          %2769 = vmatprep.subr.bf16.mxu0 %v1532
          %2770 = vmatpush1.bf16.msra.mxu0 %v1531
          %2771 = vmatprep.subr.bf16.mxu0 %v1529
          %2772 = vmatpush1.bf16.msra.mxu0 %v1528
          %2773 = vmatprep.subr.bf16.mxu0 %v1526
          %2774 = vmatpush1.bf16.msra.mxu0 %v1525
          %2775 = vmatprep.subr.bf16.mxu0 %v1523
          %2776 = vmatpush1.bf16.msra.mxu0 %v1522
          %2777 = vmatprep.subr.bf16.mxu0 %v1520
          %2778 = vmatpush1.bf16.msra.mxu0 %v1519
          %2779 = vmatprep.subr.bf16.mxu0 0
          %2780 = vmatpush2.bf16.msra.mxu0 0
          %2781 = vmatprep.subr.bf16.mxu0 0
          %2782 = vmatpush2.bf16.msra.mxu0 0
          %2783 = vmatprep.subr.bf16.mxu0 0
          %2784 = vmatpush2.bf16.msra.mxu0 0
          %2785 = vmatprep.subr.bf16.mxu0 0
          %2786 = vmatpush2.bf16.msra.mxu0 0
          %2787 = vmatprep.subr.bf16.mxu0 0
          %2788 = vmatpush2.bf16.msra.mxu0 0
          %2789 = vmatprep.subr.bf16.mxu0 0
          %2790 = vmatpush2.bf16.msra.mxu0 0
          %2791 = vmatprep.subr.bf16.mxu0 0
          %2792 = vmatpush2.bf16.msra.mxu0 0
          %2793 = vmatprep.subr.bf16.mxu0 0
          %2794 = vmatpush2.bf16.msra.mxu0 0
          %2795 = vmatprep.mubr.bf16.mxu0 0
          %2796 = vmatmul.mubr.bf16.gmra.mxu0 %v2492
          %v2797 = vpop.f32.mrf.mxu0
          %v2798 = vadd.f32 0.0, %v2797
          %v2799 = vpop.f32.mrf.mxu0
          %v2800 = vadd.f32 0.0, %v2799
          %v2801 = vpop.f32.mrf.mxu0
          %v2802 = vadd.f32 0.0, %v2801
          %v2803 = vpop.f32.mrf.mxu0
          %v2804 = vadd.f32 0.0, %v2803
          %2805 = vmatprep.mubr.bf16.mxu0 0
          %2806 = vmatmul.mubr.bf16.gmra.mxu0 %v2493
          %v2807 = vpop.f32.mrf.mxu0
          %v2808 = vadd.f32 0.0, %v2807
          %v2809 = vpop.f32.mrf.mxu0
          %v2810 = vadd.f32 0.0, %v2809
          %v2811 = vpop.f32.mrf.mxu0
          %v2812 = vpop.f32.mrf.mxu0
          %2813 = vdwg.mxu0
          %2814 = vmatprep.subr.bf16.mxu0 0
          %2815 = vmatpush1.bf16.msra.mxu0 %v1542
          %2816 = vmatprep.subr.bf16.mxu0 0
          %2817 = vmatpush1.bf16.msra.mxu0 %v1539
          %2818 = vmatprep.subr.bf16.mxu0 0
          %2819 = vmatpush1.bf16.msra.mxu0 %v1536
          %2820 = vmatprep.subr.bf16.mxu0 0
          %2821 = vmatpush1.bf16.msra.mxu0 %v1533
          %2822 = vmatprep.subr.bf16.mxu0 0
          %2823 = vmatpush1.bf16.msra.mxu0 %v1530
          %2824 = vmatprep.subr.bf16.mxu0 0
          %2825 = vmatpush1.bf16.msra.mxu0 %v1527
          %2826 = vmatprep.subr.bf16.mxu0 0
          %2827 = vmatpush1.bf16.msra.mxu0 %v1524
          %2828 = vmatprep.subr.bf16.mxu0 0
          %2829 = vmatpush1.bf16.msra.mxu0 %v1521
          %2830 = vmatprep.subr.bf16.mxu0 0
          %2831 = vmatpush2.bf16.msra.mxu0 0
          %2832 = vmatprep.subr.bf16.mxu0 0
          %2833 = vmatpush2.bf16.msra.mxu0 0
          %2834 = vmatprep.subr.bf16.mxu0 0
          %2835 = vmatpush2.bf16.msra.mxu0 0
          %2836 = vmatprep.subr.bf16.mxu0 0
          %2837 = vmatpush2.bf16.msra.mxu0 0
          %2838 = vmatprep.subr.bf16.mxu0 0
          %2839 = vmatpush2.bf16.msra.mxu0 0
          %2840 = vmatprep.subr.bf16.mxu0 0
          %2841 = vmatpush2.bf16.msra.mxu0 0
          %2842 = vmatprep.subr.bf16.mxu0 0
          %2843 = vmatpush2.bf16.msra.mxu0 0
          %2844 = vmatprep.subr.bf16.mxu0 0
          %2845 = vmatpush2.bf16.msra.mxu0 0
          %2846 = vmatprep.mubr.bf16.mxu0 0
          %2847 = vmatmul.mubr.bf16.gmra.mxu0 %v2492
          %v2848 = vpop.f32.mrf.mxu0
          %v2849 = vadd.f32 0.0, %v2848
          %v2850 = vpop.f32.mrf.mxu0
          %v2851 = vpop.f32.mrf.mxu0
          %v2852 = vadd.f32 0.0, %v2851
          %v2853 = vpop.f32.mrf.mxu0
          %2854 = vmatprep.mubr.bf16.mxu0 0
          %2855 = vmatmul.mubr.bf16.gmra.mxu0 %v2493
          %v2856 = vpop.f32.mrf.mxu0
          %v2857 = vadd.f32 0.0, %v2856
          %v2858 = vpop.f32.mrf.mxu0
          %v2859 = vpop.f32.mrf.mxu0
          %v2860 = vpop.f32.mrf.mxu0
          %2861 = vdwg.mxu0
          %v2862 = vadd.f32 %v2754, %v2798
          %v2863 = vadd.f32 %v2757, %v2802
          %v2864 = vadd.f32 %v2760, %v2808
          %v2865 = vmul.f32 %v2862, 0.5
          %v2866 = vmul.f32 %v2863, 0.5
          %v2867 = vmul.f32 %v2864, 0.5
          %v2868 = vtanh.pop %v2865
          %v2869 = vtanh.pop %v2866
          %v2870 = vtanh.pop %v2867
          %v2871 = vadd.f32 %v2868, 1.0
          %v2872 = vadd.f32 %v2869, 1.0
          %v2873 = vadd.f32 %v2870, 1.0
          %v2874 = vmul.f32 %v2871, 0.5
          %v2875 = vmul.f32 %v2872, 0.5
          %v2876 = vmul.f32 %v2873, 0.5
          %v2877 = vadd.f32 %v2755, %v2800
          %v2878 = vadd.f32 %v2758, %v2804
          %v2879 = vadd.f32 %v2761, %v2810
          %v2880 = vmul.f32 %v2877, 0.5
          %v2881 = vmul.f32 %v2878, 0.5
          %v2882 = vmul.f32 %v2879, 0.5
          %v2883 = vtanh.pop %v2880
          %v2884 = vtanh.pop %v2881
          %v2885 = vtanh.pop %v2882
          %v2886 = vadd.f32 %v2883, 1.0
          %v2887 = vadd.f32 %v2884, 1.0
          %v2888 = vadd.f32 %v2885, 1.0
          %v2889 = vmul.f32 %v2886, 0.5
          %v2890 = vmul.f32 %v2887, 0.5
          %v2891 = vmul.f32 %v2888, 0.5
          %v2892 = vadd.f32 %v2849, %v1700
          %v2893 = vadd.f32 %v2852, %v1700
          %v2894 = vadd.f32 %v2857, %v1700
          %v2895 = vmul.f32 %v2874, %v2892
          %v2896 = vmul.f32 %v2875, %v2893
          %v2897 = vmul.f32 %v2876, %v2894
          %v2898 = vadd.f32 %v2756, %v2895
          %v2899 = vadd.f32 %v2759, %v2896
          %v2900 = vadd.f32 %v2762, %v2897
          %v2901 = vtanh.pop %v2898
          %v2902 = vtanh.pop %v2899
          %v2903 = vtanh.pop %v2900
          %v2904 = vsub.f32 1.0, %v2889
          %v2905 = vsub.f32 1.0, %v2890
          %v2906 = vsub.f32 1.0, %v2891
          %v2907 = vmul.f32 %v2904, %v2901
          %v2908 = vmul.f32 %v2905, %v2902
          %v2909 = vmul.f32 %v2906, %v2903
          %v2910 = vmul.f32 %v2889, %v2489
          %v2911 = vmul.f32 %v2890, %v2490
          %v2912 = vmul.f32 %v2891, %v2491
          %v2913 = vadd.f32 %v2907, %v2910
          %v2914 = vadd.f32 %v2908, %v2911
          %v2915 = vadd.f32 %v2909, %v2912
          %v2916 = vpack.c.bf16 %v2914, %v2913
          %v2917 = vpack.c.bf16 %v2915, %v2915
          %2918 = vmatprep.subr.bf16.mxu0 %v1878
          %2919 = vmatpush1.bf16.msra.mxu0 %v1877
          %2920 = vmatprep.subr.bf16.mxu0 %v1875
          %2921 = vmatpush1.bf16.msra.mxu0 %v1874
          %2922 = vmatprep.subr.bf16.mxu0 %v1872
          %2923 = vmatpush1.bf16.msra.mxu0 %v1871
          %2924 = vmatprep.subr.bf16.mxu0 %v1869
          %2925 = vmatpush1.bf16.msra.mxu0 %v1868
          %2926 = vmatprep.subr.bf16.mxu0 %v1866
          %2927 = vmatpush1.bf16.msra.mxu0 %v1865
          %2928 = vmatprep.subr.bf16.mxu0 %v1863
          %2929 = vmatpush1.bf16.msra.mxu0 %v1862
          %2930 = vmatprep.subr.bf16.mxu0 %v1860
          %2931 = vmatpush1.bf16.msra.mxu0 %v1859
          %2932 = vmatprep.subr.bf16.mxu0 %v1857
          %2933 = vmatpush1.bf16.msra.mxu0 %v1856
          %2934 = vmatprep.subr.bf16.mxu0 0
          %2935 = vmatpush2.bf16.msra.mxu0 0
          %2936 = vmatprep.subr.bf16.mxu0 0
          %2937 = vmatpush2.bf16.msra.mxu0 0
          %2938 = vmatprep.subr.bf16.mxu0 0
          %2939 = vmatpush2.bf16.msra.mxu0 0
          %2940 = vmatprep.subr.bf16.mxu0 0
          %2941 = vmatpush2.bf16.msra.mxu0 0
          %2942 = vmatprep.subr.bf16.mxu0 0
          %2943 = vmatpush2.bf16.msra.mxu0 0
          %2944 = vmatprep.subr.bf16.mxu0 0
          %2945 = vmatpush2.bf16.msra.mxu0 0
          %2946 = vmatprep.subr.bf16.mxu0 0
          %2947 = vmatpush2.bf16.msra.mxu0 0
          %2948 = vmatprep.subr.bf16.mxu0 0
          %2949 = vmatpush2.bf16.msra.mxu0 0
          %2950 = vmatprep.mubr.bf16.mxu0 0
          %2951 = vmatmul.mubr.bf16.gmra.mxu0 %v2916
          %v2952 = vpop.f32.mrf.mxu0
          %v2953 = vadd.f32 %v1764, %v2952
          %v2954 = vpop.f32.mrf.mxu0
          %v2955 = vadd.f32 %v1768, %v2954
          %v2956 = vpop.f32.mrf.mxu0
          %v2957 = vadd.f32 %v1764, %v2956
          %v2958 = vpop.f32.mrf.mxu0
          %v2959 = vadd.f32 %v1768, %v2958
          %2960 = vmatprep.mubr.bf16.mxu0 0
          %2961 = vmatmul.mubr.bf16.gmra.mxu0 %v2917
          %v2962 = vpop.f32.mrf.mxu0
          %v2963 = vadd.f32 %v1764, %v2962
          %v2964 = vpop.f32.mrf.mxu0
          %v2965 = vadd.f32 %v1768, %v2964
          %v2966 = vpop.f32.mrf.mxu0
          %v2967 = vpop.f32.mrf.mxu0
          %2968 = vdwg.mxu0
          %2969 = vmatprep.subr.bf16.mxu0 0
          %2970 = vmatpush1.bf16.msra.mxu0 %v1879
          %2971 = vmatprep.subr.bf16.mxu0 0
          %2972 = vmatpush1.bf16.msra.mxu0 %v1876
          %2973 = vmatprep.subr.bf16.mxu0 0
          %2974 = vmatpush1.bf16.msra.mxu0 %v1873
          %2975 = vmatprep.subr.bf16.mxu0 0
          %2976 = vmatpush1.bf16.msra.mxu0 %v1870
          %2977 = vmatprep.subr.bf16.mxu0 0
          %2978 = vmatpush1.bf16.msra.mxu0 %v1867
          %2979 = vmatprep.subr.bf16.mxu0 0
          %2980 = vmatpush1.bf16.msra.mxu0 %v1864
          %2981 = vmatprep.subr.bf16.mxu0 0
          %2982 = vmatpush1.bf16.msra.mxu0 %v1861
          %2983 = vmatprep.subr.bf16.mxu0 0
          %2984 = vmatpush1.bf16.msra.mxu0 %v1858
          %2985 = vmatprep.subr.bf16.mxu0 0
          %2986 = vmatpush2.bf16.msra.mxu0 0
          %2987 = vmatprep.subr.bf16.mxu0 0
          %2988 = vmatpush2.bf16.msra.mxu0 0
          %2989 = vmatprep.subr.bf16.mxu0 0
          %2990 = vmatpush2.bf16.msra.mxu0 0
          %2991 = vmatprep.subr.bf16.mxu0 0
          %2992 = vmatpush2.bf16.msra.mxu0 0
          %2993 = vmatprep.subr.bf16.mxu0 0
          %2994 = vmatpush2.bf16.msra.mxu0 0
          %2995 = vmatprep.subr.bf16.mxu0 0
          %2996 = vmatpush2.bf16.msra.mxu0 0
          %2997 = vmatprep.subr.bf16.mxu0 0
          %2998 = vmatpush2.bf16.msra.mxu0 0
          %2999 = vmatprep.subr.bf16.mxu0 0
          %3000 = vmatpush2.bf16.msra.mxu0 0
          %3001 = vmatprep.mubr.bf16.mxu0 0
          %3002 = vmatmul.mubr.bf16.gmra.mxu0 %v2916
          %v3003 = vpop.f32.mrf.mxu0
          %v3004 = vadd.f32 %v1772, %v3003
          %v3005 = vpop.f32.mrf.mxu0
          %v3006 = vpop.f32.mrf.mxu0
          %v3007 = vadd.f32 %v1772, %v3006
          %v3008 = vpop.f32.mrf.mxu0
          %3009 = vmatprep.mubr.bf16.mxu0 0
          %3010 = vmatmul.mubr.bf16.gmra.mxu0 %v2917
          %v3011 = vpop.f32.mrf.mxu0
          %v3012 = vadd.f32 %v1772, %v3011
          %v3013 = vpop.f32.mrf.mxu0
          %v3014 = vpop.f32.mrf.mxu0
          %v3015 = vpop.f32.mrf.mxu0
          %3016 = vdwg.mxu0
          %v3017 = vpack.c.bf16 %v2746, %v2745
          %v3018 = vpack.c.bf16 %v2747, %v2747
          %3019 = vmatprep.subr.bf16.mxu0 %v2139
          %3020 = vmatpush1.bf16.msra.mxu0 %v2138
          %3021 = vmatprep.subr.bf16.mxu0 %v2136
          %3022 = vmatpush1.bf16.msra.mxu0 %v2135
          %3023 = vmatprep.subr.bf16.mxu0 %v2133
          %3024 = vmatpush1.bf16.msra.mxu0 %v2132
          %3025 = vmatprep.subr.bf16.mxu0 %v2130
          %3026 = vmatpush1.bf16.msra.mxu0 %v2129
          %3027 = vmatprep.subr.bf16.mxu0 %v2127
          %3028 = vmatpush1.bf16.msra.mxu0 %v2126
          %3029 = vmatprep.subr.bf16.mxu0 %v2124
          %3030 = vmatpush1.bf16.msra.mxu0 %v2123
          %3031 = vmatprep.subr.bf16.mxu0 %v2121
          %3032 = vmatpush1.bf16.msra.mxu0 %v2120
          %3033 = vmatprep.subr.bf16.mxu0 %v2118
          %3034 = vmatpush1.bf16.msra.mxu0 %v2117
          %3035 = vmatprep.subr.bf16.mxu0 0
          %3036 = vmatpush2.bf16.msra.mxu0 0
          %3037 = vmatprep.subr.bf16.mxu0 0
          %3038 = vmatpush2.bf16.msra.mxu0 0
          %3039 = vmatprep.subr.bf16.mxu0 0
          %3040 = vmatpush2.bf16.msra.mxu0 0
          %3041 = vmatprep.subr.bf16.mxu0 0
          %3042 = vmatpush2.bf16.msra.mxu0 0
          %3043 = vmatprep.subr.bf16.mxu0 0
          %3044 = vmatpush2.bf16.msra.mxu0 0
          %3045 = vmatprep.subr.bf16.mxu0 0
          %3046 = vmatpush2.bf16.msra.mxu0 0
          %3047 = vmatprep.subr.bf16.mxu0 0
          %3048 = vmatpush2.bf16.msra.mxu0 0
          %3049 = vmatprep.subr.bf16.mxu0 0
          %3050 = vmatpush2.bf16.msra.mxu0 0
          %3051 = vmatprep.mubr.bf16.mxu0 0
          %3052 = vmatmul.mubr.bf16.gmra.mxu0 %v3017
          %v3053 = vpop.f32.mrf.mxu0
          %v3054 = vadd.f32 0.0, %v3053
          %v3055 = vpop.f32.mrf.mxu0
          %v3056 = vadd.f32 0.0, %v3055
          %v3057 = vpop.f32.mrf.mxu0
          %v3058 = vadd.f32 0.0, %v3057
          %v3059 = vpop.f32.mrf.mxu0
          %v3060 = vadd.f32 0.0, %v3059
          %3061 = vmatprep.mubr.bf16.mxu0 0
          %3062 = vmatmul.mubr.bf16.gmra.mxu0 %v3018
          %v3063 = vpop.f32.mrf.mxu0
          %v3064 = vadd.f32 0.0, %v3063
          %v3065 = vpop.f32.mrf.mxu0
          %v3066 = vadd.f32 0.0, %v3065
          %v3067 = vpop.f32.mrf.mxu0
          %v3068 = vpop.f32.mrf.mxu0
          %3069 = vdwg.mxu0
          %3070 = vmatprep.subr.bf16.mxu0 0
          %3071 = vmatpush1.bf16.msra.mxu0 %v2140
          %3072 = vmatprep.subr.bf16.mxu0 0
          %3073 = vmatpush1.bf16.msra.mxu0 %v2137
          %3074 = vmatprep.subr.bf16.mxu0 0
          %3075 = vmatpush1.bf16.msra.mxu0 %v2134
          %3076 = vmatprep.subr.bf16.mxu0 0
          %3077 = vmatpush1.bf16.msra.mxu0 %v2131
          %3078 = vmatprep.subr.bf16.mxu0 0
          %3079 = vmatpush1.bf16.msra.mxu0 %v2128
          %3080 = vmatprep.subr.bf16.mxu0 0
          %3081 = vmatpush1.bf16.msra.mxu0 %v2125
          %3082 = vmatprep.subr.bf16.mxu0 0
          %3083 = vmatpush1.bf16.msra.mxu0 %v2122
          %3084 = vmatprep.subr.bf16.mxu0 0
          %3085 = vmatpush1.bf16.msra.mxu0 %v2119
          %3086 = vmatprep.subr.bf16.mxu0 0
          %3087 = vmatpush2.bf16.msra.mxu0 0
          %3088 = vmatprep.subr.bf16.mxu0 0
          %3089 = vmatpush2.bf16.msra.mxu0 0
          %3090 = vmatprep.subr.bf16.mxu0 0
          %3091 = vmatpush2.bf16.msra.mxu0 0
          %3092 = vmatprep.subr.bf16.mxu0 0
          %3093 = vmatpush2.bf16.msra.mxu0 0
          %3094 = vmatprep.subr.bf16.mxu0 0
          %3095 = vmatpush2.bf16.msra.mxu0 0
          %3096 = vmatprep.subr.bf16.mxu0 0
          %3097 = vmatpush2.bf16.msra.mxu0 0
          %3098 = vmatprep.subr.bf16.mxu0 0
          %3099 = vmatpush2.bf16.msra.mxu0 0
          %3100 = vmatprep.subr.bf16.mxu0 0
          %3101 = vmatpush2.bf16.msra.mxu0 0
          %3102 = vmatprep.mubr.bf16.mxu0 0
          %3103 = vmatmul.mubr.bf16.gmra.mxu0 %v3017
          %v3104 = vpop.f32.mrf.mxu0
          %v3105 = vadd.f32 0.0, %v3104
          %v3106 = vpop.f32.mrf.mxu0
          %v3107 = vpop.f32.mrf.mxu0
          %v3108 = vadd.f32 0.0, %v3107
          %v3109 = vpop.f32.mrf.mxu0
          %3110 = vmatprep.mubr.bf16.mxu0 0
          %3111 = vmatmul.mubr.bf16.gmra.mxu0 %v3018
          %v3112 = vpop.f32.mrf.mxu0
          %v3113 = vadd.f32 0.0, %v3112
          %v3114 = vpop.f32.mrf.mxu0
          %v3115 = vpop.f32.mrf.mxu0
          %v3116 = vpop.f32.mrf.mxu0
          %3117 = vdwg.mxu0
          %v3118 = vadd.f32 %v2953, %v3054
          %v3119 = vadd.f32 %v2957, %v3058
          %v3120 = vadd.f32 %v2963, %v3064
          %v3121 = vmul.f32 %v3118, 0.5
          %v3122 = vmul.f32 %v3119, 0.5
          %v3123 = vmul.f32 %v3120, 0.5
          %v3124 = vtanh.pop %v3121
          %v3125 = vtanh.pop %v3122
          %v3126 = vtanh.pop %v3123
          %v3127 = vadd.f32 %v3124, 1.0
          %v3128 = vadd.f32 %v3125, 1.0
          %v3129 = vadd.f32 %v3126, 1.0
          %v3130 = vmul.f32 %v3127, 0.5
          %v3131 = vmul.f32 %v3128, 0.5
          %v3132 = vmul.f32 %v3129, 0.5
          %v3133 = vadd.f32 %v2955, %v3056
          %v3134 = vadd.f32 %v2959, %v3060
          %v3135 = vadd.f32 %v2965, %v3066
          %v3136 = vmul.f32 %v3133, 0.5
          %v3137 = vmul.f32 %v3134, 0.5
          %v3138 = vmul.f32 %v3135, 0.5
          %v3139 = vtanh.pop %v3136
          %v3140 = vtanh.pop %v3137
          %v3141 = vtanh.pop %v3138
          %v3142 = vadd.f32 %v3139, 1.0
          %v3143 = vadd.f32 %v3140, 1.0
          %v3144 = vadd.f32 %v3141, 1.0
          %v3145 = vmul.f32 %v3142, 0.5
          %v3146 = vmul.f32 %v3143, 0.5
          %v3147 = vmul.f32 %v3144, 0.5
          %v3148 = vadd.f32 %v3105, %v2298
          %v3149 = vadd.f32 %v3108, %v2298
          %v3150 = vadd.f32 %v3113, %v2298
          %v3151 = vmul.f32 %v3130, %v3148
          %v3152 = vmul.f32 %v3131, %v3149
          %v3153 = vmul.f32 %v3132, %v3150
          %v3154 = vadd.f32 %v3004, %v3151
          %v3155 = vadd.f32 %v3007, %v3152
          %v3156 = vadd.f32 %v3012, %v3153
          %v3157 = vtanh.pop %v3154
          %v3158 = vtanh.pop %v3155
          %v3159 = vtanh.pop %v3156
          %v3160 = vsub.f32 1.0, %v3145
          %v3161 = vsub.f32 1.0, %v3146
          %v3162 = vsub.f32 1.0, %v3147
          %v3163 = vmul.f32 %v3160, %v3157
          %v3164 = vmul.f32 %v3161, %v3158
          %v3165 = vmul.f32 %v3162, %v3159
          %v3166 = vmul.f32 %v3145, %v2745
          %v3167 = vmul.f32 %v3146, %v2746
          %v3168 = vmul.f32 %v3147, %v2747
          %v3169 = vadd.f32 %v3163, %v3166
          %v3170 = vadd.f32 %v3164, %v3167
          %v3171 = vadd.f32 %v3165, %v3168
          %s3172 = sadd.s32 %s1390, 72
          %s3173 = sshra.s32 %s3172, 3
          %s3174 = sand.u32 %s3172, 7
          %s3175 = smul.u32 %s3173, 3
          %s3176 = smul.addr %s3175, 8
          %s3177 = scalar_lea.vmem [#allocation2], %s3176
          %v3178 = vld [vmem:[%s3177] sm:$0xff]
          %v3179 = vld [vmem:[%s3177 + $0x8] sm:$0xff]
          %v3180 = vld [vmem:[%s3177 + $0x10] sm:$0xff]
          %v3181 = vld [vmem:[%s3177 + $0x18] sm:$0xff]
          %v3182 = vld [vmem:[%s3177 + $0x20] sm:$0xff]
          %v3183 = vld [vmem:[%s3177 + $0x28] sm:$0xff]
          %v3184 = vld [vmem:[%s3177 + $0x30] sm:$0xff]
          %v3185 = vld [vmem:[%s3177 + $0x38] sm:$0xff]
          %v3186 = vld [vmem:[%s3177 + $0x40] sm:$0xff]
          %3187 = vmatprep.subr.bf16.mxu0 %v1541
          %3188 = vmatpush1.bf16.msra.mxu0 %v1540
          %3189 = vmatprep.subr.bf16.mxu0 %v1538
          %3190 = vmatpush1.bf16.msra.mxu0 %v1537
          %3191 = vmatprep.subr.bf16.mxu0 %v1535
          %3192 = vmatpush1.bf16.msra.mxu0 %v1534
          %3193 = vmatprep.subr.bf16.mxu0 %v1532
          %3194 = vmatpush1.bf16.msra.mxu0 %v1531
          %3195 = vmatprep.subr.bf16.mxu0 %v1529
          %3196 = vmatpush1.bf16.msra.mxu0 %v1528
          %3197 = vmatprep.subr.bf16.mxu0 %v1526
          %3198 = vmatpush1.bf16.msra.mxu0 %v1525
          %3199 = vmatprep.subr.bf16.mxu0 %v1523
          %3200 = vmatpush1.bf16.msra.mxu0 %v1522
          %3201 = vmatprep.subr.bf16.mxu0 %v1520
          %3202 = vmatpush1.bf16.msra.mxu0 %v1519
          %3203 = vmatprep.subr.bf16.mxu0 0
          %3204 = vmatpush2.bf16.msra.mxu0 0
          %3205 = vmatprep.subr.bf16.mxu0 0
          %3206 = vmatpush2.bf16.msra.mxu0 0
          %3207 = vmatprep.subr.bf16.mxu0 0
          %3208 = vmatpush2.bf16.msra.mxu0 0
          %3209 = vmatprep.subr.bf16.mxu0 0
          %3210 = vmatpush2.bf16.msra.mxu0 0
          %3211 = vmatprep.subr.bf16.mxu0 0
          %3212 = vmatpush2.bf16.msra.mxu0 0
          %3213 = vmatprep.subr.bf16.mxu0 0
          %3214 = vmatpush2.bf16.msra.mxu0 0
          %3215 = vmatprep.subr.bf16.mxu0 0
          %3216 = vmatpush2.bf16.msra.mxu0 0
          %3217 = vmatprep.subr.bf16.mxu0 0
          %3218 = vmatpush2.bf16.msra.mxu0 0
          %3219 = vmatprep.mubr.bf16.mxu0 0
          %3220 = vmatmul.mubr.bf16.gmra.mxu0 %v2916
          %v3221 = vpop.f32.mrf.mxu0
          %v3222 = vadd.f32 0.0, %v3221
          %v3223 = vpop.f32.mrf.mxu0
          %v3224 = vadd.f32 0.0, %v3223
          %v3225 = vpop.f32.mrf.mxu0
          %v3226 = vadd.f32 0.0, %v3225
          %v3227 = vpop.f32.mrf.mxu0
          %v3228 = vadd.f32 0.0, %v3227
          %3229 = vmatprep.mubr.bf16.mxu0 0
          %3230 = vmatmul.mubr.bf16.gmra.mxu0 %v2917
          %v3231 = vpop.f32.mrf.mxu0
          %v3232 = vadd.f32 0.0, %v3231
          %v3233 = vpop.f32.mrf.mxu0
          %v3234 = vadd.f32 0.0, %v3233
          %v3235 = vpop.f32.mrf.mxu0
          %v3236 = vpop.f32.mrf.mxu0
          %3237 = vdwg.mxu0
          %3238 = vmatprep.subr.bf16.mxu0 0
          %3239 = vmatpush1.bf16.msra.mxu0 %v1542
          %3240 = vmatprep.subr.bf16.mxu0 0
          %3241 = vmatpush1.bf16.msra.mxu0 %v1539
          %3242 = vmatprep.subr.bf16.mxu0 0
          %3243 = vmatpush1.bf16.msra.mxu0 %v1536
          %3244 = vmatprep.subr.bf16.mxu0 0
          %3245 = vmatpush1.bf16.msra.mxu0 %v1533
          %3246 = vmatprep.subr.bf16.mxu0 0
          %3247 = vmatpush1.bf16.msra.mxu0 %v1530
          %3248 = vmatprep.subr.bf16.mxu0 0
          %3249 = vmatpush1.bf16.msra.mxu0 %v1527
          %3250 = vmatprep.subr.bf16.mxu0 0
          %3251 = vmatpush1.bf16.msra.mxu0 %v1524
          %3252 = vmatprep.subr.bf16.mxu0 0
          %3253 = vmatpush1.bf16.msra.mxu0 %v1521
          %3254 = vmatprep.subr.bf16.mxu0 0
          %3255 = vmatpush2.bf16.msra.mxu0 0
          %3256 = vmatprep.subr.bf16.mxu0 0
          %3257 = vmatpush2.bf16.msra.mxu0 0
          %3258 = vmatprep.subr.bf16.mxu0 0
          %3259 = vmatpush2.bf16.msra.mxu0 0
          %3260 = vmatprep.subr.bf16.mxu0 0
          %3261 = vmatpush2.bf16.msra.mxu0 0
          %3262 = vmatprep.subr.bf16.mxu0 0
          %3263 = vmatpush2.bf16.msra.mxu0 0
          %3264 = vmatprep.subr.bf16.mxu0 0
          %3265 = vmatpush2.bf16.msra.mxu0 0
          %3266 = vmatprep.subr.bf16.mxu0 0
          %3267 = vmatpush2.bf16.msra.mxu0 0
          %3268 = vmatprep.subr.bf16.mxu0 0
          %3269 = vmatpush2.bf16.msra.mxu0 0
          %3270 = vmatprep.mubr.bf16.mxu0 0
          %3271 = vmatmul.mubr.bf16.gmra.mxu0 %v2916
          %v3272 = vpop.f32.mrf.mxu0
          %v3273 = vadd.f32 0.0, %v3272
          %v3274 = vpop.f32.mrf.mxu0
          %v3275 = vpop.f32.mrf.mxu0
          %v3276 = vadd.f32 0.0, %v3275
          %v3277 = vpop.f32.mrf.mxu0
          %3278 = vmatprep.mubr.bf16.mxu0 0
          %3279 = vmatmul.mubr.bf16.gmra.mxu0 %v2917
          %v3280 = vpop.f32.mrf.mxu0
          %v3281 = vadd.f32 0.0, %v3280
          %v3282 = vpop.f32.mrf.mxu0
          %v3283 = vpop.f32.mrf.mxu0
          %v3284 = vpop.f32.mrf.mxu0
          %3285 = vdwg.mxu0
          %v3286 = vadd.f32 %v3178, %v3222
          %v3287 = vadd.f32 %v3181, %v3226
          %v3288 = vadd.f32 %v3184, %v3232
          %v3289 = vmul.f32 %v3286, 0.5
          %v3290 = vmul.f32 %v3287, 0.5
          %v3291 = vmul.f32 %v3288, 0.5
          %v3292 = vtanh.pop %v3289
          %v3293 = vtanh.pop %v3290
          %v3294 = vtanh.pop %v3291
          %v3295 = vadd.f32 %v3292, 1.0
          %v3296 = vadd.f32 %v3293, 1.0
          %v3297 = vadd.f32 %v3294, 1.0
          %v3298 = vmul.f32 %v3295, 0.5
          %v3299 = vmul.f32 %v3296, 0.5
          %v3300 = vmul.f32 %v3297, 0.5
          %v3301 = vadd.f32 %v3179, %v3224
          %v3302 = vadd.f32 %v3182, %v3228
          %v3303 = vadd.f32 %v3185, %v3234
          %v3304 = vmul.f32 %v3301, 0.5
          %v3305 = vmul.f32 %v3302, 0.5
          %v3306 = vmul.f32 %v3303, 0.5
          %v3307 = vtanh.pop %v3304
          %v3308 = vtanh.pop %v3305
          %v3309 = vtanh.pop %v3306
          %v3310 = vadd.f32 %v3307, 1.0
          %v3311 = vadd.f32 %v3308, 1.0
          %v3312 = vadd.f32 %v3309, 1.0
          %v3313 = vmul.f32 %v3310, 0.5
          %v3314 = vmul.f32 %v3311, 0.5
          %v3315 = vmul.f32 %v3312, 0.5
          %v3316 = vadd.f32 %v3273, %v1700
          %v3317 = vadd.f32 %v3276, %v1700
          %v3318 = vadd.f32 %v3281, %v1700
          %v3319 = vmul.f32 %v3298, %v3316
          %v3320 = vmul.f32 %v3299, %v3317
          %v3321 = vmul.f32 %v3300, %v3318
          %v3322 = vadd.f32 %v3180, %v3319
          %v3323 = vadd.f32 %v3183, %v3320
          %v3324 = vadd.f32 %v3186, %v3321
          %v3325 = vtanh.pop %v3322
          %v3326 = vtanh.pop %v3323
          %v3327 = vtanh.pop %v3324
          %v3328 = vsub.f32 1.0, %v3313
          %v3329 = vsub.f32 1.0, %v3314
          %v3330 = vsub.f32 1.0, %v3315
          %v3331 = vmul.f32 %v3328, %v3325
          %v3332 = vmul.f32 %v3329, %v3326
          %v3333 = vmul.f32 %v3330, %v3327
          %v3334 = vmul.f32 %v3313, %v2913
          %v3335 = vmul.f32 %v3314, %v2914
          %v3336 = vmul.f32 %v3315, %v2915
          %v3337 = vadd.f32 %v3331, %v3334
          %v3338 = vadd.f32 %v3332, %v3335
          %v3339 = vadd.f32 %v3333, %v3336
          %v3340 = vpack.c.bf16 %v3338, %v3337
          %v3341 = vpack.c.bf16 %v3339, %v3339
          %3342 = vmatprep.subr.bf16.mxu0 %v1878
          %3343 = vmatpush1.bf16.msra.mxu0 %v1877
          %3344 = vmatprep.subr.bf16.mxu0 %v1875
          %3345 = vmatpush1.bf16.msra.mxu0 %v1874
          %3346 = vmatprep.subr.bf16.mxu0 %v1872
          %3347 = vmatpush1.bf16.msra.mxu0 %v1871
          %3348 = vmatprep.subr.bf16.mxu0 %v1869
          %3349 = vmatpush1.bf16.msra.mxu0 %v1868
          %3350 = vmatprep.subr.bf16.mxu0 %v1866
          %3351 = vmatpush1.bf16.msra.mxu0 %v1865
          %3352 = vmatprep.subr.bf16.mxu0 %v1863
          %3353 = vmatpush1.bf16.msra.mxu0 %v1862
          %3354 = vmatprep.subr.bf16.mxu0 %v1860
          %3355 = vmatpush1.bf16.msra.mxu0 %v1859
          %3356 = vmatprep.subr.bf16.mxu0 %v1857
          %3357 = vmatpush1.bf16.msra.mxu0 %v1856
          %3358 = vmatprep.subr.bf16.mxu0 0
          %3359 = vmatpush2.bf16.msra.mxu0 0
          %3360 = vmatprep.subr.bf16.mxu0 0
          %3361 = vmatpush2.bf16.msra.mxu0 0
          %3362 = vmatprep.subr.bf16.mxu0 0
          %3363 = vmatpush2.bf16.msra.mxu0 0
          %3364 = vmatprep.subr.bf16.mxu0 0
          %3365 = vmatpush2.bf16.msra.mxu0 0
          %3366 = vmatprep.subr.bf16.mxu0 0
          %3367 = vmatpush2.bf16.msra.mxu0 0
          %3368 = vmatprep.subr.bf16.mxu0 0
          %3369 = vmatpush2.bf16.msra.mxu0 0
          %3370 = vmatprep.subr.bf16.mxu0 0
          %3371 = vmatpush2.bf16.msra.mxu0 0
          %3372 = vmatprep.subr.bf16.mxu0 0
          %3373 = vmatpush2.bf16.msra.mxu0 0
          %3374 = vmatprep.mubr.bf16.mxu0 0
          %3375 = vmatmul.mubr.bf16.gmra.mxu0 %v3340
          %v3376 = vpop.f32.mrf.mxu0
          %v3377 = vadd.f32 %v1764, %v3376
          %v3378 = vpop.f32.mrf.mxu0
          %v3379 = vadd.f32 %v1768, %v3378
          %v3380 = vpop.f32.mrf.mxu0
          %v3381 = vadd.f32 %v1764, %v3380
          %v3382 = vpop.f32.mrf.mxu0
          %v3383 = vadd.f32 %v1768, %v3382
          %3384 = vmatprep.mubr.bf16.mxu0 0
          %3385 = vmatmul.mubr.bf16.gmra.mxu0 %v3341
          %v3386 = vpop.f32.mrf.mxu0
          %v3387 = vadd.f32 %v1764, %v3386
          %v3388 = vpop.f32.mrf.mxu0
          %v3389 = vadd.f32 %v1768, %v3388
          %v3390 = vpop.f32.mrf.mxu0
          %v3391 = vpop.f32.mrf.mxu0
          %3392 = vdwg.mxu0
          %3393 = vmatprep.subr.bf16.mxu0 0
          %3394 = vmatpush1.bf16.msra.mxu0 %v1879
          %3395 = vmatprep.subr.bf16.mxu0 0
          %3396 = vmatpush1.bf16.msra.mxu0 %v1876
          %3397 = vmatprep.subr.bf16.mxu0 0
          %3398 = vmatpush1.bf16.msra.mxu0 %v1873
          %3399 = vmatprep.subr.bf16.mxu0 0
          %3400 = vmatpush1.bf16.msra.mxu0 %v1870
          %3401 = vmatprep.subr.bf16.mxu0 0
          %3402 = vmatpush1.bf16.msra.mxu0 %v1867
          %3403 = vmatprep.subr.bf16.mxu0 0
          %3404 = vmatpush1.bf16.msra.mxu0 %v1864
          %3405 = vmatprep.subr.bf16.mxu0 0
          %3406 = vmatpush1.bf16.msra.mxu0 %v1861
          %3407 = vmatprep.subr.bf16.mxu0 0
          %3408 = vmatpush1.bf16.msra.mxu0 %v1858
          %3409 = vmatprep.subr.bf16.mxu0 0
          %3410 = vmatpush2.bf16.msra.mxu0 0
          %3411 = vmatprep.subr.bf16.mxu0 0
          %3412 = vmatpush2.bf16.msra.mxu0 0
          %3413 = vmatprep.subr.bf16.mxu0 0
          %3414 = vmatpush2.bf16.msra.mxu0 0
          %3415 = vmatprep.subr.bf16.mxu0 0
          %3416 = vmatpush2.bf16.msra.mxu0 0
          %3417 = vmatprep.subr.bf16.mxu0 0
          %3418 = vmatpush2.bf16.msra.mxu0 0
          %3419 = vmatprep.subr.bf16.mxu0 0
          %3420 = vmatpush2.bf16.msra.mxu0 0
          %3421 = vmatprep.subr.bf16.mxu0 0
          %3422 = vmatpush2.bf16.msra.mxu0 0
          %3423 = vmatprep.subr.bf16.mxu0 0
          %3424 = vmatpush2.bf16.msra.mxu0 0
          %3425 = vmatprep.mubr.bf16.mxu0 0
          %3426 = vmatmul.mubr.bf16.gmra.mxu0 %v3340
          %v3427 = vpop.f32.mrf.mxu0
          %v3428 = vadd.f32 %v1772, %v3427
          %v3429 = vpop.f32.mrf.mxu0
          %v3430 = vpop.f32.mrf.mxu0
          %v3431 = vadd.f32 %v1772, %v3430
          %v3432 = vpop.f32.mrf.mxu0
          %3433 = vmatprep.mubr.bf16.mxu0 0
          %3434 = vmatmul.mubr.bf16.gmra.mxu0 %v3341
          %v3435 = vpop.f32.mrf.mxu0
          %v3436 = vadd.f32 %v1772, %v3435
          %v3437 = vpop.f32.mrf.mxu0
          %v3438 = vpop.f32.mrf.mxu0
          %v3439 = vpop.f32.mrf.mxu0
          %3440 = vdwg.mxu0
          %v3441 = vpack.c.bf16 %v3170, %v3169
          %v3442 = vpack.c.bf16 %v3171, %v3171
          %3443 = vmatprep.subr.bf16.mxu0 %v2139
          %3444 = vmatpush1.bf16.msra.mxu0 %v2138
          %3445 = vmatprep.subr.bf16.mxu0 %v2136
          %3446 = vmatpush1.bf16.msra.mxu0 %v2135
          %3447 = vmatprep.subr.bf16.mxu0 %v2133
          %3448 = vmatpush1.bf16.msra.mxu0 %v2132
          %3449 = vmatprep.subr.bf16.mxu0 %v2130
          %3450 = vmatpush1.bf16.msra.mxu0 %v2129
          %3451 = vmatprep.subr.bf16.mxu0 %v2127
          %3452 = vmatpush1.bf16.msra.mxu0 %v2126
          %3453 = vmatprep.subr.bf16.mxu0 %v2124
          %3454 = vmatpush1.bf16.msra.mxu0 %v2123
          %3455 = vmatprep.subr.bf16.mxu0 %v2121
          %3456 = vmatpush1.bf16.msra.mxu0 %v2120
          %3457 = vmatprep.subr.bf16.mxu0 %v2118
          %3458 = vmatpush1.bf16.msra.mxu0 %v2117
          %3459 = vmatprep.subr.bf16.mxu0 0
          %3460 = vmatpush2.bf16.msra.mxu0 0
          %3461 = vmatprep.subr.bf16.mxu0 0
          %3462 = vmatpush2.bf16.msra.mxu0 0
          %3463 = vmatprep.subr.bf16.mxu0 0
          %3464 = vmatpush2.bf16.msra.mxu0 0
          %3465 = vmatprep.subr.bf16.mxu0 0
          %3466 = vmatpush2.bf16.msra.mxu0 0
          %3467 = vmatprep.subr.bf16.mxu0 0
          %3468 = vmatpush2.bf16.msra.mxu0 0
          %3469 = vmatprep.subr.bf16.mxu0 0
          %3470 = vmatpush2.bf16.msra.mxu0 0
          %3471 = vmatprep.subr.bf16.mxu0 0
          %3472 = vmatpush2.bf16.msra.mxu0 0
          %3473 = vmatprep.subr.bf16.mxu0 0
          %3474 = vmatpush2.bf16.msra.mxu0 0
          %3475 = vmatprep.mubr.bf16.mxu0 0
          %3476 = vmatmul.mubr.bf16.gmra.mxu0 %v3441
          %v3477 = vpop.f32.mrf.mxu0
          %v3478 = vadd.f32 0.0, %v3477
          %v3479 = vpop.f32.mrf.mxu0
          %v3480 = vadd.f32 0.0, %v3479
          %v3481 = vpop.f32.mrf.mxu0
          %v3482 = vadd.f32 0.0, %v3481
          %v3483 = vpop.f32.mrf.mxu0
          %v3484 = vadd.f32 0.0, %v3483
          %3485 = vmatprep.mubr.bf16.mxu0 0
          %3486 = vmatmul.mubr.bf16.gmra.mxu0 %v3442
          %v3487 = vpop.f32.mrf.mxu0
          %v3488 = vadd.f32 0.0, %v3487
          %v3489 = vpop.f32.mrf.mxu0
          %v3490 = vadd.f32 0.0, %v3489
          %v3491 = vpop.f32.mrf.mxu0
          %v3492 = vpop.f32.mrf.mxu0
          %3493 = vdwg.mxu0
          %3494 = vmatprep.subr.bf16.mxu0 0
          %3495 = vmatpush1.bf16.msra.mxu0 %v2140
          %3496 = vmatprep.subr.bf16.mxu0 0
          %3497 = vmatpush1.bf16.msra.mxu0 %v2137
          %3498 = vmatprep.subr.bf16.mxu0 0
          %3499 = vmatpush1.bf16.msra.mxu0 %v2134
          %3500 = vmatprep.subr.bf16.mxu0 0
          %3501 = vmatpush1.bf16.msra.mxu0 %v2131
          %3502 = vmatprep.subr.bf16.mxu0 0
          %3503 = vmatpush1.bf16.msra.mxu0 %v2128
          %3504 = vmatprep.subr.bf16.mxu0 0
          %3505 = vmatpush1.bf16.msra.mxu0 %v2125
          %3506 = vmatprep.subr.bf16.mxu0 0
          %3507 = vmatpush1.bf16.msra.mxu0 %v2122
          %3508 = vmatprep.subr.bf16.mxu0 0
          %3509 = vmatpush1.bf16.msra.mxu0 %v2119
          %3510 = vmatprep.subr.bf16.mxu0 0
          %3511 = vmatpush2.bf16.msra.mxu0 0
          %3512 = vmatprep.subr.bf16.mxu0 0
          %3513 = vmatpush2.bf16.msra.mxu0 0
          %3514 = vmatprep.subr.bf16.mxu0 0
          %3515 = vmatpush2.bf16.msra.mxu0 0
          %3516 = vmatprep.subr.bf16.mxu0 0
          %3517 = vmatpush2.bf16.msra.mxu0 0
          %3518 = vmatprep.subr.bf16.mxu0 0
          %3519 = vmatpush2.bf16.msra.mxu0 0
          %3520 = vmatprep.subr.bf16.mxu0 0
          %3521 = vmatpush2.bf16.msra.mxu0 0
          %3522 = vmatprep.subr.bf16.mxu0 0
          %3523 = vmatpush2.bf16.msra.mxu0 0
          %3524 = vmatprep.subr.bf16.mxu0 0
          %3525 = vmatpush2.bf16.msra.mxu0 0
          %3526 = vmatprep.mubr.bf16.mxu0 0
          %3527 = vmatmul.mubr.bf16.gmra.mxu0 %v3441
          %v3528 = vpop.f32.mrf.mxu0
          %v3529 = vadd.f32 0.0, %v3528
          %v3530 = vpop.f32.mrf.mxu0
          %v3531 = vpop.f32.mrf.mxu0
          %v3532 = vadd.f32 0.0, %v3531
          %v3533 = vpop.f32.mrf.mxu0
          %3534 = vmatprep.mubr.bf16.mxu0 0
          %3535 = vmatmul.mubr.bf16.gmra.mxu0 %v3442
          %v3536 = vpop.f32.mrf.mxu0
          %v3537 = vadd.f32 0.0, %v3536
          %v3538 = vpop.f32.mrf.mxu0
          %v3539 = vpop.f32.mrf.mxu0
          %v3540 = vpop.f32.mrf.mxu0
          %3541 = vdwg.mxu0
          %v3542 = vadd.f32 %v3377, %v3478
          %v3543 = vadd.f32 %v3381, %v3482
          %v3544 = vadd.f32 %v3387, %v3488
          %v3545 = vmul.f32 %v3542, 0.5
          %v3546 = vmul.f32 %v3543, 0.5
          %v3547 = vmul.f32 %v3544, 0.5
          %v3548 = vtanh.pop %v3545
          %v3549 = vtanh.pop %v3546
          %v3550 = vtanh.pop %v3547
          %v3551 = vadd.f32 %v3548, 1.0
          %v3552 = vadd.f32 %v3549, 1.0
          %v3553 = vadd.f32 %v3550, 1.0
          %v3554 = vmul.f32 %v3551, 0.5
          %v3555 = vmul.f32 %v3552, 0.5
          %v3556 = vmul.f32 %v3553, 0.5
          %v3557 = vadd.f32 %v3379, %v3480
          %v3558 = vadd.f32 %v3383, %v3484
          %v3559 = vadd.f32 %v3389, %v3490
          %v3560 = vmul.f32 %v3557, 0.5
          %v3561 = vmul.f32 %v3558, 0.5
          %v3562 = vmul.f32 %v3559, 0.5
          %v3563 = vtanh.pop %v3560
          %v3564 = vtanh.pop %v3561
          %v3565 = vtanh.pop %v3562
          %v3566 = vadd.f32 %v3563, 1.0
          %v3567 = vadd.f32 %v3564, 1.0
          %v3568 = vadd.f32 %v3565, 1.0
          %v3569 = vmul.f32 %v3566, 0.5
          %v3570 = vmul.f32 %v3567, 0.5
          %v3571 = vmul.f32 %v3568, 0.5
          %v3572 = vadd.f32 %v3529, %v2298
          %v3573 = vadd.f32 %v3532, %v2298
          %v3574 = vadd.f32 %v3537, %v2298
          %v3575 = vmul.f32 %v3554, %v3572
          %v3576 = vmul.f32 %v3555, %v3573
          %v3577 = vmul.f32 %v3556, %v3574
          %v3578 = vadd.f32 %v3428, %v3575
          %v3579 = vadd.f32 %v3431, %v3576
          %v3580 = vadd.f32 %v3436, %v3577
          %v3581 = vtanh.pop %v3578
          %v3582 = vtanh.pop %v3579
          %v3583 = vtanh.pop %v3580
          %v3584 = vsub.f32 1.0, %v3569
          %v3585 = vsub.f32 1.0, %v3570
          %v3586 = vsub.f32 1.0, %v3571
          %v3587 = vmul.f32 %v3584, %v3581
          %v3588 = vmul.f32 %v3585, %v3582
          %v3589 = vmul.f32 %v3586, %v3583
          %v3590 = vmul.f32 %v3569, %v3169
          %v3591 = vmul.f32 %v3570, %v3170
          %v3592 = vmul.f32 %v3571, %v3171
          %v3593 = vadd.f32 %v3587, %v3590
          %v3594 = vadd.f32 %v3588, %v3591
          %v3595 = vadd.f32 %v3589, %v3592
        $region93: #{tpu_custom_call.1} parent=63 // loop_footer
          %s924 = sadd.s32 1, %s920
        $region94: #{tpu_custom_call.1} parent=63 // loop_footer_branch
          %919 = sbr.rel target = $region90
        $region95: #{tpu_custom_call.1} parent=63 // loop_exit
          _
        %v3596 = vpack.c.bf16 %v929, %v928
        %v3597 = vpack.c.bf16 %v930, %v930
        %v3598 = vld [vmem:[#allocation12] sm:$0xf]
        %v3599 = vld [vmem:[#allocation12 + $0x4] sm:$0xf]
        %v3600 = vld [vmem:[#allocation12 + $0x8] sm:$0xf]
        %v3601 = vld [vmem:[#allocation12 + $0xc] sm:$0xf]
        %v3602 = vld [vmem:[#allocation12 + $0x10] sm:$0xf]
        %v3603 = vld [vmem:[#allocation12 + $0x14] sm:$0xf]
        %v3604 = vld [vmem:[#allocation12 + $0x18] sm:$0xf]
        %v3605 = vld [vmem:[#allocation12 + $0x1c] sm:$0xf]
        %v3606 = vld [vmem:[#allocation12 + $0x20] sm:$0xf]
        %v3607 = vld [vmem:[#allocation12 + $0x24] sm:$0xf]
        %v3608 = vld [vmem:[#allocation12 + $0x28] sm:$0xf]
        %v3609 = vld [vmem:[#allocation12 + $0x2c] sm:$0xf]
        %v3610 = vld [vmem:[#allocation12 + $0x30] sm:$0xf]
        %v3611 = vld [vmem:[#allocation12 + $0x34] sm:$0xf]
        %v3612 = vld [vmem:[#allocation12 + $0x38] sm:$0xf]
        %v3613 = vld [vmem:[#allocation12 + $0x3c] sm:$0xf]
        %v3614 = vld [vmem:[%s10] sm:$0x1]
        %v3616 = vlaneseq
        %v3617 = vshrl.u32 %v3616, 7
        %v3618 = vsub.s32 0, %v3617
        %v3619 = vrot.slane %v3614, %v3618
        %v3637 = vunpack.c.l.b16 %v3598
        %v3638 = vunpack.c.l.b16 %v3599
        %v3639 = vunpack.c.l.b16 %v3600
        %v3640 = vunpack.c.l.b16 %v3601
        %v3641 = vunpack.c.l.b16 %v3602
        %v3642 = vunpack.c.l.b16 %v3603
        %v3643 = vunpack.c.l.b16 %v3604
        %v3644 = vunpack.c.l.b16 %v3605
        %v3645 = vunpack.c.l.b16 %v3606
        %v3646 = vunpack.c.l.b16 %v3607
        %v3647 = vunpack.c.l.b16 %v3608
        %v3648 = vunpack.c.l.b16 %v3609
        %v3649 = vunpack.c.l.b16 %v3610
        %v3650 = vunpack.c.l.b16 %v3611
        %v3651 = vunpack.c.l.b16 %v3612
        %v3652 = vunpack.c.l.b16 %v3613
        %v3653 = vpack.c.b16 %v3638, %v3637
        %v3654 = vpack.c.b16 %v3640, %v3639
        %v3655 = vpack.c.b16 %v3642, %v3641
        %v3656 = vpack.c.b16 %v3644, %v3643
        %v3657 = vpack.c.b16 %v3646, %v3645
        %v3658 = vpack.c.b16 %v3648, %v3647
        %v3659 = vpack.c.b16 %v3650, %v3649
        %v3660 = vpack.c.b16 %v3652, %v3651
        %3669 = vmatprep.subr.bf16.mxu0 0
        %3670 = vmatpush1.bf16.msra.mxu0 %v3660
        %3671 = vmatprep.subr.bf16.mxu0 0
        %3672 = vmatpush1.bf16.msra.mxu0 %v3659
        %3673 = vmatprep.subr.bf16.mxu0 0
        %3674 = vmatpush1.bf16.msra.mxu0 %v3658
        %3675 = vmatprep.subr.bf16.mxu0 0
        %3676 = vmatpush1.bf16.msra.mxu0 %v3657
        %3677 = vmatprep.subr.bf16.mxu0 0
        %3678 = vmatpush1.bf16.msra.mxu0 %v3656
        %3679 = vmatprep.subr.bf16.mxu0 0
        %3680 = vmatpush1.bf16.msra.mxu0 %v3655
        %3681 = vmatprep.subr.bf16.mxu0 0
        %3682 = vmatpush1.bf16.msra.mxu0 %v3654
        %3683 = vmatprep.subr.bf16.mxu0 0
        %3684 = vmatpush1.bf16.msra.mxu0 %v3653
        %3685 = vmatprep.subr.bf16.mxu0 0
        %3686 = vmatpush2.bf16.msra.mxu0 0
        %3687 = vmatprep.subr.bf16.mxu0 0
        %3688 = vmatpush2.bf16.msra.mxu0 0
        %3689 = vmatprep.subr.bf16.mxu0 0
        %3690 = vmatpush2.bf16.msra.mxu0 0
        %3691 = vmatprep.subr.bf16.mxu0 0
        %3692 = vmatpush2.bf16.msra.mxu0 0
        %3693 = vmatprep.subr.bf16.mxu0 0
        %3694 = vmatpush2.bf16.msra.mxu0 0
        %3695 = vmatprep.subr.bf16.mxu0 0
        %3696 = vmatpush2.bf16.msra.mxu0 0
        %3697 = vmatprep.subr.bf16.mxu0 0
        %3698 = vmatpush2.bf16.msra.mxu0 0
        %3699 = vmatprep.subr.bf16.mxu0 0
        %3700 = vmatpush2.bf16.msra.mxu0 0
        %3701 = vmatprep.mubr.bf16.mxu0 0
        %3702 = vmatmul.mubr.bf16.gmra.mxu0 %v3596
        %v3703 = vpop.f32.mrf.mxu0
        %v3704 = vadd.f32 %v3619, %v3703
        %v3705 = vpop.f32.mrf.mxu0
        %v3706 = vpop.f32.mrf.mxu0
        %v3707 = vadd.f32 %v3619, %v3706
        %v3708 = vpop.f32.mrf.mxu0
        %3709 = vmatprep.mubr.bf16.mxu0 0
        %3710 = vmatmul.mubr.bf16.gmra.mxu0 %v3597
        %v3711 = vpop.f32.mrf.mxu0
        %v3712 = vadd.f32 %v3619, %v3711
        %v3713 = vpop.f32.mrf.mxu0
        %v3714 = vpop.f32.mrf.mxu0
        %v3715 = vpop.f32.mrf.mxu0
        %3716 = vdwg.mxu0
        %3717 = vst [vmem:[%s477] sm:$0xff] %v3704
        %3718 = vst [vmem:[%s477 + $0x8] sm:$0xff] %v3707
        %3719 = vst [vmem:[%s477 + $0x10] sm:$0xff] %v3712
        %s3720 = sand.u32 %s275, 1
        %s3721 = scalar_lea.sflag [#allocation5], %s3720
        %s3722 = sand.u32 %s275, 1
        %s3723 = smul.addr %s3722, 24
        %s3724 = scalar_lea.vmem [#allocation14], %s3723
        // Predicated region
        $region100: #{tpu_custom_call.1} parent=63 // pred_check
          %p3725 = pneg %p285
        $region101: #{tpu_custom_call.1} parent=63 // pred_check_branch
          %3727 = sbr.rel (%p3725) target = $region103
        $region102: #{tpu_custom_call.1} parent=63 // pred_region
          %s3728 = smul.u32 3, %s31
          %s3730 = ssub.s32 384, 384
          %3731 = vsyncadd %s3721, %s3730
          %s3732 = smul.addr %s3728, 128
          %s3733 = scalar_lea.hbm %s11, %s3732
          %s3734 = sshll.u32 %s3724, 4
          %s3735 = int_to_ptr.vmem [resolvable:$true] %s3734
          %3740 = dma.vmem_to_hbm [thread:$0]  %s3735, 384, %s3733, %s3721, 128, 128, 8
        $region103: #{tpu_custom_call.1} parent=63 // pred_fallthru
          _
      $region64: #{tpu_custom_call.1} parent=5 // pred_fallthru
        _
      %p3741 = scmp.le.s32.totalorder 2, %s26
      // Predicated region
      $region104: #{tpu_custom_call.1} parent=5 // pred_check
        %p3742 = pneg %p3741
      $region105: #{tpu_custom_call.1} parent=5 // pred_check_branch
        %3744 = sbr.rel (%p3742) target = $region107
      $region106: #{tpu_custom_call.1} parent=5 // pred_region
        %s3745 = ssub.s32 %s26, 2
        // Predicated region
        $region108: #{tpu_custom_call.1} parent=106 // pred_check
          %p3746 = pneg %p291
        $region109: #{tpu_custom_call.1} parent=106 // pred_check_branch
          %3748 = sbr.rel (%p3746) target = $region111
        $region110: #{tpu_custom_call.1} parent=106 // pred_region
          %s3749 = sand.u32 %s276, 1
          %s3750 = scalar_lea.sflag [#allocation5], %s3749
          %s3751 = sand.u32 %s276, 1
          %s3752 = smul.addr %s3751, 24
          %s3753 = scalar_lea.vmem [#allocation14], %s3752
          %3754 = dma.done %s3750, 384
        $region111: #{tpu_custom_call.1} parent=106 // pred_fallthru
          _
      $region107: #{tpu_custom_call.1} parent=5 // pred_fallthru
        _
    $region6: #{tpu_custom_call.1} parent=1 // loop_footer
      %s30 = sadd.s32 1, %s26
    $region7: #{tpu_custom_call.1} parent=1 // loop_footer_branch
      %25 = sbr.rel target = $region3
    $region8: #{tpu_custom_call.1} parent=1 // loop_exit
      _
    %3755 = vsyncpa [#allocation4], 1
    %s3756 = scalar_lea.sflag [#allocation4], 1
    %3757 = vsyncpa %s3756, 1
    %3758 = vsyncpa [#allocation7], 1
    %3759 = vsyncpa [#allocation10], 1
    %3760 = vsyncpa [#allocation13], 1
    %3761 = vsyncpa [#allocation5], 1
    %s3762 = scalar_lea.sflag [#allocation5], 1
    %3763 = vsyncpa %s3762, 1

</llo_original>
